<compile_context>
chip_gen: v6e
topology: v6e:2x2x1
jax: 0.10.0
libtpu: 0.0.40
codegen_flags: <defaults>
</compile_context>

<pallas_src>
import functools

import jax
import jax.numpy as jnp
from jax.experimental import pallas as pl
from jax.experimental.pallas import tpu as pltpu


def _layer_norm(x, w, b, eps=1e-5):
    mean = jnp.mean(x, axis=-1, keepdims=True)
    var = jnp.mean((x - mean) ** 2, axis=-1, keepdims=True)   # biased var (PyTorch LayerNorm)
    return (x - mean) * jax.lax.rsqrt(var + eps) * w + b


def podos_kernel(x_ref, proj_w_ref, glob_b_ref,
                 qkv_w_ref, qkv_b_ref, outproj_w_ref, vecs_ref,
                 ff1_w_ref, ff1_b_ref, ff2_w_ref, fc_w_ref,
                 out_ref, h_ref, *, num_layers, num_heads):
    layer = pl.program_id(0)
    B, D = h_ref.shape
    H = num_heads
    hd = D // H

    # --- layer 0 prologue: input projection  Linear(input_dim, model_dim) ---
    @pl.when(layer == 0)
    def _():
        x = x_ref[...].astype(jnp.bfloat16)
        proj_b = glob_b_ref[0:1, :D]                              # f32 bias row
        h_ref[...] = (jnp.dot(x, proj_w_ref[...],
                              preferred_element_type=jnp.float32) + proj_b)

    hx = h_ref[...]                                               # (B, D) f32, seq axis == B

    vecs = vecs_ref[0]                                            # (8, D) packed per-layer vectors
    outproj_b = vecs[0:1, :]
    ln1_w, ln1_b = vecs[1:2, :], vecs[2:3, :]
    ff2_b = vecs[3:4, :]
    ln2_w, ln2_b = vecs[4:5, :], vecs[5:6, :]

    # --- multi-head self-attention (head-major layout, zero activation relayouts) ---
    # qkv_w is (H, D, 3*hd) bf16 with 1/sqrt(hd) folded into the q columns/bias.
    hb = jnp.broadcast_to(hx.astype(jnp.bfloat16)[None], (H, B, D))
    qkv = jnp.einsum('hbd,hde->hbe', hb, qkv_w_ref[0],
                     preferred_element_type=jnp.float32) + qkv_b_ref[0]   # (H, B, 3*hd)
    q = qkv[..., 0 * hd:1 * hd].astype(jnp.bfloat16)
    k = qkv[..., 1 * hd:2 * hd].astype(jnp.bfloat16)
    v = qkv[..., 2 * hd:3 * hd].astype(jnp.bfloat16)

    s = jnp.einsum('hqe,hke->hqk', q, k,
                   preferred_element_type=jnp.float32)                     # (H, B, B)
    s = s - jnp.max(s, axis=-1, keepdims=True)
    p = jnp.exp(s)
    p = p * pl.reciprocal(jnp.sum(p, axis=-1, keepdims=True), approx=True)
    o = jnp.einsum('hqk,hke->hqe', p.astype(jnp.bfloat16), v,
                   preferred_element_type=jnp.float32)                     # (H, B, hd)

    # output projection: head-batched matmul + leading-axis sum (VALU adds, no concat)
    attn = jnp.einsum('hbe,hed->hbd', o.astype(jnp.bfloat16), outproj_w_ref[0],
                      preferred_element_type=jnp.float32)                  # (H, B, D)
    attn = jnp.sum(attn, axis=0) + outproj_b                               # (B, D)

    h1 = _layer_norm(hx + attn, ln1_w, ln1_b)

    # --- feed-forward: linear2(relu(linear1(x))); bf16 weights, f32 accumulate ---
    ff = jnp.dot(h1.astype(jnp.bfloat16), ff1_w_ref[0],
                 preferred_element_type=jnp.float32) + ff1_b_ref[0]
    ff = jnp.maximum(ff, 0.0)
    ff = jnp.dot(ff.astype(jnp.bfloat16), ff2_w_ref[0],
                 preferred_element_type=jnp.float32) + ff2_b

    h2 = _layer_norm(h1 + ff, ln2_w, ln2_b)
    h_ref[...] = h2                                               # carry to next layer

    # --- final layer epilogue: mean(dim=1) is identity; fc with temperature folded ---
    @pl.when(layer == num_layers - 1)
    def _():
        logits = (jnp.dot(h2.astype(jnp.bfloat16), fc_w_ref[...],
                          preferred_element_type=jnp.float32) + glob_b_ref[1:2, :])
        out_ref[...] = logits.astype(out_ref.dtype)               # lane-dense (B, 128) store


def init_raw_params(key, input_dim, model_dim, num_classes, num_heads, num_layers, dim_ff):
    """Deterministic synthetic parameters in PyTorch layout (Linear weight = (out, in))."""
    D, F, L, C = model_dim, dim_ff, num_layers, num_classes
    keys = jax.random.split(key, 4 + L)

    def w(k, shape, fan_in):
        return jax.random.normal(k, shape, jnp.float32) / jnp.sqrt(jnp.float32(fan_in))

    raw = dict(
        proj_w=w(keys[0], (D, input_dim), input_dim),
        proj_b=w(keys[1], (D,), input_dim),
        fc_w=w(keys[2], (C, D), D),
        fc_b=w(keys[3], (C,), D),
        layers=[],
    )
    for i in range(L):
        kk = jax.random.split(keys[4 + i], 6)
        raw['layers'].append(dict(
            in_proj_w=w(kk[0], (3 * D, D), D),
            in_proj_b=w(kk[1], (3 * D,), D),
            out_proj_w=w(kk[2], (D, D), D),
            out_proj_b=w(kk[3], (D,), D),
            ln1_w=jnp.ones((D,), jnp.float32),
            ln1_b=jnp.zeros((D,), jnp.float32),
            ff1_w=w(kk[4], (F, D), D),
            ff1_b=w(kk[5], (F,), D),
            ff2_w=w(jax.random.fold_in(kk[5], 1), (D, F), F),
            ff2_b=jnp.zeros((D,), jnp.float32),
            ln2_w=jnp.ones((D,), jnp.float32),
            ln2_b=jnp.zeros((D,), jnp.float32),
        ))
    return raw


def prepare_params(raw, *, num_heads, temperature, lane_pad=128):
    """Host-side layout plumbing (never done in-kernel): head-major fused qkv weight with
    the 1/sqrt(hd) scale folded, per-head out_proj, pre-transposed bf16 weights, packed
    per-layer small vectors, temperature-folded lane-padded fc, packed global biases."""
    D = raw['proj_w'].shape[0]
    H = num_heads
    hd = D // H
    assert D % H == 0
    scale = 1.0 / float(hd) ** 0.5
    layers = raw['layers']
    F = layers[0]['ff1_w'].shape[0]
    C = raw['fc_w'].shape[0]
    C_pad = max(lane_pad, C)
    assert C_pad >= D  # glob_b packing uses the same lane width

    def heads_in(W):                 # (D_out, D_in) -> (H, D_in, hd) per-head, pre-transposed
        return W.reshape(H, hd, D).transpose(0, 2, 1)

    qkv_w, qkv_b, outproj_w, vecs, ff1_w, ff1_b, ff2_w = [], [], [], [], [], [], []
    for lyr in layers:
        Wq = lyr['in_proj_w'][0:D] * scale
        Wk = lyr['in_proj_w'][D:2 * D]
        Wv = lyr['in_proj_w'][2 * D:3 * D]
        qkv_w.append(jnp.concatenate([heads_in(Wq), heads_in(Wk), heads_in(Wv)], axis=-1))
        bq = (lyr['in_proj_b'][0:D] * scale).reshape(H, 1, hd)
        bk = lyr['in_proj_b'][D:2 * D].reshape(H, 1, hd)
        bv = lyr['in_proj_b'][2 * D:3 * D].reshape(H, 1, hd)
        qkv_b.append(jnp.concatenate([bq, bk, bv], axis=-1))                   # (H, 1, 3*hd)
        outproj_w.append(lyr['out_proj_w'].T.reshape(H, hd, D))                # (H, hd, D)
        vecs.append(jnp.stack([lyr['out_proj_b'], lyr['ln1_w'], lyr['ln1_b'],
                               lyr['ff2_b'], lyr['ln2_w'], lyr['ln2_b'],
                               jnp.zeros((D,), jnp.float32),
                               jnp.zeros((D,), jnp.float32)]))                 # (8, D)
        ff1_w.append(lyr['ff1_w'].T)                                           # (D, F)
        ff1_b.append(lyr['ff1_b'].reshape(1, F))
        ff2_w.append(lyr['ff2_w'].T)                                           # (F, D)

    fc_w_t = raw['fc_w'].T / temperature                                       # (D, C)
    fc_b_t = raw['fc_b'] / temperature
    fc_w = jnp.zeros((D, C_pad), jnp.float32).at[:, :C].set(fc_w_t)
    glob_b = jnp.zeros((2, C_pad), jnp.float32)
    glob_b = glob_b.at[0, :D].set(raw['proj_b'])                               # row 0: proj_b
    glob_b = glob_b.at[1, :C].set(fc_b_t)                                      # row 1: fc_b

    bf = jnp.bfloat16
    return dict(
        proj_w=raw['proj_w'].T.astype(bf),          # (input_dim, D)
        glob_b=glob_b,                              # (2, 128) f32
        qkv_w=jnp.stack(qkv_w).astype(bf),          # (L, H, D, 3*hd), scale folded into q cols
        qkv_b=jnp.stack(qkv_b),                     # (L, H, 1, 3*hd) f32
        outproj_w=jnp.stack(outproj_w).astype(bf),  # (L, H, hd, D)
        vecs=jnp.stack(vecs),                       # (L, 8, D) f32
        ff1_w=jnp.stack(ff1_w).astype(bf),          # (L, D, F)
        ff1_b=jnp.stack(ff1_b),                     # (L, 1, F) f32
        ff2_w=jnp.stack(ff2_w).astype(bf),          # (L, F, D)
        fc_w=fc_w.astype(bf),                       # (D, 128), temperature folded
    )


def _const_spec(shape):
    zeros = (0,) * len(shape)
    return pl.BlockSpec(tuple(shape), lambda *_: zeros)


def _layer_spec(shape):
    zeros = (0,) * len(shape)
    return pl.BlockSpec((1,) + tuple(shape), lambda l: (l,) + zeros)


def podos_forward(x, kp, *, num_heads, num_layers, num_classes):
    B, input_dim = x.shape
    D = kp['proj_w'].shape[1]
    H = num_heads
    hd = D // H
    F = kp['ff1_w'].shape[-1]
    C_pad = kp['fc_w'].shape[1]

    kernel = functools.partial(podos_kernel, num_layers=num_layers, num_heads=num_heads)

    in_specs = [
        _const_spec((B, input_dim)),       # x
        _const_spec((input_dim, D)),       # proj_w
        _const_spec((2, C_pad)),           # glob_b (proj_b | fc_b)
        _layer_spec((H, D, 3 * hd)),       # qkv_w
        _layer_spec((H, 1, 3 * hd)),       # qkv_b
        _layer_spec((H, hd, D)),           # outproj_w
        _layer_spec((8, D)),               # packed per-layer vectors
        _layer_spec((D, F)),               # ff1_w
        _layer_spec((1, F)),               # ff1_b
        _layer_spec((F, D)),               # ff2_w
        _const_spec((D, C_pad)),           # fc_w
    ]

    out_padded = pl.pallas_call(
        kernel,
        out_shape=jax.ShapeDtypeStruct((B, C_pad), jnp.float32),
        grid=(num_layers,),
        in_specs=in_specs,
        out_specs=pl.BlockSpec((B, C_pad), lambda l: (0, 0)),
        scratch_shapes=[pltpu.VMEM((B, D), jnp.float32)],   # hidden state carried across layers
        compiler_params=pltpu.CompilerParams(
            dimension_semantics=("arbitrary",)),            # sequential layer dependence
    )(x, kp['proj_w'], kp['glob_b'],
      kp['qkv_w'], kp['qkv_b'], kp['outproj_w'], kp['vecs'],
      kp['ff1_w'], kp['ff1_b'], kp['ff2_w'], kp['fc_w'])

    # lane-dense (B, 128) slab stored in-kernel; trim to num_classes outside.
    return out_padded[:, :num_classes]


if __name__ == "__main__":
    # Shapes consistent with the module's forward:
    #   x: (batch=8, input_dim=16); model_dim=32, num_heads=4, num_layers=2,
    #   num_classes=3, temperature=2.0, dim_feedforward=2048 (PyTorch default).
    B, INPUT_DIM, MODEL_DIM, NUM_CLASSES = 8, 16, 32, 3
    NUM_HEADS, NUM_LAYERS, DIM_FF, TEMPERATURE = 4, 2, 2048, 2.0

    key = jax.random.PRNGKey(0)
    k_x, k_p = jax.random.split(key)
    x = jax.random.normal(k_x, (B, INPUT_DIM), jnp.float32)

    raw = init_raw_params(k_p, INPUT_DIM, MODEL_DIM, NUM_CLASSES,
                          NUM_HEADS, NUM_LAYERS, DIM_FF)
    params = prepare_params(raw, num_heads=NUM_HEADS, temperature=TEMPERATURE)

    out = podos_forward(x, params,
                        num_heads=NUM_HEADS, num_layers=NUM_LAYERS,
                        num_classes=NUM_CLASSES)
    out = jax.block_until_ready(out)
    assert out.shape == (B, NUM_CLASSES) and bool(jnp.all(jnp.isfinite(out)))
    print("KERNEL_OK")
</pallas_src>

<mosaic_0001>
module attributes {stable_mosaic.version = 11 : i64} {
  func.func @podos_kernel(%arg0: i32, %arg1: memref<8x16xf32, #tpu.memory_space<vmem>>, %arg2: memref<16x32xbf16, #tpu.memory_space<vmem>>, %arg3: memref<2x128xf32, #tpu.memory_space<vmem>>, %arg4: memref<1x4x32x24xbf16, #tpu.memory_space<vmem>>, %arg5: memref<1x4x1x24xf32, #tpu.memory_space<vmem>>, %arg6: memref<1x4x8x32xbf16, #tpu.memory_space<vmem>>, %arg7: memref<1x8x32xf32, #tpu.memory_space<vmem>>, %arg8: memref<1x32x2048xbf16, #tpu.memory_space<vmem>>, %arg9: memref<1x1x2048xf32, #tpu.memory_space<vmem>>, %arg10: memref<1x2048x32xbf16, #tpu.memory_space<vmem>>, %arg11: memref<32x128xbf16, #tpu.memory_space<vmem>>, %arg12: memref<8x128xf32, #tpu.memory_space<vmem>>, %arg13: memref<8x32xf32, #tpu.memory_space<vmem>>) attributes {dimension_semantics = [#tpu.dimension_semantics<arbitrary>], iteration_bounds = array<i64: 2>, scalar_prefetch = 0 : i64, scratch_operands = 1 : i64, tpu.core_type = #tpu.core_type<tc>, window_params = [{pipeline_mode = #tpu.pipeline_mode<synchronous>, transform_indices = @transform_0, window_bounds = array<i64: 8, 16>}, {pipeline_mode = #tpu.pipeline_mode<synchronous>, transform_indices = @transform_1, window_bounds = array<i64: 16, 32>}, {pipeline_mode = #tpu.pipeline_mode<synchronous>, transform_indices = @transform_2, window_bounds = array<i64: 2, 128>}, {transform_indices = @transform_3, window_bounds = array<i64: 1, 4, 32, 24>}, {transform_indices = @transform_4, window_bounds = array<i64: 1, 4, 1, 24>}, {transform_indices = @transform_5, window_bounds = array<i64: 1, 4, 8, 32>}, {transform_indices = @transform_6, window_bounds = array<i64: 1, 8, 32>}, {transform_indices = @transform_7, window_bounds = array<i64: 1, 32, 2048>}, {transform_indices = @transform_8, window_bounds = array<i64: 1, 1, 2048>}, {transform_indices = @transform_9, window_bounds = array<i64: 1, 2048, 32>}, {pipeline_mode = #tpu.pipeline_mode<synchronous>, transform_indices = @transform_10, window_bounds = array<i64: 32, 128>}, {pipeline_mode = #tpu.pipeline_mode<synchronous>, transform_indices = @transform_11, window_bounds = array<i64: 8, 128>}]} {
    %c0_i32 = arith.constant 0 : i32
    %0 = arith.cmpi eq, %arg0, %c0_i32 : i32
    %1 = arith.extui %0 : i1 to i32
    %c0_i32_0 = arith.constant 0 : i32
    %2 = arith.cmpi ne, %1, %c0_i32_0 : i32
    scf.if %2 {
      %c0_48 = arith.constant 0 : index
      %c0_49 = arith.constant 0 : index
      %115 = vector.load %arg1[%c0_48, %c0_49] : memref<8x16xf32, #tpu.memory_space<vmem>>, vector<8x16xf32>
      %116 = arith.truncf %115 : vector<8x16xf32> to vector<8x16xbf16>
      %c0_50 = arith.constant 0 : index
      %c0_51 = arith.constant 0 : index
      %117 = vector.load %arg3[%c0_50, %c0_51] : memref<2x128xf32, #tpu.memory_space<vmem>>, vector<1x32xf32>
      %c0_52 = arith.constant 0 : index
      %c0_53 = arith.constant 0 : index
      %118 = vector.load %arg2[%c0_52, %c0_53] : memref<16x32xbf16, #tpu.memory_space<vmem>>, vector<16x32xbf16>
      %cst_54 = arith.constant dense<0.000000e+00> : vector<8x32xf32>
      %119 = tpu.matmul %116, %118, %cst_54 {dimension_numbers = #tpu.dot_dimension_numbers<[1], [0], [0], [1], [0, 0, 1, 1], [], []>} : vector<8x16xbf16>, vector<16x32xbf16>, vector<8x32xf32> -> vector<8x32xf32>
      %120 = vector.broadcast %117 : vector<1x32xf32> to vector<8x32xf32>
      %121 = arith.addf %119, %120 : vector<8x32xf32>
      %c0_55 = arith.constant 0 : index
      %c0_56 = arith.constant 0 : index
      %122 = vector.load %arg13[%c0_55, %c0_56] : memref<8x32xf32, #tpu.memory_space<vmem>>, vector<8x32xf32>
      tpu.vector_store %arg13[%c0_55, %c0_56], %121 {strides = array<i32>} : memref<8x32xf32, #tpu.memory_space<vmem>>, vector<8x32xf32>,
    } else {
    }
    %c0 = arith.constant 0 : index
    %c0_1 = arith.constant 0 : index
    %3 = vector.load %arg13[%c0, %c0_1] : memref<8x32xf32, #tpu.memory_space<vmem>>, vector<8x32xf32>
    %c0_2 = arith.constant 0 : index
    %c0_3 = arith.constant 0 : index
    %c0_4 = arith.constant 0 : index
    %4 = vector.load %arg7[%c0_2, %c0_3, %c0_4] : memref<1x8x32xf32, #tpu.memory_space<vmem>>, vector<1x8x32xf32>
    %5 = vector.shape_cast %4 : vector<1x8x32xf32> to vector<8x32xf32>
    %6 = vector.extract_strided_slice %5 {offsets = [0, 0], sizes = [1, 32], strides = [1, 1]} : vector<8x32xf32> to vector<1x32xf32>
    %7 = vector.extract_strided_slice %5 {offsets = [1, 0], sizes = [1, 32], strides = [1, 1]} : vector<8x32xf32> to vector<1x32xf32>
    %8 = vector.extract_strided_slice %5 {offsets = [2, 0], sizes = [1, 32], strides = [1, 1]} : vector<8x32xf32> to vector<1x32xf32>
    %9 = vector.extract_strided_slice %5 {offsets = [3, 0], sizes = [1, 32], strides = [1, 1]} : vector<8x32xf32> to vector<1x32xf32>
    %10 = vector.extract_strided_slice %5 {offsets = [4, 0], sizes = [1, 32], strides = [1, 1]} : vector<8x32xf32> to vector<1x32xf32>
    %11 = vector.extract_strided_slice %5 {offsets = [5, 0], sizes = [1, 32], strides = [1, 1]} : vector<8x32xf32> to vector<1x32xf32>
    %12 = arith.truncf %3 : vector<8x32xf32> to vector<8x32xbf16>
    %13 = vector.shape_cast %12 : vector<8x32xbf16> to vector<1x8x32xbf16>
    %14 = vector.shape_cast %13 : vector<1x8x32xbf16> to vector<1x8x32xbf16>
    %15 = vector.broadcast %14 : vector<1x8x32xbf16> to vector<4x8x32xbf16>
    %c0_5 = arith.constant 0 : index
    %c0_6 = arith.constant 0 : index
    %c0_7 = arith.constant 0 : index
    %c0_8 = arith.constant 0 : index
    %16 = vector.load %arg4[%c0_5, %c0_6, %c0_7, %c0_8] : memref<1x4x32x24xbf16, #tpu.memory_space<vmem>>, vector<1x4x32x24xbf16>
    %17 = vector.shape_cast %16 : vector<1x4x32x24xbf16> to vector<4x32x24xbf16>
    "tpu.trace_start"() <{level = 10 : i32, message = "hbd,hde->hbe"}> : () -> ()
    %cst = arith.constant dense<0.000000e+00> : vector<4x8x24xf32>
    %18 = tpu.matmul %15, %17, %cst {dimension_numbers = #tpu.dot_dimension_numbers<[2], [1], [1], [2], [0, 0, 0, 1, 1, 2], [0], [0]>} : vector<4x8x32xbf16>, vector<4x32x24xbf16>, vector<4x8x24xf32> -> vector<4x8x24xf32>
    "tpu.trace_stop"() : () -> ()
    %c0_9 = arith.constant 0 : index
    %c0_10 = arith.constant 0 : index
    %c0_11 = arith.constant 0 : index
    %c0_12 = arith.constant 0 : index
    %19 = vector.load %arg5[%c0_9, %c0_10, %c0_11, %c0_12] : memref<1x4x1x24xf32, #tpu.memory_space<vmem>>, vector<1x4x1x24xf32>
    %20 = vector.shape_cast %19 : vector<1x4x1x24xf32> to vector<4x1x24xf32>
    %21 = vector.broadcast %20 : vector<4x1x24xf32> to vector<4x8x24xf32>
    %22 = arith.addf %18, %21 : vector<4x8x24xf32>
    %23 = vector.extract_strided_slice %22 {offsets = [0, 0, 0], sizes = [4, 8, 8], strides = [1, 1, 1]} : vector<4x8x24xf32> to vector<4x8x8xf32>
    %24 = arith.truncf %23 : vector<4x8x8xf32> to vector<4x8x8xbf16>
    %25 = vector.extract_strided_slice %22 {offsets = [0, 0, 8], sizes = [4, 8, 8], strides = [1, 1, 1]} : vector<4x8x24xf32> to vector<4x8x8xf32>
    %26 = arith.truncf %25 : vector<4x8x8xf32> to vector<4x8x8xbf16>
    %27 = vector.extract_strided_slice %22 {offsets = [0, 0, 16], sizes = [4, 8, 8], strides = [1, 1, 1]} : vector<4x8x24xf32> to vector<4x8x8xf32>
    %28 = arith.truncf %27 : vector<4x8x8xf32> to vector<4x8x8xbf16>
    "tpu.trace_start"() <{level = 10 : i32, message = "hqe,hke->hqk"}> : () -> ()
    %cst_13 = arith.constant dense<0.000000e+00> : vector<4x8x8xf32>
    %29 = tpu.matmul %24, %26, %cst_13 {dimension_numbers = #tpu.dot_dimension_numbers<[2], [2], [1], [1], [0, 0, 0, 1, 1, 1], [0], [0]>} : vector<4x8x8xbf16>, vector<4x8x8xbf16>, vector<4x8x8xf32> -> vector<4x8x8xf32>
    "tpu.trace_stop"() : () -> ()
    %cst_14 = arith.constant dense<0xFF800000> : vector<4x8xf32>
    %30 = vector.multi_reduction <maximumf>, %29, %cst_14 [2] : vector<4x8x8xf32> to vector<4x8xf32>
    %31 = vector.shape_cast %30 : vector<4x8xf32> to vector<4x8x1xf32>
    %32 = vector.broadcast %31 : vector<4x8x1xf32> to vector<4x8x8xf32>
    %33 = arith.subf %29, %32 : vector<4x8x8xf32>
    %34 = math.exp %33 : vector<4x8x8xf32>
    %cst_15 = arith.constant dense<0.000000e+00> : vector<4x8xf32>
    %35 = vector.multi_reduction <add>, %34, %cst_15 [2] : vector<4x8x8xf32> to vector<4x8xf32>
    %36 = vector.shape_cast %35 : vector<4x8xf32> to vector<4x8x1xf32>
    %37 = tpu.reciprocal %36 {approx = true} : vector<4x8x1xf32> -> vector<4x8x1xf32>
    %38 = vector.broadcast %37 : vector<4x8x1xf32> to vector<4x8x8xf32>
    %39 = arith.mulf %34, %38 : vector<4x8x8xf32>
    %40 = arith.truncf %39 : vector<4x8x8xf32> to vector<4x8x8xbf16>
    "tpu.trace_start"() <{level = 10 : i32, message = "hqk,hke->hqe"}> : () -> ()
    %cst_16 = arith.constant dense<0.000000e+00> : vector<4x8x8xf32>
    %41 = tpu.matmul %40, %28, %cst_16 {dimension_numbers = #tpu.dot_dimension_numbers<[2], [1], [1], [2], [0, 0, 0, 1, 1, 2], [0], [0]>} : vector<4x8x8xbf16>, vector<4x8x8xbf16>, vector<4x8x8xf32> -> vector<4x8x8xf32>
    "tpu.trace_stop"() : () -> ()
    %42 = arith.truncf %41 : vector<4x8x8xf32> to vector<4x8x8xbf16>
    %c0_17 = arith.constant 0 : index
    %c0_18 = arith.constant 0 : index
    %c0_19 = arith.constant 0 : index
    %c0_20 = arith.constant 0 : index
    %43 = vector.load %arg6[%c0_17, %c0_18, %c0_19, %c0_20] : memref<1x4x8x32xbf16, #tpu.memory_space<vmem>>, vector<1x4x8x32xbf16>
    %44 = vector.shape_cast %43 : vector<1x4x8x32xbf16> to vector<4x8x32xbf16>
    "tpu.trace_start"() <{level = 10 : i32, message = "hbe,hed->hbd"}> : () -> ()
    %cst_21 = arith.constant dense<0.000000e+00> : vector<4x8x32xf32>
    %45 = tpu.matmul %42, %44, %cst_21 {dimension_numbers = #tpu.dot_dimension_numbers<[2], [1], [1], [2], [0, 0, 0, 1, 1, 2], [0], [0]>} : vector<4x8x8xbf16>, vector<4x8x32xbf16>, vector<4x8x32xf32> -> vector<4x8x32xf32>
    "tpu.trace_stop"() : () -> ()
    %cst_22 = arith.constant dense<0.000000e+00> : vector<8x32xf32>
    %46 = vector.multi_reduction <add>, %45, %cst_22 [0] : vector<4x8x32xf32> to vector<8x32xf32>
    %47 = vector.broadcast %6 : vector<1x32xf32> to vector<8x32xf32>
    %48 = arith.addf %46, %47 : vector<8x32xf32>
    %49 = arith.addf %3, %48 : vector<8x32xf32>
    %cst_23 = arith.constant dense<0.000000e+00> : vector<8xf32>
    %50 = vector.multi_reduction <add>, %49, %cst_23 [1] : vector<8x32xf32> to vector<8xf32>
    %51 = vector.shape_cast %50 : vector<8xf32> to vector<8x1xf32>
    %cst_24 = arith.constant 3.200000e+01 : f32
    %52 = vector.broadcast %cst_24 : f32 to vector<8x1xf32>
    %53 = arith.divf %51, %52 : vector<8x1xf32>
    %54 = vector.broadcast %53 : vector<8x1xf32> to vector<8x32xf32>
    %55 = arith.subf %49, %54 : vector<8x32xf32>
    %56 = arith.mulf %55, %55 : vector<8x32xf32>
    %cst_25 = arith.constant dense<0.000000e+00> : vector<8xf32>
    %57 = vector.multi_reduction <add>, %56, %cst_25 [1] : vector<8x32xf32> to vector<8xf32>
    %58 = vector.shape_cast %57 : vector<8xf32> to vector<8x1xf32>
    %cst_26 = arith.constant 3.200000e+01 : f32
    %59 = vector.broadcast %cst_26 : f32 to vector<8x1xf32>
    %60 = arith.divf %58, %59 : vector<8x1xf32>
    %61 = vector.broadcast %53 : vector<8x1xf32> to vector<8x32xf32>
    %62 = arith.subf %49, %61 : vector<8x32xf32>
    %cst_27 = arith.constant 9.99999974E-6 : f32
    %63 = vector.broadcast %cst_27 : f32 to vector<8x1xf32>
    %64 = arith.addf %60, %63 : vector<8x1xf32>
    %65 = math.rsqrt %64 : vector<8x1xf32>
    %66 = vector.broadcast %65 : vector<8x1xf32> to vector<8x32xf32>
    %67 = arith.mulf %62, %66 : vector<8x32xf32>
    %68 = vector.broadcast %7 : vector<1x32xf32> to vector<8x32xf32>
    %69 = arith.mulf %67, %68 : vector<8x32xf32>
    %70 = vector.broadcast %8 : vector<1x32xf32> to vector<8x32xf32>
    %71 = arith.addf %69, %70 : vector<8x32xf32>
    %72 = arith.truncf %71 : vector<8x32xf32> to vector<8x32xbf16>
    %c0_28 = arith.constant 0 : index
    %c0_29 = arith.constant 0 : index
    %c0_30 = arith.constant 0 : index
    %73 = vector.load %arg8[%c0_28, %c0_29, %c0_30] : memref<1x32x2048xbf16, #tpu.memory_space<vmem>>, vector<1x32x2048xbf16>
    %74 = vector.shape_cast %73 : vector<1x32x2048xbf16> to vector<32x2048xbf16>
    %cst_31 = arith.constant dense<0.000000e+00> : vector<8x2048xf32>
    %75 = tpu.matmul %72, %74, %cst_31 {dimension_numbers = #tpu.dot_dimension_numbers<[1], [0], [0], [1], [0, 0, 1, 1], [], []>} : vector<8x32xbf16>, vector<32x2048xbf16>, vector<8x2048xf32> -> vector<8x2048xf32>
    %c0_32 = arith.constant 0 : index
    %c0_33 = arith.constant 0 : index
    %c0_34 = arith.constant 0 : index
    %76 = vector.load %arg9[%c0_32, %c0_33, %c0_34] : memref<1x1x2048xf32, #tpu.memory_space<vmem>>, vector<1x1x2048xf32>
    %77 = vector.shape_cast %76 : vector<1x1x2048xf32> to vector<1x2048xf32>
    %78 = vector.broadcast %77 : vector<1x2048xf32> to vector<8x2048xf32>
    %79 = arith.addf %75, %78 : vector<8x2048xf32>
    %cst_35 = arith.constant 0.000000e+00 : f32
    %80 = vector.broadcast %cst_35 : f32 to vector<8x2048xf32>
    %81 = arith.maximumf %79, %80 : vector<8x2048xf32>
    %82 = arith.truncf %81 : vector<8x2048xf32> to vector<8x2048xbf16>
    %c0_36 = arith.constant 0 : index
    %c0_37 = arith.constant 0 : index
    %c0_38 = arith.constant 0 : index
    %83 = vector.load %arg10[%c0_36, %c0_37, %c0_38] : memref<1x2048x32xbf16, #tpu.memory_space<vmem>>, vector<1x2048x32xbf16>
    %84 = vector.shape_cast %83 : vector<1x2048x32xbf16> to vector<2048x32xbf16>
    %cst_39 = arith.constant dense<0.000000e+00> : vector<8x32xf32>
    %85 = tpu.matmul %82, %84, %cst_39 {dimension_numbers = #tpu.dot_dimension_numbers<[1], [0], [0], [1], [0, 0, 1, 1], [], []>} : vector<8x2048xbf16>, vector<2048x32xbf16>, vector<8x32xf32> -> vector<8x32xf32>
    %86 = vector.broadcast %9 : vector<1x32xf32> to vector<8x32xf32>
    %87 = arith.addf %85, %86 : vector<8x32xf32>
    %88 = arith.addf %71, %87 : vector<8x32xf32>
    %cst_40 = arith.constant dense<0.000000e+00> : vector<8xf32>
    %89 = vector.multi_reduction <add>, %88, %cst_40 [1] : vector<8x32xf32> to vector<8xf32>
    %90 = vector.shape_cast %89 : vector<8xf32> to vector<8x1xf32>
    %cst_41 = arith.constant 3.200000e+01 : f32
    %91 = vector.broadcast %cst_41 : f32 to vector<8x1xf32>
    %92 = arith.divf %90, %91 : vector<8x1xf32>
    %93 = vector.broadcast %92 : vector<8x1xf32> to vector<8x32xf32>
    %94 = arith.subf %88, %93 : vector<8x32xf32>
    %95 = arith.mulf %94, %94 : vector<8x32xf32>
    %cst_42 = arith.constant dense<0.000000e+00> : vector<8xf32>
    %96 = vector.multi_reduction <add>, %95, %cst_42 [1] : vector<8x32xf32> to vector<8xf32>
    %97 = vector.shape_cast %96 : vector<8xf32> to vector<8x1xf32>
    %cst_43 = arith.constant 3.200000e+01 : f32
    %98 = vector.broadcast %cst_43 : f32 to vector<8x1xf32>
    %99 = arith.divf %97, %98 : vector<8x1xf32>
    %100 = vector.broadcast %92 : vector<8x1xf32> to vector<8x32xf32>
    %101 = arith.subf %88, %100 : vector<8x32xf32>
    %cst_44 = arith.constant 9.99999974E-6 : f32
    %102 = vector.broadcast %cst_44 : f32 to vector<8x1xf32>
    %103 = arith.addf %99, %102 : vector<8x1xf32>
    %104 = math.rsqrt %103 : vector<8x1xf32>
    %105 = vector.broadcast %104 : vector<8x1xf32> to vector<8x32xf32>
    %106 = arith.mulf %101, %105 : vector<8x32xf32>
    %107 = vector.broadcast %10 : vector<1x32xf32> to vector<8x32xf32>
    %108 = arith.mulf %106, %107 : vector<8x32xf32>
    %109 = vector.broadcast %11 : vector<1x32xf32> to vector<8x32xf32>
    %110 = arith.addf %108, %109 : vector<8x32xf32>
    %c0_45 = arith.constant 0 : index
    %c0_46 = arith.constant 0 : index
    %111 = vector.load %arg13[%c0_45, %c0_46] : memref<8x32xf32, #tpu.memory_space<vmem>>, vector<8x32xf32>
    tpu.vector_store %arg13[%c0_45, %c0_46], %110 {strides = array<i32>} : memref<8x32xf32, #tpu.memory_space<vmem>>, vector<8x32xf32>,
    %c1_i32 = arith.constant 1 : i32
    %112 = arith.cmpi eq, %arg0, %c1_i32 : i32
    %113 = arith.extui %112 : i1 to i32
    %c0_i32_47 = arith.constant 0 : i32
    %114 = arith.cmpi ne, %113, %c0_i32_47 : i32
    scf.if %114 {
      %115 = arith.truncf %110 : vector<8x32xf32> to vector<8x32xbf16>
      %c0_48 = arith.constant 0 : index
      %c0_49 = arith.constant 0 : index
      %116 = vector.load %arg11[%c0_48, %c0_49] : memref<32x128xbf16, #tpu.memory_space<vmem>>, vector<32x128xbf16>
      %cst_50 = arith.constant dense<0.000000e+00> : vector<8x128xf32>
      %117 = tpu.matmul %115, %116, %cst_50 {dimension_numbers = #tpu.dot_dimension_numbers<[1], [0], [0], [1], [0, 0, 1, 1], [], []>} : vector<8x32xbf16>, vector<32x128xbf16>, vector<8x128xf32> -> vector<8x128xf32>
      %c1 = arith.constant 1 : index
      %c0_51 = arith.constant 0 : index
      %118 = vector.load %arg3[%c1, %c0_51] : memref<2x128xf32, #tpu.memory_space<vmem>>, vector<1x128xf32>
      %119 = vector.broadcast %118 : vector<1x128xf32> to vector<8x128xf32>
      %120 = arith.addf %117, %119 : vector<8x128xf32>
      %c0_52 = arith.constant 0 : index
      %c0_53 = arith.constant 0 : index
      %121 = vector.load %arg12[%c0_52, %c0_53] : memref<8x128xf32, #tpu.memory_space<vmem>>, vector<8x128xf32>
      tpu.vector_store %arg12[%c0_52, %c0_53], %120 {strides = array<i32>} : memref<8x128xf32, #tpu.memory_space<vmem>>, vector<8x128xf32>,
    } else {
    }
    return
  }
  func.func @transform_0(%arg0: i32) -> (i32, i32) {
    %c0_i32 = arith.constant 0 : i32
    %c0_i32_0 = arith.constant 0 : i32
    %c0_i32_1 = arith.constant 0 : i32
    return %c0_i32, %c0_i32_0 : i32, i32
  }
  func.func @transform_1(%arg0: i32) -> (i32, i32) {
    %c0_i32 = arith.constant 0 : i32
    %c0_i32_0 = arith.constant 0 : i32
    %c0_i32_1 = arith.constant 0 : i32
    return %c0_i32, %c0_i32_0 : i32, i32
  }
  func.func @transform_2(%arg0: i32) -> (i32, i32) {
    %c0_i32 = arith.constant 0 : i32
    %c0_i32_0 = arith.constant 0 : i32
    %c0_i32_1 = arith.constant 0 : i32
    return %c0_i32, %c0_i32_0 : i32, i32
  }
  func.func @transform_3(%arg0: i32) -> (i32, i32, i32, i32) {
    %c0_i32 = arith.constant 0 : i32
    %c0_i32_0 = arith.constant 0 : i32
    %c0_i32_1 = arith.constant 0 : i32
    %c0_i32_2 = arith.constant 0 : i32
    return %arg0, %c0_i32, %c0_i32_0, %c0_i32_1 : i32, i32, i32, i32
  }
  func.func @transform_4(%arg0: i32) -> (i32, i32, i32, i32) {
    %c0_i32 = arith.constant 0 : i32
    %c0_i32_0 = arith.constant 0 : i32
    %c0_i32_1 = arith.constant 0 : i32
    %c0_i32_2 = arith.constant 0 : i32
    return %arg0, %c0_i32, %c0_i32_0, %c0_i32_1 : i32, i32, i32, i32
  }
  func.func @transform_5(%arg0: i32) -> (i32, i32, i32, i32) {
    %c0_i32 = arith.constant 0 : i32
    %c0_i32_0 = arith.constant 0 : i32
    %c0_i32_1 = arith.constant 0 : i32
    %c0_i32_2 = arith.constant 0 : i32
    return %arg0, %c0_i32, %c0_i32_0, %c0_i32_1 : i32, i32, i32, i32
  }
  func.func @transform_6(%arg0: i32) -> (i32, i32, i32) {
    %c0_i32 = arith.constant 0 : i32
    %c0_i32_0 = arith.constant 0 : i32
    %c0_i32_1 = arith.constant 0 : i32
    return %arg0, %c0_i32, %c0_i32_0 : i32, i32, i32
  }
  func.func @transform_7(%arg0: i32) -> (i32, i32, i32) {
    %c0_i32 = arith.constant 0 : i32
    %c0_i32_0 = arith.constant 0 : i32
    %c0_i32_1 = arith.constant 0 : i32
    return %arg0, %c0_i32, %c0_i32_0 : i32, i32, i32
  }
  func.func @transform_8(%arg0: i32) -> (i32, i32, i32) {
    %c0_i32 = arith.constant 0 : i32
    %c0_i32_0 = arith.constant 0 : i32
    %c0_i32_1 = arith.constant 0 : i32
    return %arg0, %c0_i32, %c0_i32_0 : i32, i32, i32
  }
  func.func @transform_9(%arg0: i32) -> (i32, i32, i32) {
    %c0_i32 = arith.constant 0 : i32
    %c0_i32_0 = arith.constant 0 : i32
    %c0_i32_1 = arith.constant 0 : i32
    return %arg0, %c0_i32, %c0_i32_0 : i32, i32, i32
  }
  func.func @transform_10(%arg0: i32) -> (i32, i32) {
    %c0_i32 = arith.constant 0 : i32
    %c0_i32_0 = arith.constant 0 : i32
    %c0_i32_1 = arith.constant 0 : i32
    return %c0_i32, %c0_i32_0 : i32, i32
  }
  func.func @transform_11(%arg0: i32) -> (i32, i32) {
    %c0_i32 = arith.constant 0 : i32
    %c0_i32_0 = arith.constant 0 : i32
    %c0_i32_1 = arith.constant 0 : i32
    return %c0_i32, %c0_i32_0 : i32, i32
  }
}

</mosaic_0001>

<llo_original>
// kernel: tpu_custom_call.1
$region0: #{tpu_custom_call.1}
  #allocation0 [shape = 'u32[]', space=smem, size = 0x4, offset = 0x4, fixed_abs, tag = 'smem constant byte address 0x4 - core index']
  #allocation1 [shape = 'u32[144,128]{1,0:T(1,128)}', space=vmem, size = 0x12000, scoped, tag = 'internal scratch']
  #allocation2 [shape = 'f32[8,32]{1,0:T(8,128)}', space=vmem, size = 0x1000, scoped, tag = 'scratch operand']
  %s0 = inlined_call_operand.vmem [shape: f32[8,16], index: 0, kind: input, shape index: {}]
  %s1 = inlined_call_operand.vmem [shape: bf16[16,32], index: 1, kind: input, shape index: {}]
  %s2 = inlined_call_operand.vmem [shape: f32[2,128], index: 2, kind: input, shape index: {}]
  %s3 = inlined_call_operand.vmem [shape: bf16[2,4,32,24], index: 3, kind: input, shape index: {}]
  %s4 = inlined_call_operand.vmem [shape: f32[2,4,1,24], index: 4, kind: input, shape index: {}]
  %s5 = inlined_call_operand.vmem [shape: bf16[2,4,8,32], index: 5, kind: input, shape index: {}]
  %s6 = inlined_call_operand.vmem [shape: f32[2,8,32], index: 6, kind: input, shape index: {}]
  %s7 = inlined_call_operand.vmem [shape: bf16[2,32,2048], index: 7, kind: input, shape index: {}]
  %s8 = inlined_call_operand.vmem [shape: f32[2,1,2048], index: 8, kind: input, shape index: {}]
  %s9 = inlined_call_operand.vmem [shape: bf16[2,2048,32], index: 9, kind: input, shape index: {}]
  %s10 = inlined_call_operand.vmem [shape: bf16[32,128], index: 10, kind: input, shape index: {}]
  %s11 = inlined_call_operand.hbm [shape: f32[8,128], index: 11, kind: output, shape index: {}]
  %s12 = sld [smem:[#allocation0]]
  $region85: #{tpu_custom_call.1} parent=0
    _
  %s14 = ssub.s32 1, %s12
  %s15 = scalar_select 0, %s14, %s12
  $region1: #{tpu_custom_call.1} parent=0
    #allocation3 [shape = 'u8[4096]{0}', space=vmem, size = 0x1000, scoped, tag = 'output window, operand 0, single buffered']
    #allocation4 [shape = 's32[2]{0}', space=sflag, size = 0x8, scoped, tag = 'scoped memory for tpu_custom_call.1']
    %16 = vsyncpa [#allocation4], 0
    loop: start=0, step=1, limit=4
    $region2: #{tpu_custom_call.1} parent=1 // loop_pre_header
      _
    $region3: #{tpu_custom_call.1} parent=1 // loop_header
      %s18 = sphi 0, %s22
      %p19 = scmp.ge.s32.totalorder %s18, 4
      %s26 = sphi 0, %s26
      %s28 = sphi 0, %s26
      %s29 = sphi 0, %s28
      %s43 = sphi 0, %s29
      %s47 = sphi 0, %s47
      %s49 = sphi 0, %s47
      %s50 = sphi 0, %s49
      %s64 = sphi 0, %s50
      %s68 = sphi 0, %s68
      %s70 = sphi 0, %s68
      %s71 = sphi 0, %s70
      %s85 = sphi 0, %s71
      %s91 = sphi 0, %s93
      %s94 = sphi 0, %s91
      %s95 = sphi 0, %s94
      %s111 = sphi 0, %s95
      %s117 = sphi 0, %s119
      %s120 = sphi 0, %s117
      %s121 = sphi 0, %s120
      %s137 = sphi 0, %s121
      %s143 = sphi 0, %s145
      %s146 = sphi 0, %s143
      %s147 = sphi 0, %s146
      %s163 = sphi 0, %s147
      %s169 = sphi 0, %s171
      %s172 = sphi 0, %s169
      %s173 = sphi 0, %s172
      %s189 = sphi 0, %s173
      %s195 = sphi 0, %s197
      %s198 = sphi 0, %s195
      %s199 = sphi 0, %s198
      %s215 = sphi 0, %s199
      %s221 = sphi 0, %s223
      %s224 = sphi 0, %s221
      %s225 = sphi 0, %s224
      %s241 = sphi 0, %s225
      %s247 = sphi 0, %s249
      %s250 = sphi 0, %s247
      %s251 = sphi 0, %s250
      %s267 = sphi 0, %s251
      %s271 = sphi 0, %s271
      %s273 = sphi 0, %s271
      %s274 = sphi 0, %s273
      %s288 = sphi 0, %s274
      %s292 = sphi 0, %s292
      %s294 = sphi 0, %s292
      %s295 = sphi 0, %s294
      %s309 = sphi 0, %s295
    $region4: #{tpu_custom_call.1} parent=1 // loop_header_branch
      %21 = sbr.rel (%p19) target = $region8
    $region5: #{tpu_custom_call.1} parent=1 // loop_body
      %s23 = ssub.s32 %s18, 1
      %s24 = ssub.s32 %s18, 2
      %s25 = sadd.s32 %s18, 1
      %s27 = sadd.s32 %s26, 1
      %p30 = scmp.eq.s32.totalorder %s18, 1
      %p31 = scmp.ne.s32.totalorder %s26, %s28
      %p32 = scmp.eq.s32.totalorder %s18, 0
      %p33 = por %p31, %p32
      %p34 = scmp.ne.s32.totalorder %s26, %s28
      %p35 = scmp.eq.s32.totalorder %s23, 1
      %p36 = por %p34, %p35
      %p37 = scmp.ne.s32.totalorder %s28, %s29
      %p38 = scmp.eq.s32.totalorder %s23, 0
      %p39 = por %p37, %p38
      %p40 = scmp.ne.s32.totalorder %s28, %s29
      %p41 = scmp.eq.s32.totalorder %s24, 1
      %p42 = por %p40, %p41
      %p44 = scmp.ne.s32.totalorder %s29, %s43
      %p45 = scmp.eq.s32.totalorder %s24, 0
      %p46 = por %p44, %p45
      %s48 = sadd.s32 %s47, 1
      %p51 = scmp.eq.s32.totalorder %s18, 1
      %p52 = scmp.ne.s32.totalorder %s47, %s49
      %p53 = scmp.eq.s32.totalorder %s18, 0
      %p54 = por %p52, %p53
      %p55 = scmp.ne.s32.totalorder %s47, %s49
      %p56 = scmp.eq.s32.totalorder %s23, 1
      %p57 = por %p55, %p56
      %p58 = scmp.ne.s32.totalorder %s49, %s50
      %p59 = scmp.eq.s32.totalorder %s23, 0
      %p60 = por %p58, %p59
      %p61 = scmp.ne.s32.totalorder %s49, %s50
      %p62 = scmp.eq.s32.totalorder %s24, 1
      %p63 = por %p61, %p62
      %p65 = scmp.ne.s32.totalorder %s50, %s64
      %p66 = scmp.eq.s32.totalorder %s24, 0
      %p67 = por %p65, %p66
      %s69 = sadd.s32 %s68, 1
      %p72 = scmp.eq.s32.totalorder %s18, 1
      %p73 = scmp.ne.s32.totalorder %s68, %s70
      %p74 = scmp.eq.s32.totalorder %s18, 0
      %p75 = por %p73, %p74
      %p76 = scmp.ne.s32.totalorder %s68, %s70
      %p77 = scmp.eq.s32.totalorder %s23, 1
      %p78 = por %p76, %p77
      %p79 = scmp.ne.s32.totalorder %s70, %s71
      %p80 = scmp.eq.s32.totalorder %s23, 0
      %p81 = por %p79, %p80
      %p82 = scmp.ne.s32.totalorder %s70, %s71
      %p83 = scmp.eq.s32.totalorder %s24, 1
      %p84 = por %p82, %p83
      %p86 = scmp.ne.s32.totalorder %s71, %s85
      %p87 = scmp.eq.s32.totalorder %s24, 0
      %p88 = por %p86, %p87
      %s89 = ssub.s32 %s18, %s25
      %p90 = scmp.eq.s32.totalorder %s89, 0
      %s92 = sadd.s32 %s91, 1
      %s93 = scalar_select %p90, %s91, %s92
      %p96 = pneg %p90
      %p97 = scmp.eq.s32.totalorder %s18, 1
      %p98 = por %p96, %p97
      %p99 = scmp.ne.s32.totalorder %s91, %s94
      %p100 = scmp.eq.s32.totalorder %s18, 0
      %p101 = por %p99, %p100
      %p102 = scmp.ne.s32.totalorder %s91, %s94
      %p103 = scmp.eq.s32.totalorder %s23, 1
      %p104 = por %p102, %p103
      %p105 = scmp.ne.s32.totalorder %s94, %s95
      %p106 = scmp.eq.s32.totalorder %s23, 0
      %p107 = por %p105, %p106
      %p108 = scmp.ne.s32.totalorder %s94, %s95
      %p109 = scmp.eq.s32.totalorder %s24, 1
      %p110 = por %p108, %p109
      %p112 = scmp.ne.s32.totalorder %s95, %s111
      %p113 = scmp.eq.s32.totalorder %s24, 0
      %p114 = por %p112, %p113
      %s115 = ssub.s32 %s18, %s25
      %p116 = scmp.eq.s32.totalorder %s115, 0
      %s118 = sadd.s32 %s117, 1
      %s119 = scalar_select %p116, %s117, %s118
      %p122 = pneg %p116
      %p123 = scmp.eq.s32.totalorder %s18, 1
      %p124 = por %p122, %p123
      %p125 = scmp.ne.s32.totalorder %s117, %s120
      %p126 = scmp.eq.s32.totalorder %s18, 0
      %p127 = por %p125, %p126
      %p128 = scmp.ne.s32.totalorder %s117, %s120
      %p129 = scmp.eq.s32.totalorder %s23, 1
      %p130 = por %p128, %p129
      %p131 = scmp.ne.s32.totalorder %s120, %s121
      %p132 = scmp.eq.s32.totalorder %s23, 0
      %p133 = por %p131, %p132
      %p134 = scmp.ne.s32.totalorder %s120, %s121
      %p135 = scmp.eq.s32.totalorder %s24, 1
      %p136 = por %p134, %p135
      %p138 = scmp.ne.s32.totalorder %s121, %s137
      %p139 = scmp.eq.s32.totalorder %s24, 0
      %p140 = por %p138, %p139
      %s141 = ssub.s32 %s18, %s25
      %p142 = scmp.eq.s32.totalorder %s141, 0
      %s144 = sadd.s32 %s143, 1
      %s145 = scalar_select %p142, %s143, %s144
      %p148 = pneg %p142
      %p149 = scmp.eq.s32.totalorder %s18, 1
      %p150 = por %p148, %p149
      %p151 = scmp.ne.s32.totalorder %s143, %s146
      %p152 = scmp.eq.s32.totalorder %s18, 0
      %p153 = por %p151, %p152
      %p154 = scmp.ne.s32.totalorder %s143, %s146
      %p155 = scmp.eq.s32.totalorder %s23, 1
      %p156 = por %p154, %p155
      %p157 = scmp.ne.s32.totalorder %s146, %s147
      %p158 = scmp.eq.s32.totalorder %s23, 0
      %p159 = por %p157, %p158
      %p160 = scmp.ne.s32.totalorder %s146, %s147
      %p161 = scmp.eq.s32.totalorder %s24, 1
      %p162 = por %p160, %p161
      %p164 = scmp.ne.s32.totalorder %s147, %s163
      %p165 = scmp.eq.s32.totalorder %s24, 0
      %p166 = por %p164, %p165
      %s167 = ssub.s32 %s18, %s25
      %p168 = scmp.eq.s32.totalorder %s167, 0
      %s170 = sadd.s32 %s169, 1
      %s171 = scalar_select %p168, %s169, %s170
      %p174 = pneg %p168
      %p175 = scmp.eq.s32.totalorder %s18, 1
      %p176 = por %p174, %p175
      %p177 = scmp.ne.s32.totalorder %s169, %s172
      %p178 = scmp.eq.s32.totalorder %s18, 0
      %p179 = por %p177, %p178
      %p180 = scmp.ne.s32.totalorder %s169, %s172
      %p181 = scmp.eq.s32.totalorder %s23, 1
      %p182 = por %p180, %p181
      %p183 = scmp.ne.s32.totalorder %s172, %s173
      %p184 = scmp.eq.s32.totalorder %s23, 0
      %p185 = por %p183, %p184
      %p186 = scmp.ne.s32.totalorder %s172, %s173
      %p187 = scmp.eq.s32.totalorder %s24, 1
      %p188 = por %p186, %p187
      %p190 = scmp.ne.s32.totalorder %s173, %s189
      %p191 = scmp.eq.s32.totalorder %s24, 0
      %p192 = por %p190, %p191
      %s193 = ssub.s32 %s18, %s25
      %p194 = scmp.eq.s32.totalorder %s193, 0
      %s196 = sadd.s32 %s195, 1
      %s197 = scalar_select %p194, %s195, %s196
      %p200 = pneg %p194
      %p201 = scmp.eq.s32.totalorder %s18, 1
      %p202 = por %p200, %p201
      %p203 = scmp.ne.s32.totalorder %s195, %s198
      %p204 = scmp.eq.s32.totalorder %s18, 0
      %p205 = por %p203, %p204
      %p206 = scmp.ne.s32.totalorder %s195, %s198
      %p207 = scmp.eq.s32.totalorder %s23, 1
      %p208 = por %p206, %p207
      %p209 = scmp.ne.s32.totalorder %s198, %s199
      %p210 = scmp.eq.s32.totalorder %s23, 0
      %p211 = por %p209, %p210
      %p212 = scmp.ne.s32.totalorder %s198, %s199
      %p213 = scmp.eq.s32.totalorder %s24, 1
      %p214 = por %p212, %p213
      %p216 = scmp.ne.s32.totalorder %s199, %s215
      %p217 = scmp.eq.s32.totalorder %s24, 0
      %p218 = por %p216, %p217
      %s219 = ssub.s32 %s18, %s25
      %p220 = scmp.eq.s32.totalorder %s219, 0
      %s222 = sadd.s32 %s221, 1
      %s223 = scalar_select %p220, %s221, %s222
      %p226 = pneg %p220
      %p227 = scmp.eq.s32.totalorder %s18, 1
      %p228 = por %p226, %p227
      %p229 = scmp.ne.s32.totalorder %s221, %s224
      %p230 = scmp.eq.s32.totalorder %s18, 0
      %p231 = por %p229, %p230
      %p232 = scmp.ne.s32.totalorder %s221, %s224
      %p233 = scmp.eq.s32.totalorder %s23, 1
      %p234 = por %p232, %p233
      %p235 = scmp.ne.s32.totalorder %s224, %s225
      %p236 = scmp.eq.s32.totalorder %s23, 0
      %p237 = por %p235, %p236
      %p238 = scmp.ne.s32.totalorder %s224, %s225
      %p239 = scmp.eq.s32.totalorder %s24, 1
      %p240 = por %p238, %p239
      %p242 = scmp.ne.s32.totalorder %s225, %s241
      %p243 = scmp.eq.s32.totalorder %s24, 0
      %p244 = por %p242, %p243
      %s245 = ssub.s32 %s18, %s25
      %p246 = scmp.eq.s32.totalorder %s245, 0
      %s248 = sadd.s32 %s247, 1
      %s249 = scalar_select %p246, %s247, %s248
      %p252 = pneg %p246
      %p253 = scmp.eq.s32.totalorder %s18, 1
      %p254 = por %p252, %p253
      %p255 = scmp.ne.s32.totalorder %s247, %s250
      %p256 = scmp.eq.s32.totalorder %s18, 0
      %p257 = por %p255, %p256
      %p258 = scmp.ne.s32.totalorder %s247, %s250
      %p259 = scmp.eq.s32.totalorder %s23, 1
      %p260 = por %p258, %p259
      %p261 = scmp.ne.s32.totalorder %s250, %s251
      %p262 = scmp.eq.s32.totalorder %s23, 0
      %p263 = por %p261, %p262
      %p264 = scmp.ne.s32.totalorder %s250, %s251
      %p265 = scmp.eq.s32.totalorder %s24, 1
      %p266 = por %p264, %p265
      %p268 = scmp.ne.s32.totalorder %s251, %s267
      %p269 = scmp.eq.s32.totalorder %s24, 0
      %p270 = por %p268, %p269
      %s272 = sadd.s32 %s271, 1
      %p275 = scmp.eq.s32.totalorder %s18, 1
      %p276 = scmp.ne.s32.totalorder %s271, %s273
      %p277 = scmp.eq.s32.totalorder %s18, 0
      %p278 = por %p276, %p277
      %p279 = scmp.ne.s32.totalorder %s271, %s273
      %p280 = scmp.eq.s32.totalorder %s23, 1
      %p281 = por %p279, %p280
      %p282 = scmp.ne.s32.totalorder %s273, %s274
      %p283 = scmp.eq.s32.totalorder %s23, 0
      %p284 = por %p282, %p283
      %p285 = scmp.ne.s32.totalorder %s273, %s274
      %p286 = scmp.eq.s32.totalorder %s24, 1
      %p287 = por %p285, %p286
      %p289 = scmp.ne.s32.totalorder %s274, %s288
      %p290 = scmp.eq.s32.totalorder %s24, 0
      %p291 = por %p289, %p290
      %s293 = sadd.s32 %s292, 1
      %p296 = scmp.eq.s32.totalorder %s18, 1
      %p297 = scmp.ne.s32.totalorder %s292, %s294
      %p298 = scmp.eq.s32.totalorder %s18, 0
      %p299 = por %p297, %p298
      %p300 = scmp.ne.s32.totalorder %s292, %s294
      %p301 = scmp.eq.s32.totalorder %s23, 1
      %p302 = por %p300, %p301
      %p303 = scmp.ne.s32.totalorder %s294, %s295
      %p304 = scmp.eq.s32.totalorder %s23, 0
      %p305 = por %p303, %p304
      %p306 = scmp.ne.s32.totalorder %s294, %s295
      %p307 = scmp.eq.s32.totalorder %s24, 1
      %p308 = por %p306, %p307
      %p310 = scmp.ne.s32.totalorder %s295, %s309
      %p311 = scmp.eq.s32.totalorder %s24, 0
      %p312 = por %p310, %p311
      %p313 = scmp.le.s32.totalorder 1, %s18
      %p314 = scmp.lt.s32.totalorder %s18, 3
      %p315 = pnand %p313, %p314
      %p316 = pneg %p315
      // Predicated region
      $region9: #{tpu_custom_call.1} parent=5 // pred_check
        _
      $region10: #{tpu_custom_call.1} parent=5 // pred_check_branch
        %318 = sbr.rel (%p315) target = $region12
      $region11: #{tpu_custom_call.1} parent=5 // pred_region
        %s319 = ssub.s32 %s18, 1
        // Predicated region
        $region13: #{tpu_custom_call.1} parent=11 // pred_check
          %p320 = pneg %p39
        $region14: #{tpu_custom_call.1} parent=11 // pred_check_branch
          %322 = sbr.rel (%p320) target = $region16
        $region15: #{tpu_custom_call.1} parent=11 // pred_region
          _
        $region16: #{tpu_custom_call.1} parent=11 // pred_fallthru
          _
        // Predicated region
        $region17: #{tpu_custom_call.1} parent=11 // pred_check
          %p323 = pneg %p60
        $region18: #{tpu_custom_call.1} parent=11 // pred_check_branch
          %325 = sbr.rel (%p323) target = $region20
        $region19: #{tpu_custom_call.1} parent=11 // pred_region
          _
        $region20: #{tpu_custom_call.1} parent=11 // pred_fallthru
          _
        // Predicated region
        $region21: #{tpu_custom_call.1} parent=11 // pred_check
          %p326 = pneg %p81
        $region22: #{tpu_custom_call.1} parent=11 // pred_check_branch
          %328 = sbr.rel (%p326) target = $region24
        $region23: #{tpu_custom_call.1} parent=11 // pred_region
          _
        $region24: #{tpu_custom_call.1} parent=11 // pred_fallthru
          _
        // Predicated region
        $region25: #{tpu_custom_call.1} parent=11 // pred_check
          %p329 = pneg %p284
        $region26: #{tpu_custom_call.1} parent=11 // pred_check_branch
          %331 = sbr.rel (%p329) target = $region28
        $region27: #{tpu_custom_call.1} parent=11 // pred_region
          _
        $region28: #{tpu_custom_call.1} parent=11 // pred_fallthru
          _
      $region12: #{tpu_custom_call.1} parent=5 // pred_fallthru
        _
      %p332 = scmp.lt.s32.totalorder %s18, 2
      // Predicated region
      $region29: #{tpu_custom_call.1} parent=5 // pred_check
        %p333 = pneg %p332
      $region30: #{tpu_custom_call.1} parent=5 // pred_check_branch
        %335 = sbr.rel (%p333) target = $region32
      $region31: #{tpu_custom_call.1} parent=5 // pred_region
        // Predicated region
        $region33: #{tpu_custom_call.1} parent=31 // pred_check
          %p336 = pneg %p101
        $region34: #{tpu_custom_call.1} parent=31 // pred_check_branch
          %338 = sbr.rel (%p336) target = $region36
        $region35: #{tpu_custom_call.1} parent=31 // pred_region
          %p339 = scmp.lt.s32.totalorder %s18, 1
          %s340 = scalar_select %p339, %s18, 1
          %s341 = smul.addr %s340, 16
          %s342 = smul.addr %s341, 4
          %s343 = scalar_lea.vmem %s3, %s342
        $region36: #{tpu_custom_call.1} parent=31 // pred_fallthru
          _
        // Predicated region
        $region37: #{tpu_custom_call.1} parent=31 // pred_check
          %p344 = pneg %p127
        $region38: #{tpu_custom_call.1} parent=31 // pred_check_branch
          %346 = sbr.rel (%p344) target = $region40
        $region39: #{tpu_custom_call.1} parent=31 // pred_region
          %p347 = scmp.lt.s32.totalorder %s18, 1
          %s348 = scalar_select %p347, %s18, 1
          %s349 = smul.addr %s348, 4
          %s350 = scalar_lea.vmem %s4, %s349
        $region40: #{tpu_custom_call.1} parent=31 // pred_fallthru
          _
        // Predicated region
        $region41: #{tpu_custom_call.1} parent=31 // pred_check
          %p351 = pneg %p153
        $region42: #{tpu_custom_call.1} parent=31 // pred_check_branch
          %353 = sbr.rel (%p351) target = $region44
        $region43: #{tpu_custom_call.1} parent=31 // pred_region
          %p354 = scmp.lt.s32.totalorder %s18, 1
          %s355 = scalar_select %p354, %s18, 1
          %s356 = smul.addr %s355, 4
          %s357 = smul.addr %s356, 4
          %s358 = scalar_lea.vmem %s5, %s357
        $region44: #{tpu_custom_call.1} parent=31 // pred_fallthru
          _
        // Predicated region
        $region45: #{tpu_custom_call.1} parent=31 // pred_check
          %p359 = pneg %p179
        $region46: #{tpu_custom_call.1} parent=31 // pred_check_branch
          %361 = sbr.rel (%p359) target = $region48
        $region47: #{tpu_custom_call.1} parent=31 // pred_region
          %p362 = scmp.lt.s32.totalorder %s18, 1
          %s363 = scalar_select %p362, %s18, 1
          %s364 = smul.addr %s363, 8
          %s365 = scalar_lea.vmem %s6, %s364
        $region48: #{tpu_custom_call.1} parent=31 // pred_fallthru
          _
        // Predicated region
        $region49: #{tpu_custom_call.1} parent=31 // pred_check
          %p366 = pneg %p205
        $region50: #{tpu_custom_call.1} parent=31 // pred_check_branch
          %368 = sbr.rel (%p366) target = $region52
        $region51: #{tpu_custom_call.1} parent=31 // pred_region
          %p369 = scmp.lt.s32.totalorder %s18, 1
          %s370 = scalar_select %p369, %s18, 1
          %s371 = smul.addr %s370, 64
          %s372 = smul.addr %s371, 4
          %s373 = scalar_lea.vmem %s7, %s372
        $region52: #{tpu_custom_call.1} parent=31 // pred_fallthru
          _
        // Predicated region
        $region53: #{tpu_custom_call.1} parent=31 // pred_check
          %p374 = pneg %p231
        $region54: #{tpu_custom_call.1} parent=31 // pred_check_branch
          %376 = sbr.rel (%p374) target = $region56
        $region55: #{tpu_custom_call.1} parent=31 // pred_region
          %p377 = scmp.lt.s32.totalorder %s18, 1
          %s378 = scalar_select %p377, %s18, 1
          %s379 = smul.addr %s378, 16
          %s380 = scalar_lea.vmem %s8, %s379
        $region56: #{tpu_custom_call.1} parent=31 // pred_fallthru
          _
        // Predicated region
        $region57: #{tpu_custom_call.1} parent=31 // pred_check
          %p381 = pneg %p257
        $region58: #{tpu_custom_call.1} parent=31 // pred_check_branch
          %383 = sbr.rel (%p381) target = $region60
        $region59: #{tpu_custom_call.1} parent=31 // pred_region
          %p384 = scmp.lt.s32.totalorder %s18, 1
          %s385 = scalar_select %p384, %s18, 1
          %s386 = smul.addr %s385, 256
          %s387 = smul.addr %s386, 4
          %s388 = scalar_lea.vmem %s9, %s387
        $region60: #{tpu_custom_call.1} parent=31 // pred_fallthru
          _
      $region32: #{tpu_custom_call.1} parent=5 // pred_fallthru
        _
      %p389 = scmp.le.s32.totalorder 1, %s18
      %p390 = scmp.lt.s32.totalorder %s18, 3
      %p391 = pnand %p389, %p390
      %p392 = pneg %p391
      // Predicated region
      $region61: #{tpu_custom_call.1} parent=5 // pred_check
        _
      $region62: #{tpu_custom_call.1} parent=5 // pred_check_branch
        %394 = sbr.rel (%p391) target = $region64
      $region63: #{tpu_custom_call.1} parent=5 // pred_region
        %s395 = ssub.s32 %s18, 1
        %p396 = pneg %p39
        %p397 = pneg %p36
        %p398 = pneg %p60
        %p399 = pneg %p57
        %p400 = pneg %p81
        %p401 = pneg %p78
        %p402 = scmp.lt.s32.totalorder %s23, 1
        %s403 = scalar_select %p402, %s23, 1
        %s404 = smul.addr %s403, 16
        %s405 = smul.addr %s404, 4
        %s406 = scalar_lea.vmem %s3, %s405
        %p407 = pneg %p107
        %p408 = pneg %p104
        %p409 = scmp.lt.s32.totalorder %s23, 1
        %s410 = scalar_select %p409, %s23, 1
        %s411 = smul.addr %s410, 4
        %s412 = scalar_lea.vmem %s4, %s411
        %p413 = pneg %p133
        %p414 = pneg %p130
        %p415 = scmp.lt.s32.totalorder %s23, 1
        %s416 = scalar_select %p415, %s23, 1
        %s417 = smul.addr %s416, 4
        %s418 = smul.addr %s417, 4
        %s419 = scalar_lea.vmem %s5, %s418
        %p420 = pneg %p159
        %p421 = pneg %p156
        %p422 = scmp.lt.s32.totalorder %s23, 1
        %s423 = scalar_select %p422, %s23, 1
        %s424 = smul.addr %s423, 8
        %s425 = scalar_lea.vmem %s6, %s424
        %p426 = pneg %p185
        %p427 = pneg %p182
        %p428 = scmp.lt.s32.totalorder %s23, 1
        %s429 = scalar_select %p428, %s23, 1
        %s430 = smul.addr %s429, 64
        %s431 = smul.addr %s430, 4
        %s432 = scalar_lea.vmem %s7, %s431
        %p433 = pneg %p211
        %p434 = pneg %p208
        %p435 = scmp.lt.s32.totalorder %s23, 1
        %s436 = scalar_select %p435, %s23, 1
        %s437 = smul.addr %s436, 16
        %s438 = scalar_lea.vmem %s8, %s437
        %p439 = pneg %p237
        %p440 = pneg %p234
        %p441 = scmp.lt.s32.totalorder %s23, 1
        %s442 = scalar_select %p441, %s23, 1
        %s443 = smul.addr %s442, 256
        %s444 = smul.addr %s443, 4
        %s445 = scalar_lea.vmem %s9, %s444
        %p446 = pneg %p263
        %p447 = pneg %p260
        %p448 = pneg %p284
        %p449 = pneg %p281
        %p450 = pneg %p305
        %p451 = pneg %p302
        %p452 = scmp.lt.s32.totalorder %s23, 1
        %s453 = scalar_select %p452, %s23, 1
        %s454 = smul.addr %s453, 16
        %s455 = smul.addr %s454, 4
        %s456 = scalar_lea.vmem %s3, %s455
        %p457 = scmp.lt.s32.totalorder %s23, 1
        %s458 = scalar_select %p457, %s23, 1
        %s459 = smul.addr %s458, 4
        %s460 = scalar_lea.vmem %s4, %s459
        %p461 = scmp.lt.s32.totalorder %s23, 1
        %s462 = scalar_select %p461, %s23, 1
        %s463 = smul.addr %s462, 4
        %s464 = smul.addr %s463, 4
        %s465 = scalar_lea.vmem %s5, %s464
        %p466 = scmp.lt.s32.totalorder %s23, 1
        %s467 = scalar_select %p466, %s23, 1
        %s468 = smul.addr %s467, 8
        %s469 = scalar_lea.vmem %s6, %s468
        %p470 = scmp.lt.s32.totalorder %s23, 1
        %s471 = scalar_select %p470, %s23, 1
        %s472 = smul.addr %s471, 64
        %s473 = smul.addr %s472, 4
        %s474 = scalar_lea.vmem %s7, %s473
        %p475 = scmp.lt.s32.totalorder %s23, 1
        %s476 = scalar_select %p475, %s23, 1
        %s477 = smul.addr %s476, 16
        %s478 = scalar_lea.vmem %s8, %s477
        %p479 = scmp.lt.s32.totalorder %s23, 1
        %s480 = scalar_select %p479, %s23, 1
        %s481 = smul.addr %s480, 256
        %s482 = smul.addr %s481, 4
        %s483 = scalar_lea.vmem %s9, %s482
        %p485 = scmp.eq.s32.totalorder %s23, 0
        // Predicated region
        $region65: #{tpu_custom_call.1} parent=63 // pred_check
          %p486 = pneg %p485
        $region66: #{tpu_custom_call.1} parent=63 // pred_check_branch
          %488 = sbr.rel (%p486) target = $region68
        $region67: #{tpu_custom_call.1} parent=63 // pred_region
          %v489 = vld [vmem:[%s0] sm:$0xff]
          %v490 = vpack.c.bf16 %v489, %v489
          %v491 = vld [vmem:[%s2] sm:$0x1]
          %v492 = vld [vmem:[%s1] sm:$0xf]
          %v493 = vld [vmem:[%s1 + $0x4] sm:$0xf]
          %v494 = vlaneseq
          %v495 = vshrl.u32 %v494, 7
          %v496 = vsub.s32 0, %v495
          %v497 = vrot.slane %v491, %v496
          %v500 = vunpack.c.l.b16 %v492
          %v501 = vunpack.c.l.b16 %v493
          %v502 = vpack.c.b16 %v501, %v500
          %vm504 = vcmask 130048
          %v506 = vsel %vm504, %v490, 0
          %508 = vmatprep.subr.bf16.mxu0 0
          %509 = vmatpush1.bf16.msra.mxu0 0
          %510 = vmatprep.subr.bf16.mxu0 0
          %511 = vmatpush1.bf16.msra.mxu0 0
          %512 = vmatprep.subr.bf16.mxu0 0
          %513 = vmatpush1.bf16.msra.mxu0 0
          %514 = vmatprep.subr.bf16.mxu0 0
          %515 = vmatpush1.bf16.msra.mxu0 0
          %516 = vmatprep.subr.bf16.mxu0 0
          %517 = vmatpush1.bf16.msra.mxu0 0
          %518 = vmatprep.subr.bf16.mxu0 0
          %519 = vmatpush1.bf16.msra.mxu0 0
          %520 = vmatprep.subr.bf16.mxu0 0
          %521 = vmatpush1.bf16.msra.mxu0 0
          %522 = vmatprep.subr.bf16.mxu0 0
          %523 = vmatpush1.bf16.msra.mxu0 %v502
          %524 = vmatprep.subr.bf16.mxu0 0
          %525 = vmatpush2.bf16.msra.mxu0 0
          %526 = vmatprep.subr.bf16.mxu0 0
          %527 = vmatpush2.bf16.msra.mxu0 0
          %528 = vmatprep.subr.bf16.mxu0 0
          %529 = vmatpush2.bf16.msra.mxu0 0
          %530 = vmatprep.subr.bf16.mxu0 0
          %531 = vmatpush2.bf16.msra.mxu0 0
          %532 = vmatprep.subr.bf16.mxu0 0
          %533 = vmatpush2.bf16.msra.mxu0 0
          %534 = vmatprep.subr.bf16.mxu0 0
          %535 = vmatpush2.bf16.msra.mxu0 0
          %536 = vmatprep.subr.bf16.mxu0 0
          %537 = vmatpush2.bf16.msra.mxu0 0
          %538 = vmatprep.subr.bf16.mxu0 0
          %539 = vmatpush2.bf16.msra.mxu0 0
          %540 = vmatprep.mubr.bf16.mxu0 0
          %541 = vmatmul.mubr.bf16.gmra.mxu0 %v506
          %v542 = vpop.f32.mrf.mxu0
          %v543 = vadd.f32 %v497, %v542
          %v544 = vpop.f32.mrf.mxu0
          %v545 = vpop.f32.mrf.mxu0
          %v546 = vpop.f32.mrf.mxu0
          %547 = vdwg.mxu0
          %vm548 = vcmask 261120
          %549 = vst.msk [vmem:[#allocation2] sm:$0xff] %vm548, %v543
        $region68: #{tpu_custom_call.1} parent=63 // pred_fallthru
          _
        %v550 = vld [vmem:[#allocation2] sm:$0xff]
        %v551 = vld [vmem:[%s469] sm:$0xff]
        %v552 = vpack.c.bf16 %v550, %v550
        %v553 = vld [vmem:[%s456] sm:$0xf]
        %v554 = vld [vmem:[%s456 + $0x4] sm:$0xf]
        %v555 = vld [vmem:[%s456 + $0x8] sm:$0xf]
        %v556 = vld [vmem:[%s456 + $0xc] sm:$0xf]
        %v557 = vld [vmem:[%s456 + $0x10] sm:$0xf]
        %v558 = vld [vmem:[%s456 + $0x14] sm:$0xf]
        %v559 = vld [vmem:[%s456 + $0x18] sm:$0xf]
        %v560 = vld [vmem:[%s456 + $0x1c] sm:$0xf]
        %v561 = vld [vmem:[%s456 + $0x20] sm:$0xf]
        %v562 = vld [vmem:[%s456 + $0x24] sm:$0xf]
        %v563 = vld [vmem:[%s456 + $0x28] sm:$0xf]
        %v564 = vld [vmem:[%s456 + $0x2c] sm:$0xf]
        %v565 = vld [vmem:[%s456 + $0x30] sm:$0xf]
        %v566 = vld [vmem:[%s456 + $0x34] sm:$0xf]
        %v567 = vld [vmem:[%s456 + $0x38] sm:$0xf]
        %v568 = vld [vmem:[%s456 + $0x3c] sm:$0xf]
        %v569 = vld [vmem:[%s460] sm:$0x1]
        %v570 = vld [vmem:[%s460 + $0x1] sm:$0x1]
        %v571 = vld [vmem:[%s460 + $0x2] sm:$0x1]
        %v572 = vld [vmem:[%s460 + $0x3] sm:$0x1]
        %v577 = vlaneseq
        %v578 = vshrl.u32 %v577, 7
        %v579 = vsub.s32 0, %v578
        %v580 = vrot.slane %v569, %v579
        %v581 = vlaneseq
        %v582 = vshrl.u32 %v581, 7
        %v583 = vsub.s32 0, %v582
        %v584 = vrot.slane %v570, %v583
        %v585 = vlaneseq
        %v586 = vshrl.u32 %v585, 7
        %v587 = vsub.s32 0, %v586
        %v588 = vrot.slane %v571, %v587
        %v589 = vlaneseq
        %v590 = vshrl.u32 %v589, 7
        %v591 = vsub.s32 0, %v590
        %v592 = vrot.slane %v572, %v591
        %v601 = vunpack.c.l.b16 %v553
        %v602 = vunpack.c.l.b16 %v554
        %v603 = vunpack.c.l.b16 %v555
        %v604 = vunpack.c.l.b16 %v556
        %v605 = vpack.c.b16 %v602, %v601
        %v606 = vpack.c.b16 %v604, %v603
        %vm609 = vcmask 261120
        %v611 = vsel %vm609, %v552, 0
        %613 = vmatprep.subr.bf16.mxu0 0
        %614 = vmatpush1.bf16.msra.mxu0 0
        %615 = vmatprep.subr.bf16.mxu0 0
        %616 = vmatpush1.bf16.msra.mxu0 0
        %617 = vmatprep.subr.bf16.mxu0 0
        %618 = vmatpush1.bf16.msra.mxu0 0
        %619 = vmatprep.subr.bf16.mxu0 0
        %620 = vmatpush1.bf16.msra.mxu0 0
        %621 = vmatprep.subr.bf16.mxu0 0
        %622 = vmatpush1.bf16.msra.mxu0 0
        %623 = vmatprep.subr.bf16.mxu0 0
        %624 = vmatpush1.bf16.msra.mxu0 0
        %625 = vmatprep.subr.bf16.mxu0 0
        %626 = vmatpush1.bf16.msra.mxu0 %v606
        %627 = vmatprep.subr.bf16.mxu0 0
        %628 = vmatpush1.bf16.msra.mxu0 %v605
        %629 = vmatprep.subr.bf16.mxu0 0
        %630 = vmatpush2.bf16.msra.mxu0 0
        %631 = vmatprep.subr.bf16.mxu0 0
        %632 = vmatpush2.bf16.msra.mxu0 0
        %633 = vmatprep.subr.bf16.mxu0 0
        %634 = vmatpush2.bf16.msra.mxu0 0
        %635 = vmatprep.subr.bf16.mxu0 0
        %636 = vmatpush2.bf16.msra.mxu0 0
        %637 = vmatprep.subr.bf16.mxu0 0
        %638 = vmatpush2.bf16.msra.mxu0 0
        %639 = vmatprep.subr.bf16.mxu0 0
        %640 = vmatpush2.bf16.msra.mxu0 0
        %641 = vmatprep.subr.bf16.mxu0 0
        %642 = vmatpush2.bf16.msra.mxu0 0
        %643 = vmatprep.subr.bf16.mxu0 0
        %644 = vmatpush2.bf16.msra.mxu0 0
        %645 = vmatprep.mubr.bf16.mxu0 0
        %646 = vmatmul.mubr.bf16.gmra.mxu0 %v611
        %v647 = vpop.f32.mrf.mxu0
        %v648 = vadd.f32 %v580, %v647
        %v649 = vpop.f32.mrf.mxu0
        %v650 = vpop.f32.mrf.mxu0
        %v651 = vpop.f32.mrf.mxu0
        %652 = vdwg.mxu0
        %v657 = vunpack.c.l.b16 %v557
        %v658 = vunpack.c.l.b16 %v558
        %v659 = vunpack.c.l.b16 %v559
        %v660 = vunpack.c.l.b16 %v560
        %v661 = vpack.c.b16 %v658, %v657
        %v662 = vpack.c.b16 %v660, %v659
        %665 = vmatprep.subr.bf16.mxu0 0
        %666 = vmatpush1.bf16.msra.mxu0 0
        %667 = vmatprep.subr.bf16.mxu0 0
        %668 = vmatpush1.bf16.msra.mxu0 0
        %669 = vmatprep.subr.bf16.mxu0 0
        %670 = vmatpush1.bf16.msra.mxu0 0
        %671 = vmatprep.subr.bf16.mxu0 0
        %672 = vmatpush1.bf16.msra.mxu0 0
        %673 = vmatprep.subr.bf16.mxu0 0
        %674 = vmatpush1.bf16.msra.mxu0 0
        %675 = vmatprep.subr.bf16.mxu0 0
        %676 = vmatpush1.bf16.msra.mxu0 0
        %677 = vmatprep.subr.bf16.mxu0 0
        %678 = vmatpush1.bf16.msra.mxu0 %v662
        %679 = vmatprep.subr.bf16.mxu0 0
        %680 = vmatpush1.bf16.msra.mxu0 %v661
        %681 = vmatprep.subr.bf16.mxu0 0
        %682 = vmatpush2.bf16.msra.mxu0 0
        %683 = vmatprep.subr.bf16.mxu0 0
        %684 = vmatpush2.bf16.msra.mxu0 0
        %685 = vmatprep.subr.bf16.mxu0 0
        %686 = vmatpush2.bf16.msra.mxu0 0
        %687 = vmatprep.subr.bf16.mxu0 0
        %688 = vmatpush2.bf16.msra.mxu0 0
        %689 = vmatprep.subr.bf16.mxu0 0
        %690 = vmatpush2.bf16.msra.mxu0 0
        %691 = vmatprep.subr.bf16.mxu0 0
        %692 = vmatpush2.bf16.msra.mxu0 0
        %693 = vmatprep.subr.bf16.mxu0 0
        %694 = vmatpush2.bf16.msra.mxu0 0
        %695 = vmatprep.subr.bf16.mxu0 0
        %696 = vmatpush2.bf16.msra.mxu0 0
        %697 = vmatprep.mubr.bf16.mxu0 0
        %698 = vmatmul.mubr.bf16.gmra.mxu0 %v611
        %v699 = vpop.f32.mrf.mxu0
        %v700 = vadd.f32 %v584, %v699
        %v701 = vpop.f32.mrf.mxu0
        %v702 = vpop.f32.mrf.mxu0
        %v703 = vpop.f32.mrf.mxu0
        %704 = vdwg.mxu0
        %v709 = vunpack.c.l.b16 %v561
        %v710 = vunpack.c.l.b16 %v562
        %v711 = vunpack.c.l.b16 %v563
        %v712 = vunpack.c.l.b16 %v564
        %v713 = vpack.c.b16 %v710, %v709
        %v714 = vpack.c.b16 %v712, %v711
        %717 = vmatprep.subr.bf16.mxu0 0
        %718 = vmatpush1.bf16.msra.mxu0 0
        %719 = vmatprep.subr.bf16.mxu0 0
        %720 = vmatpush1.bf16.msra.mxu0 0
        %721 = vmatprep.subr.bf16.mxu0 0
        %722 = vmatpush1.bf16.msra.mxu0 0
        %723 = vmatprep.subr.bf16.mxu0 0
        %724 = vmatpush1.bf16.msra.mxu0 0
        %725 = vmatprep.subr.bf16.mxu0 0
        %726 = vmatpush1.bf16.msra.mxu0 0
        %727 = vmatprep.subr.bf16.mxu0 0
        %728 = vmatpush1.bf16.msra.mxu0 0
        %729 = vmatprep.subr.bf16.mxu0 0
        %730 = vmatpush1.bf16.msra.mxu0 %v714
        %731 = vmatprep.subr.bf16.mxu0 0
        %732 = vmatpush1.bf16.msra.mxu0 %v713
        %733 = vmatprep.subr.bf16.mxu0 0
        %734 = vmatpush2.bf16.msra.mxu0 0
        %735 = vmatprep.subr.bf16.mxu0 0
        %736 = vmatpush2.bf16.msra.mxu0 0
        %737 = vmatprep.subr.bf16.mxu0 0
        %738 = vmatpush2.bf16.msra.mxu0 0
        %739 = vmatprep.subr.bf16.mxu0 0
        %740 = vmatpush2.bf16.msra.mxu0 0
        %741 = vmatprep.subr.bf16.mxu0 0
        %742 = vmatpush2.bf16.msra.mxu0 0
        %743 = vmatprep.subr.bf16.mxu0 0
        %744 = vmatpush2.bf16.msra.mxu0 0
        %745 = vmatprep.subr.bf16.mxu0 0
        %746 = vmatpush2.bf16.msra.mxu0 0
        %747 = vmatprep.subr.bf16.mxu0 0
        %748 = vmatpush2.bf16.msra.mxu0 0
        %749 = vmatprep.mubr.bf16.mxu0 0
        %750 = vmatmul.mubr.bf16.gmra.mxu0 %v611
        %v751 = vpop.f32.mrf.mxu0
        %v752 = vadd.f32 %v588, %v751
        %v753 = vpop.f32.mrf.mxu0
        %v754 = vpop.f32.mrf.mxu0
        %v755 = vpop.f32.mrf.mxu0
        %756 = vdwg.mxu0
        %v761 = vunpack.c.l.b16 %v565
        %v762 = vunpack.c.l.b16 %v566
        %v763 = vunpack.c.l.b16 %v567
        %v764 = vunpack.c.l.b16 %v568
        %v765 = vpack.c.b16 %v762, %v761
        %v766 = vpack.c.b16 %v764, %v763
        %769 = vmatprep.subr.bf16.mxu0 0
        %770 = vmatpush1.bf16.msra.mxu0 0
        %771 = vmatprep.subr.bf16.mxu0 0
        %772 = vmatpush1.bf16.msra.mxu0 0
        %773 = vmatprep.subr.bf16.mxu0 0
        %774 = vmatpush1.bf16.msra.mxu0 0
        %775 = vmatprep.subr.bf16.mxu0 0
        %776 = vmatpush1.bf16.msra.mxu0 0
        %777 = vmatprep.subr.bf16.mxu0 0
        %778 = vmatpush1.bf16.msra.mxu0 0
        %779 = vmatprep.subr.bf16.mxu0 0
        %780 = vmatpush1.bf16.msra.mxu0 0
        %781 = vmatprep.subr.bf16.mxu0 0
        %782 = vmatpush1.bf16.msra.mxu0 %v766
        %783 = vmatprep.subr.bf16.mxu0 0
        %784 = vmatpush1.bf16.msra.mxu0 %v765
        %785 = vmatprep.subr.bf16.mxu0 0
        %786 = vmatpush2.bf16.msra.mxu0 0
        %787 = vmatprep.subr.bf16.mxu0 0
        %788 = vmatpush2.bf16.msra.mxu0 0
        %789 = vmatprep.subr.bf16.mxu0 0
        %790 = vmatpush2.bf16.msra.mxu0 0
        %791 = vmatprep.subr.bf16.mxu0 0
        %792 = vmatpush2.bf16.msra.mxu0 0
        %793 = vmatprep.subr.bf16.mxu0 0
        %794 = vmatpush2.bf16.msra.mxu0 0
        %795 = vmatprep.subr.bf16.mxu0 0
        %796 = vmatpush2.bf16.msra.mxu0 0
        %797 = vmatprep.subr.bf16.mxu0 0
        %798 = vmatpush2.bf16.msra.mxu0 0
        %799 = vmatprep.subr.bf16.mxu0 0
        %800 = vmatpush2.bf16.msra.mxu0 0
        %801 = vmatprep.mubr.bf16.mxu0 0
        %802 = vmatmul.mubr.bf16.gmra.mxu0 %v611
        %v803 = vpop.f32.mrf.mxu0
        %v804 = vadd.f32 %v592, %v803
        %v805 = vpop.f32.mrf.mxu0
        %v806 = vpop.f32.mrf.mxu0
        %v807 = vpop.f32.mrf.mxu0
        %808 = vdwg.mxu0
        %v809 = vpack.c.bf16 %v648, %v648
        %v810 = vpack.c.bf16 %v700, %v700
        %v811 = vpack.c.bf16 %v752, %v752
        %v812 = vpack.c.bf16 %v804, %v804
        %814 = vrot.lane.b32.xlu0 %v809, 120
        %v815 = vpop.permute.xlu0 %814
        %vm816 = vcmask 64512
        %v818 = vsel %vm816, %v809, 0
        %v821 = vsel %vm816, %v815, 0
        %823 = vmatprep.subr.bf16.mxu0 0
        %824 = vmatpush1.bf16.xpose.msra.mxu0 0
        %825 = vmatprep.subr.bf16.mxu0 0
        %826 = vmatpush1.bf16.xpose.msra.mxu0 0
        %827 = vmatprep.subr.bf16.mxu0 0
        %828 = vmatpush1.bf16.xpose.msra.mxu0 0
        %829 = vmatprep.subr.bf16.mxu0 0
        %830 = vmatpush1.bf16.xpose.msra.mxu0 0
        %831 = vmatprep.subr.bf16.mxu0 0
        %832 = vmatpush1.bf16.xpose.msra.mxu0 0
        %833 = vmatprep.subr.bf16.mxu0 0
        %834 = vmatpush1.bf16.xpose.msra.mxu0 0
        %835 = vmatprep.subr.bf16.mxu0 0
        %836 = vmatpush1.bf16.xpose.msra.mxu0 0
        %837 = vmatprep.subr.bf16.mxu0 0
        %838 = vmatpush1.bf16.xpose.msra.mxu0 %v821
        %839 = vmatprep.subr.bf16.mxu0 0
        %840 = vmatpush2.bf16.xpose.msra.mxu0 0
        %841 = vmatprep.subr.bf16.mxu0 0
        %842 = vmatpush2.bf16.xpose.msra.mxu0 0
        %843 = vmatprep.subr.bf16.mxu0 0
        %844 = vmatpush2.bf16.xpose.msra.mxu0 0
        %845 = vmatprep.subr.bf16.mxu0 0
        %846 = vmatpush2.bf16.xpose.msra.mxu0 0
        %847 = vmatprep.subr.bf16.mxu0 0
        %848 = vmatpush2.bf16.xpose.msra.mxu0 0
        %849 = vmatprep.subr.bf16.mxu0 0
        %850 = vmatpush2.bf16.xpose.msra.mxu0 0
        %851 = vmatprep.subr.bf16.mxu0 0
        %852 = vmatpush2.bf16.xpose.msra.mxu0 0
        %853 = vmatprep.subr.bf16.mxu0 0
        %854 = vmatpush2.bf16.xpose.msra.mxu0 0
        %855 = vmatprep.mubr.bf16.mxu0 0
        %856 = vmatmul.mubr.bf16.gmra.mxu0 %v818
        %v857 = vpop.f32.mrf.mxu0
        %v858 = vadd.f32 0.0, %v857
        %v859 = vpop.f32.mrf.mxu0
        %v860 = vpop.f32.mrf.mxu0
        %v861 = vpop.f32.mrf.mxu0
        %862 = vdwg.mxu0
        %864 = vrot.lane.b32.xlu0 %v810, 120
        %v865 = vpop.permute.xlu0 %864
        %v867 = vsel %vm816, %v810, 0
        %v870 = vsel %vm816, %v865, 0
        %872 = vmatprep.subr.bf16.mxu0 0
        %873 = vmatpush1.bf16.xpose.msra.mxu0 0
        %874 = vmatprep.subr.bf16.mxu0 0
        %875 = vmatpush1.bf16.xpose.msra.mxu0 0
        %876 = vmatprep.subr.bf16.mxu0 0
        %877 = vmatpush1.bf16.xpose.msra.mxu0 0
        %878 = vmatprep.subr.bf16.mxu0 0
        %879 = vmatpush1.bf16.xpose.msra.mxu0 0
        %880 = vmatprep.subr.bf16.mxu0 0
        %881 = vmatpush1.bf16.xpose.msra.mxu0 0
        %882 = vmatprep.subr.bf16.mxu0 0
        %883 = vmatpush1.bf16.xpose.msra.mxu0 0
        %884 = vmatprep.subr.bf16.mxu0 0
        %885 = vmatpush1.bf16.xpose.msra.mxu0 0
        %886 = vmatprep.subr.bf16.mxu0 0
        %887 = vmatpush1.bf16.xpose.msra.mxu0 %v870
        %888 = vmatprep.subr.bf16.mxu0 0
        %889 = vmatpush2.bf16.xpose.msra.mxu0 0
        %890 = vmatprep.subr.bf16.mxu0 0
        %891 = vmatpush2.bf16.xpose.msra.mxu0 0
        %892 = vmatprep.subr.bf16.mxu0 0
        %893 = vmatpush2.bf16.xpose.msra.mxu0 0
        %894 = vmatprep.subr.bf16.mxu0 0
        %895 = vmatpush2.bf16.xpose.msra.mxu0 0
        %896 = vmatprep.subr.bf16.mxu0 0
        %897 = vmatpush2.bf16.xpose.msra.mxu0 0
        %898 = vmatprep.subr.bf16.mxu0 0
        %899 = vmatpush2.bf16.xpose.msra.mxu0 0
        %900 = vmatprep.subr.bf16.mxu0 0
        %901 = vmatpush2.bf16.xpose.msra.mxu0 0
        %902 = vmatprep.subr.bf16.mxu0 0
        %903 = vmatpush2.bf16.xpose.msra.mxu0 0
        %904 = vmatprep.mubr.bf16.mxu0 0
        %905 = vmatmul.mubr.bf16.gmra.mxu0 %v867
        %v906 = vpop.f32.mrf.mxu0
        %v907 = vadd.f32 0.0, %v906
        %v908 = vpop.f32.mrf.mxu0
        %v909 = vpop.f32.mrf.mxu0
        %v910 = vpop.f32.mrf.mxu0
        %911 = vdwg.mxu0
        %913 = vrot.lane.b32.xlu0 %v811, 120
        %v914 = vpop.permute.xlu0 %913
        %v916 = vsel %vm816, %v811, 0
        %v919 = vsel %vm816, %v914, 0
        %921 = vmatprep.subr.bf16.mxu0 0
        %922 = vmatpush1.bf16.xpose.msra.mxu0 0
        %923 = vmatprep.subr.bf16.mxu0 0
        %924 = vmatpush1.bf16.xpose.msra.mxu0 0
        %925 = vmatprep.subr.bf16.mxu0 0
        %926 = vmatpush1.bf16.xpose.msra.mxu0 0
        %927 = vmatprep.subr.bf16.mxu0 0
        %928 = vmatpush1.bf16.xpose.msra.mxu0 0
        %929 = vmatprep.subr.bf16.mxu0 0
        %930 = vmatpush1.bf16.xpose.msra.mxu0 0
        %931 = vmatprep.subr.bf16.mxu0 0
        %932 = vmatpush1.bf16.xpose.msra.mxu0 0
        %933 = vmatprep.subr.bf16.mxu0 0
        %934 = vmatpush1.bf16.xpose.msra.mxu0 0
        %935 = vmatprep.subr.bf16.mxu0 0
        %936 = vmatpush1.bf16.xpose.msra.mxu0 %v919
        %937 = vmatprep.subr.bf16.mxu0 0
        %938 = vmatpush2.bf16.xpose.msra.mxu0 0
        %939 = vmatprep.subr.bf16.mxu0 0
        %940 = vmatpush2.bf16.xpose.msra.mxu0 0
        %941 = vmatprep.subr.bf16.mxu0 0
        %942 = vmatpush2.bf16.xpose.msra.mxu0 0
        %943 = vmatprep.subr.bf16.mxu0 0
        %944 = vmatpush2.bf16.xpose.msra.mxu0 0
        %945 = vmatprep.subr.bf16.mxu0 0
        %946 = vmatpush2.bf16.xpose.msra.mxu0 0
        %947 = vmatprep.subr.bf16.mxu0 0
        %948 = vmatpush2.bf16.xpose.msra.mxu0 0
        %949 = vmatprep.subr.bf16.mxu0 0
        %950 = vmatpush2.bf16.xpose.msra.mxu0 0
        %951 = vmatprep.subr.bf16.mxu0 0
        %952 = vmatpush2.bf16.xpose.msra.mxu0 0
        %953 = vmatprep.mubr.bf16.mxu0 0
        %954 = vmatmul.mubr.bf16.gmra.mxu0 %v916
        %v955 = vpop.f32.mrf.mxu0
        %v956 = vadd.f32 0.0, %v955
        %v957 = vpop.f32.mrf.mxu0
        %v958 = vpop.f32.mrf.mxu0
        %v959 = vpop.f32.mrf.mxu0
        %960 = vdwg.mxu0
        %962 = vrot.lane.b32.xlu0 %v812, 120
        %v963 = vpop.permute.xlu0 %962
        %v965 = vsel %vm816, %v812, 0
        %v968 = vsel %vm816, %v963, 0
        %970 = vmatprep.subr.bf16.mxu0 0
        %971 = vmatpush1.bf16.xpose.msra.mxu0 0
        %972 = vmatprep.subr.bf16.mxu0 0
        %973 = vmatpush1.bf16.xpose.msra.mxu0 0
        %974 = vmatprep.subr.bf16.mxu0 0
        %975 = vmatpush1.bf16.xpose.msra.mxu0 0
        %976 = vmatprep.subr.bf16.mxu0 0
        %977 = vmatpush1.bf16.xpose.msra.mxu0 0
        %978 = vmatprep.subr.bf16.mxu0 0
        %979 = vmatpush1.bf16.xpose.msra.mxu0 0
        %980 = vmatprep.subr.bf16.mxu0 0
        %981 = vmatpush1.bf16.xpose.msra.mxu0 0
        %982 = vmatprep.subr.bf16.mxu0 0
        %983 = vmatpush1.bf16.xpose.msra.mxu0 0
        %984 = vmatprep.subr.bf16.mxu0 0
        %985 = vmatpush1.bf16.xpose.msra.mxu0 %v968
        %986 = vmatprep.subr.bf16.mxu0 0
        %987 = vmatpush2.bf16.xpose.msra.mxu0 0
        %988 = vmatprep.subr.bf16.mxu0 0
        %989 = vmatpush2.bf16.xpose.msra.mxu0 0
        %990 = vmatprep.subr.bf16.mxu0 0
        %991 = vmatpush2.bf16.xpose.msra.mxu0 0
        %992 = vmatprep.subr.bf16.mxu0 0
        %993 = vmatpush2.bf16.xpose.msra.mxu0 0
        %994 = vmatprep.subr.bf16.mxu0 0
        %995 = vmatpush2.bf16.xpose.msra.mxu0 0
        %996 = vmatprep.subr.bf16.mxu0 0
        %997 = vmatpush2.bf16.xpose.msra.mxu0 0
        %998 = vmatprep.subr.bf16.mxu0 0
        %999 = vmatpush2.bf16.xpose.msra.mxu0 0
        %1000 = vmatprep.subr.bf16.mxu0 0
        %1001 = vmatpush2.bf16.xpose.msra.mxu0 0
        %1002 = vmatprep.mubr.bf16.mxu0 0
        %1003 = vmatmul.mubr.bf16.gmra.mxu0 %v965
        %v1004 = vpop.f32.mrf.mxu0
        %v1005 = vadd.f32 0.0, %v1004
        %v1006 = vpop.f32.mrf.mxu0
        %v1007 = vpop.f32.mrf.mxu0
        %v1008 = vpop.f32.mrf.mxu0
        %1009 = vdwg.mxu0
        %v1010 = vsel %vm816, %v858, -inf
        %1011 = vmax.xlane.f32.xlu0 %v1010
        %v1012 = vpop.xlane.xlu0 %1011
        %v1013 = vsel %vm816, %v907, -inf
        %1014 = vmax.xlane.f32.xlu0 %v1013
        %v1015 = vpop.xlane.xlu0 %1014
        %v1016 = vsel %vm816, %v956, -inf
        %1017 = vmax.xlane.f32.xlu0 %v1016
        %v1018 = vpop.xlane.xlu0 %1017
        %v1019 = vsel %vm816, %v1005, -inf
        %1020 = vmax.xlane.f32.xlu0 %v1019
        %v1021 = vpop.xlane.xlu0 %1020
        %v1022 = vsub.f32 %v858, %v1012
        %v1023 = vsub.f32 %v907, %v1015
        %v1024 = vsub.f32 %v956, %v1018
        %v1025 = vsub.f32 %v1005, %v1021
        %v1026 = vmul.f32 %v1022, 1.442695
        %v1027 = vpow.pop %v1026
        %v1028 = vmul.f32 %v1023, 1.442695
        %v1029 = vpow.pop %v1028
        %v1030 = vmul.f32 %v1024, 1.442695
        %v1031 = vpow.pop %v1030
        %v1032 = vmul.f32 %v1025, 1.442695
        %v1033 = vpow.pop %v1032
        %v1034 = vsel %vm816, %v1027, 0.0
        %1035 = vadd.xlane.f32.xlu0 %v1034
        %v1036 = vpop.xlane.xlu0 %1035
        %v1037 = vsel %vm816, %v1029, 0.0
        %1038 = vadd.xlane.f32.xlu0 %v1037
        %v1039 = vpop.xlane.xlu0 %1038
        %v1040 = vsel %vm816, %v1031, 0.0
        %1041 = vadd.xlane.f32.xlu0 %v1040
        %v1042 = vpop.xlane.xlu0 %1041
        %v1043 = vsel %vm816, %v1033, 0.0
        %1044 = vadd.xlane.f32.xlu0 %v1043
        %v1045 = vpop.xlane.xlu0 %1044
        %v1046 = vrcp.pop %v1036
        %v1047 = vrcp.pop %v1039
        %v1048 = vrcp.pop %v1042
        %v1049 = vrcp.pop %v1045
        %v1050 = vmul.f32 %v1027, %v1046
        %v1051 = vmul.f32 %v1029, %v1047
        %v1052 = vmul.f32 %v1031, %v1048
        %v1053 = vmul.f32 %v1033, %v1049
        %v1054 = vpack.c.bf16 %v1050, %v1050
        %v1055 = vpack.c.bf16 %v1051, %v1051
        %v1056 = vpack.c.bf16 %v1052, %v1052
        %v1057 = vpack.c.bf16 %v1053, %v1053
        %1058 = vrot.lane.b32.xlu0 %v809, 112
        %v1059 = vpop.permute.xlu0 %1058
        %v1061 = vsel %vm816, %v1054, 0
        %vm1063 = vcmask 1043456
        %v1065 = vsel %vm1063, %v1059, 0
        %1067 = vmatprep.subr.bf16.mxu0 0
        %1068 = vmatpush1.bf16.msra.mxu0 0
        %1069 = vmatprep.subr.bf16.mxu0 0
        %1070 = vmatpush1.bf16.msra.mxu0 0
        %1071 = vmatprep.subr.bf16.mxu0 0
        %1072 = vmatpush1.bf16.msra.mxu0 0
        %1073 = vmatprep.subr.bf16.mxu0 0
        %1074 = vmatpush1.bf16.msra.mxu0 0
        %1075 = vmatprep.subr.bf16.mxu0 0
        %1076 = vmatpush1.bf16.msra.mxu0 0
        %1077 = vmatprep.subr.bf16.mxu0 0
        %1078 = vmatpush1.bf16.msra.mxu0 0
        %1079 = vmatprep.subr.bf16.mxu0 0
        %1080 = vmatpush1.bf16.msra.mxu0 0
        %1081 = vmatprep.subr.bf16.mxu0 0
        %1082 = vmatpush1.bf16.msra.mxu0 %v1065
        %1083 = vmatprep.subr.bf16.mxu0 0
        %1084 = vmatpush2.bf16.msra.mxu0 0
        %1085 = vmatprep.subr.bf16.mxu0 0
        %1086 = vmatpush2.bf16.msra.mxu0 0
        %1087 = vmatprep.subr.bf16.mxu0 0
        %1088 = vmatpush2.bf16.msra.mxu0 0
        %1089 = vmatprep.subr.bf16.mxu0 0
        %1090 = vmatpush2.bf16.msra.mxu0 0
        %1091 = vmatprep.subr.bf16.mxu0 0
        %1092 = vmatpush2.bf16.msra.mxu0 0
        %1093 = vmatprep.subr.bf16.mxu0 0
        %1094 = vmatpush2.bf16.msra.mxu0 0
        %1095 = vmatprep.subr.bf16.mxu0 0
        %1096 = vmatpush2.bf16.msra.mxu0 0
        %1097 = vmatprep.subr.bf16.mxu0 0
        %1098 = vmatpush2.bf16.msra.mxu0 0
        %1099 = vmatprep.mubr.bf16.mxu0 0
        %1100 = vmatmul.mubr.bf16.gmra.mxu0 %v1061
        %v1101 = vpop.f32.mrf.mxu0
        %v1102 = vadd.f32 0.0, %v1101
        %v1103 = vpop.f32.mrf.mxu0
        %v1104 = vpop.f32.mrf.mxu0
        %v1105 = vpop.f32.mrf.mxu0
        %1106 = vdwg.mxu0
        %1107 = vrot.lane.b32.xlu0 %v810, 112
        %v1108 = vpop.permute.xlu0 %1107
        %v1110 = vsel %vm816, %v1055, 0
        %v1113 = vsel %vm1063, %v1108, 0
        %1115 = vmatprep.subr.bf16.mxu0 0
        %1116 = vmatpush1.bf16.msra.mxu0 0
        %1117 = vmatprep.subr.bf16.mxu0 0
        %1118 = vmatpush1.bf16.msra.mxu0 0
        %1119 = vmatprep.subr.bf16.mxu0 0
        %1120 = vmatpush1.bf16.msra.mxu0 0
        %1121 = vmatprep.subr.bf16.mxu0 0
        %1122 = vmatpush1.bf16.msra.mxu0 0
        %1123 = vmatprep.subr.bf16.mxu0 0
        %1124 = vmatpush1.bf16.msra.mxu0 0
        %1125 = vmatprep.subr.bf16.mxu0 0
        %1126 = vmatpush1.bf16.msra.mxu0 0
        %1127 = vmatprep.subr.bf16.mxu0 0
        %1128 = vmatpush1.bf16.msra.mxu0 0
        %1129 = vmatprep.subr.bf16.mxu0 0
        %1130 = vmatpush1.bf16.msra.mxu0 %v1113
        %1131 = vmatprep.subr.bf16.mxu0 0
        %1132 = vmatpush2.bf16.msra.mxu0 0
        %1133 = vmatprep.subr.bf16.mxu0 0
        %1134 = vmatpush2.bf16.msra.mxu0 0
        %1135 = vmatprep.subr.bf16.mxu0 0
        %1136 = vmatpush2.bf16.msra.mxu0 0
        %1137 = vmatprep.subr.bf16.mxu0 0
        %1138 = vmatpush2.bf16.msra.mxu0 0
        %1139 = vmatprep.subr.bf16.mxu0 0
        %1140 = vmatpush2.bf16.msra.mxu0 0
        %1141 = vmatprep.subr.bf16.mxu0 0
        %1142 = vmatpush2.bf16.msra.mxu0 0
        %1143 = vmatprep.subr.bf16.mxu0 0
        %1144 = vmatpush2.bf16.msra.mxu0 0
        %1145 = vmatprep.subr.bf16.mxu0 0
        %1146 = vmatpush2.bf16.msra.mxu0 0
        %1147 = vmatprep.mubr.bf16.mxu0 0
        %1148 = vmatmul.mubr.bf16.gmra.mxu0 %v1110
        %v1149 = vpop.f32.mrf.mxu0
        %v1150 = vadd.f32 0.0, %v1149
        %v1151 = vpop.f32.mrf.mxu0
        %v1152 = vpop.f32.mrf.mxu0
        %v1153 = vpop.f32.mrf.mxu0
        %1154 = vdwg.mxu0
        %1155 = vrot.lane.b32.xlu0 %v811, 112
        %v1156 = vpop.permute.xlu0 %1155
        %v1158 = vsel %vm816, %v1056, 0
        %v1161 = vsel %vm1063, %v1156, 0
        %1163 = vmatprep.subr.bf16.mxu0 0
        %1164 = vmatpush1.bf16.msra.mxu0 0
        %1165 = vmatprep.subr.bf16.mxu0 0
        %1166 = vmatpush1.bf16.msra.mxu0 0
        %1167 = vmatprep.subr.bf16.mxu0 0
        %1168 = vmatpush1.bf16.msra.mxu0 0
        %1169 = vmatprep.subr.bf16.mxu0 0
        %1170 = vmatpush1.bf16.msra.mxu0 0
        %1171 = vmatprep.subr.bf16.mxu0 0
        %1172 = vmatpush1.bf16.msra.mxu0 0
        %1173 = vmatprep.subr.bf16.mxu0 0
        %1174 = vmatpush1.bf16.msra.mxu0 0
        %1175 = vmatprep.subr.bf16.mxu0 0
        %1176 = vmatpush1.bf16.msra.mxu0 0
        %1177 = vmatprep.subr.bf16.mxu0 0
        %1178 = vmatpush1.bf16.msra.mxu0 %v1161
        %1179 = vmatprep.subr.bf16.mxu0 0
        %1180 = vmatpush2.bf16.msra.mxu0 0
        %1181 = vmatprep.subr.bf16.mxu0 0
        %1182 = vmatpush2.bf16.msra.mxu0 0
        %1183 = vmatprep.subr.bf16.mxu0 0
        %1184 = vmatpush2.bf16.msra.mxu0 0
        %1185 = vmatprep.subr.bf16.mxu0 0
        %1186 = vmatpush2.bf16.msra.mxu0 0
        %1187 = vmatprep.subr.bf16.mxu0 0
        %1188 = vmatpush2.bf16.msra.mxu0 0
        %1189 = vmatprep.subr.bf16.mxu0 0
        %1190 = vmatpush2.bf16.msra.mxu0 0
        %1191 = vmatprep.subr.bf16.mxu0 0
        %1192 = vmatpush2.bf16.msra.mxu0 0
        %1193 = vmatprep.subr.bf16.mxu0 0
        %1194 = vmatpush2.bf16.msra.mxu0 0
        %1195 = vmatprep.mubr.bf16.mxu0 0
        %1196 = vmatmul.mubr.bf16.gmra.mxu0 %v1158
        %v1197 = vpop.f32.mrf.mxu0
        %v1198 = vadd.f32 0.0, %v1197
        %v1199 = vpop.f32.mrf.mxu0
        %v1200 = vpop.f32.mrf.mxu0
        %v1201 = vpop.f32.mrf.mxu0
        %1202 = vdwg.mxu0
        %1203 = vrot.lane.b32.xlu0 %v812, 112
        %v1204 = vpop.permute.xlu0 %1203
        %v1206 = vsel %vm816, %v1057, 0
        %v1209 = vsel %vm1063, %v1204, 0
        %1211 = vmatprep.subr.bf16.mxu0 0
        %1212 = vmatpush1.bf16.msra.mxu0 0
        %1213 = vmatprep.subr.bf16.mxu0 0
        %1214 = vmatpush1.bf16.msra.mxu0 0
        %1215 = vmatprep.subr.bf16.mxu0 0
        %1216 = vmatpush1.bf16.msra.mxu0 0
        %1217 = vmatprep.subr.bf16.mxu0 0
        %1218 = vmatpush1.bf16.msra.mxu0 0
        %1219 = vmatprep.subr.bf16.mxu0 0
        %1220 = vmatpush1.bf16.msra.mxu0 0
        %1221 = vmatprep.subr.bf16.mxu0 0
        %1222 = vmatpush1.bf16.msra.mxu0 0
        %1223 = vmatprep.subr.bf16.mxu0 0
        %1224 = vmatpush1.bf16.msra.mxu0 0
        %1225 = vmatprep.subr.bf16.mxu0 0
        %1226 = vmatpush1.bf16.msra.mxu0 %v1209
        %1227 = vmatprep.subr.bf16.mxu0 0
        %1228 = vmatpush2.bf16.msra.mxu0 0
        %1229 = vmatprep.subr.bf16.mxu0 0
        %1230 = vmatpush2.bf16.msra.mxu0 0
        %1231 = vmatprep.subr.bf16.mxu0 0
        %1232 = vmatpush2.bf16.msra.mxu0 0
        %1233 = vmatprep.subr.bf16.mxu0 0
        %1234 = vmatpush2.bf16.msra.mxu0 0
        %1235 = vmatprep.subr.bf16.mxu0 0
        %1236 = vmatpush2.bf16.msra.mxu0 0
        %1237 = vmatprep.subr.bf16.mxu0 0
        %1238 = vmatpush2.bf16.msra.mxu0 0
        %1239 = vmatprep.subr.bf16.mxu0 0
        %1240 = vmatpush2.bf16.msra.mxu0 0
        %1241 = vmatprep.subr.bf16.mxu0 0
        %1242 = vmatpush2.bf16.msra.mxu0 0
        %1243 = vmatprep.mubr.bf16.mxu0 0
        %1244 = vmatmul.mubr.bf16.gmra.mxu0 %v1206
        %v1245 = vpop.f32.mrf.mxu0
        %v1246 = vadd.f32 0.0, %v1245
        %v1247 = vpop.f32.mrf.mxu0
        %v1248 = vpop.f32.mrf.mxu0
        %v1249 = vpop.f32.mrf.mxu0
        %1250 = vdwg.mxu0
        %v1251 = vpack.c.bf16 %v1102, %v1102
        %v1252 = vpack.c.bf16 %v1150, %v1150
        %v1253 = vpack.c.bf16 %v1198, %v1198
        %v1254 = vpack.c.bf16 %v1246, %v1246
        %v1255 = vld [vmem:[%s465] sm:$0xf]
        %v1256 = vld [vmem:[%s465 + $0x4] sm:$0xf]
        %v1257 = vld [vmem:[%s465 + $0x8] sm:$0xf]
        %v1258 = vld [vmem:[%s465 + $0xc] sm:$0xf]
        %v1260 = vsel %vm816, %v1251, 0
        %v1263 = vsel %vm1063, %v1255, 0
        %1265 = vmatprep.subr.bf16.mxu0 0
        %1266 = vmatpush1.bf16.msra.mxu0 0
        %1267 = vmatprep.subr.bf16.mxu0 0
        %1268 = vmatpush1.bf16.msra.mxu0 0
        %1269 = vmatprep.subr.bf16.mxu0 0
        %1270 = vmatpush1.bf16.msra.mxu0 0
        %1271 = vmatprep.subr.bf16.mxu0 0
        %1272 = vmatpush1.bf16.msra.mxu0 0
        %1273 = vmatprep.subr.bf16.mxu0 0
        %1274 = vmatpush1.bf16.msra.mxu0 0
        %1275 = vmatprep.subr.bf16.mxu0 0
        %1276 = vmatpush1.bf16.msra.mxu0 0
        %1277 = vmatprep.subr.bf16.mxu0 0
        %1278 = vmatpush1.bf16.msra.mxu0 0
        %1279 = vmatprep.subr.bf16.mxu0 0
        %1280 = vmatpush1.bf16.msra.mxu0 %v1263
        %1281 = vmatprep.subr.bf16.mxu0 0
        %1282 = vmatpush2.bf16.msra.mxu0 0
        %1283 = vmatprep.subr.bf16.mxu0 0
        %1284 = vmatpush2.bf16.msra.mxu0 0
        %1285 = vmatprep.subr.bf16.mxu0 0
        %1286 = vmatpush2.bf16.msra.mxu0 0
        %1287 = vmatprep.subr.bf16.mxu0 0
        %1288 = vmatpush2.bf16.msra.mxu0 0
        %1289 = vmatprep.subr.bf16.mxu0 0
        %1290 = vmatpush2.bf16.msra.mxu0 0
        %1291 = vmatprep.subr.bf16.mxu0 0
        %1292 = vmatpush2.bf16.msra.mxu0 0
        %1293 = vmatprep.subr.bf16.mxu0 0
        %1294 = vmatpush2.bf16.msra.mxu0 0
        %1295 = vmatprep.subr.bf16.mxu0 0
        %1296 = vmatpush2.bf16.msra.mxu0 0
        %1297 = vmatprep.mubr.bf16.mxu0 0
        %1298 = vmatmul.mubr.bf16.gmra.mxu0 %v1260
        %v1299 = vpop.f32.mrf.mxu0
        %v1300 = vadd.f32 0.0, %v1299
        %v1301 = vpop.f32.mrf.mxu0
        %v1302 = vpop.f32.mrf.mxu0
        %v1303 = vpop.f32.mrf.mxu0
        %1304 = vdwg.mxu0
        %v1306 = vsel %vm816, %v1252, 0
        %v1309 = vsel %vm1063, %v1256, 0
        %1311 = vmatprep.subr.bf16.mxu0 0
        %1312 = vmatpush1.bf16.msra.mxu0 0
        %1313 = vmatprep.subr.bf16.mxu0 0
        %1314 = vmatpush1.bf16.msra.mxu0 0
        %1315 = vmatprep.subr.bf16.mxu0 0
        %1316 = vmatpush1.bf16.msra.mxu0 0
        %1317 = vmatprep.subr.bf16.mxu0 0
        %1318 = vmatpush1.bf16.msra.mxu0 0
        %1319 = vmatprep.subr.bf16.mxu0 0
        %1320 = vmatpush1.bf16.msra.mxu0 0
        %1321 = vmatprep.subr.bf16.mxu0 0
        %1322 = vmatpush1.bf16.msra.mxu0 0
        %1323 = vmatprep.subr.bf16.mxu0 0
        %1324 = vmatpush1.bf16.msra.mxu0 0
        %1325 = vmatprep.subr.bf16.mxu0 0
        %1326 = vmatpush1.bf16.msra.mxu0 %v1309
        %1327 = vmatprep.subr.bf16.mxu0 0
        %1328 = vmatpush2.bf16.msra.mxu0 0
        %1329 = vmatprep.subr.bf16.mxu0 0
        %1330 = vmatpush2.bf16.msra.mxu0 0
        %1331 = vmatprep.subr.bf16.mxu0 0
        %1332 = vmatpush2.bf16.msra.mxu0 0
        %1333 = vmatprep.subr.bf16.mxu0 0
        %1334 = vmatpush2.bf16.msra.mxu0 0
        %1335 = vmatprep.subr.bf16.mxu0 0
        %1336 = vmatpush2.bf16.msra.mxu0 0
        %1337 = vmatprep.subr.bf16.mxu0 0
        %1338 = vmatpush2.bf16.msra.mxu0 0
        %1339 = vmatprep.subr.bf16.mxu0 0
        %1340 = vmatpush2.bf16.msra.mxu0 0
        %1341 = vmatprep.subr.bf16.mxu0 0
        %1342 = vmatpush2.bf16.msra.mxu0 0
        %1343 = vmatprep.mubr.bf16.mxu0 0
        %1344 = vmatmul.mubr.bf16.gmra.mxu0 %v1306
        %v1345 = vpop.f32.mrf.mxu0
        %v1346 = vadd.f32 0.0, %v1345
        %v1347 = vpop.f32.mrf.mxu0
        %v1348 = vpop.f32.mrf.mxu0
        %v1349 = vpop.f32.mrf.mxu0
        %1350 = vdwg.mxu0
        %v1352 = vsel %vm816, %v1253, 0
        %v1355 = vsel %vm1063, %v1257, 0
        %1357 = vmatprep.subr.bf16.mxu0 0
        %1358 = vmatpush1.bf16.msra.mxu0 0
        %1359 = vmatprep.subr.bf16.mxu0 0
        %1360 = vmatpush1.bf16.msra.mxu0 0
        %1361 = vmatprep.subr.bf16.mxu0 0
        %1362 = vmatpush1.bf16.msra.mxu0 0
        %1363 = vmatprep.subr.bf16.mxu0 0
        %1364 = vmatpush1.bf16.msra.mxu0 0
        %1365 = vmatprep.subr.bf16.mxu0 0
        %1366 = vmatpush1.bf16.msra.mxu0 0
        %1367 = vmatprep.subr.bf16.mxu0 0
        %1368 = vmatpush1.bf16.msra.mxu0 0
        %1369 = vmatprep.subr.bf16.mxu0 0
        %1370 = vmatpush1.bf16.msra.mxu0 0
        %1371 = vmatprep.subr.bf16.mxu0 0
        %1372 = vmatpush1.bf16.msra.mxu0 %v1355
        %1373 = vmatprep.subr.bf16.mxu0 0
        %1374 = vmatpush2.bf16.msra.mxu0 0
        %1375 = vmatprep.subr.bf16.mxu0 0
        %1376 = vmatpush2.bf16.msra.mxu0 0
        %1377 = vmatprep.subr.bf16.mxu0 0
        %1378 = vmatpush2.bf16.msra.mxu0 0
        %1379 = vmatprep.subr.bf16.mxu0 0
        %1380 = vmatpush2.bf16.msra.mxu0 0
        %1381 = vmatprep.subr.bf16.mxu0 0
        %1382 = vmatpush2.bf16.msra.mxu0 0
        %1383 = vmatprep.subr.bf16.mxu0 0
        %1384 = vmatpush2.bf16.msra.mxu0 0
        %1385 = vmatprep.subr.bf16.mxu0 0
        %1386 = vmatpush2.bf16.msra.mxu0 0
        %1387 = vmatprep.subr.bf16.mxu0 0
        %1388 = vmatpush2.bf16.msra.mxu0 0
        %1389 = vmatprep.mubr.bf16.mxu0 0
        %1390 = vmatmul.mubr.bf16.gmra.mxu0 %v1352
        %v1391 = vpop.f32.mrf.mxu0
        %v1392 = vadd.f32 0.0, %v1391
        %v1393 = vpop.f32.mrf.mxu0
        %v1394 = vpop.f32.mrf.mxu0
        %v1395 = vpop.f32.mrf.mxu0
        %1396 = vdwg.mxu0
        %v1398 = vsel %vm816, %v1254, 0
        %v1401 = vsel %vm1063, %v1258, 0
        %1403 = vmatprep.subr.bf16.mxu0 0
        %1404 = vmatpush1.bf16.msra.mxu0 0
        %1405 = vmatprep.subr.bf16.mxu0 0
        %1406 = vmatpush1.bf16.msra.mxu0 0
        %1407 = vmatprep.subr.bf16.mxu0 0
        %1408 = vmatpush1.bf16.msra.mxu0 0
        %1409 = vmatprep.subr.bf16.mxu0 0
        %1410 = vmatpush1.bf16.msra.mxu0 0
        %1411 = vmatprep.subr.bf16.mxu0 0
        %1412 = vmatpush1.bf16.msra.mxu0 0
        %1413 = vmatprep.subr.bf16.mxu0 0
        %1414 = vmatpush1.bf16.msra.mxu0 0
        %1415 = vmatprep.subr.bf16.mxu0 0
        %1416 = vmatpush1.bf16.msra.mxu0 0
        %1417 = vmatprep.subr.bf16.mxu0 0
        %1418 = vmatpush1.bf16.msra.mxu0 %v1401
        %1419 = vmatprep.subr.bf16.mxu0 0
        %1420 = vmatpush2.bf16.msra.mxu0 0
        %1421 = vmatprep.subr.bf16.mxu0 0
        %1422 = vmatpush2.bf16.msra.mxu0 0
        %1423 = vmatprep.subr.bf16.mxu0 0
        %1424 = vmatpush2.bf16.msra.mxu0 0
        %1425 = vmatprep.subr.bf16.mxu0 0
        %1426 = vmatpush2.bf16.msra.mxu0 0
        %1427 = vmatprep.subr.bf16.mxu0 0
        %1428 = vmatpush2.bf16.msra.mxu0 0
        %1429 = vmatprep.subr.bf16.mxu0 0
        %1430 = vmatpush2.bf16.msra.mxu0 0
        %1431 = vmatprep.subr.bf16.mxu0 0
        %1432 = vmatpush2.bf16.msra.mxu0 0
        %1433 = vmatprep.subr.bf16.mxu0 0
        %1434 = vmatpush2.bf16.msra.mxu0 0
        %1435 = vmatprep.mubr.bf16.mxu0 0
        %1436 = vmatmul.mubr.bf16.gmra.mxu0 %v1398
        %v1437 = vpop.f32.mrf.mxu0
        %v1438 = vadd.f32 0.0, %v1437
        %v1439 = vpop.f32.mrf.mxu0
        %v1440 = vpop.f32.mrf.mxu0
        %v1441 = vpop.f32.mrf.mxu0
        %1442 = vdwg.mxu0
        %v1443 = vsel %vm609, %v1300, 0.0
        %v1444 = vsel %vm609, %v1346, 0.0
        %v1445 = vadd.f32 %v1443, %v1444
        %v1446 = vsel %vm609, %v1392, 0.0
        %v1447 = vadd.f32 %v1445, %v1446
        %v1448 = vsel %vm609, %v1438, 0.0
        %v1449 = vadd.f32 %v1447, %v1448
        %v1450 = vlaneseq
        %v1451 = vshrl.u32 %v1450, 7
        %v1452 = vsub.s32 0, %v1451
        %v1453 = vrot.slane %v551, %v1452
        %v1454 = vadd.f32 %v1449, %v1453
        %v1455 = vadd.f32 %v550, %v1454
        %v1456 = vsel %vm609, %v1455, 0.0
        %1457 = vadd.xlane.f32.xlu0 %v1456
        %v1458 = vpop.xlane.xlu0 %1457
        %v1459 = vrcp.pop 32.0
        %v1460 = vmul.f32 %v1458, %v1459
        %v1461 = vsub.f32 %v1455, %v1460
        %v1462 = vmul.f32 %v1461, %v1461
        %v1463 = vsel %vm609, %v1462, 0.0
        %1464 = vadd.xlane.f32.xlu0 %v1463
        %v1465 = vpop.xlane.xlu0 %1464
        %v1466 = vmul.f32 %v1465, %v1459
        %v1467 = vadd.f32 %v1466, 1e-05
        %v1468 = vrsqrt.pop %v1467
        %v1469 = vmul.f32 %v1461, %v1468
        %v1470 = vlaneseq
        %v1471 = vshrl.u32 %v1470, 7
        %v1472 = vsub.s32 1, %v1471
        %v1473 = vrot.slane %v551, %v1472
        %v1474 = vmul.f32 %v1469, %v1473
        %v1475 = vlaneseq
        %v1476 = vshrl.u32 %v1475, 7
        %v1477 = vsub.s32 2, %v1476
        %v1478 = vrot.slane %v551, %v1477
        %v1479 = vadd.f32 %v1474, %v1478
        %v1480 = vpack.c.bf16 %v1479, %v1479
        %v1481 = vld [vmem:[%s474] sm:$0xff]
        %v1482 = vld [vmem:[%s474 + $0x8] sm:$0xff]
        %v1483 = vld [vmem:[%s474 + $0x10] sm:$0xff]
        %v1484 = vld [vmem:[%s474 + $0x18] sm:$0xff]
        %v1485 = vld [vmem:[%s474 + $0x20] sm:$0xff]
        %v1486 = vld [vmem:[%s474 + $0x28] sm:$0xff]
        %v1487 = vld [vmem:[%s474 + $0x30] sm:$0xff]
        %v1488 = vld [vmem:[%s474 + $0x38] sm:$0xff]
        %v1489 = vld [vmem:[%s474 + $0x40] sm:$0xff]
        %v1490 = vld [vmem:[%s474 + $0x48] sm:$0xff]
        %v1491 = vld [vmem:[%s474 + $0x50] sm:$0xff]
        %v1492 = vld [vmem:[%s474 + $0x58] sm:$0xff]
        %v1493 = vld [vmem:[%s474 + $0x60] sm:$0xff]
        %v1494 = vld [vmem:[%s474 + $0x68] sm:$0xff]
        %v1495 = vld [vmem:[%s474 + $0x70] sm:$0xff]
        %v1496 = vld [vmem:[%s474 + $0x78] sm:$0xff]
        %v1497 = vld [vmem:[%s474 + $0x80] sm:$0xff]
        %v1498 = vld [vmem:[%s474 + $0x88] sm:$0xff]
        %v1499 = vld [vmem:[%s474 + $0x90] sm:$0xff]
        %v1500 = vld [vmem:[%s474 + $0x98] sm:$0xff]
        %v1501 = vld [vmem:[%s474 + $0xa0] sm:$0xff]
        %v1502 = vld [vmem:[%s474 + $0xa8] sm:$0xff]
        %v1503 = vld [vmem:[%s474 + $0xb0] sm:$0xff]
        %v1504 = vld [vmem:[%s474 + $0xb8] sm:$0xff]
        %v1505 = vld [vmem:[%s474 + $0xc0] sm:$0xff]
        %v1506 = vld [vmem:[%s474 + $0xc8] sm:$0xff]
        %v1507 = vld [vmem:[%s474 + $0xd0] sm:$0xff]
        %v1508 = vld [vmem:[%s474 + $0xd8] sm:$0xff]
        %v1509 = vld [vmem:[%s474 + $0xe0] sm:$0xff]
        %v1510 = vld [vmem:[%s474 + $0xe8] sm:$0xff]
        %v1511 = vld [vmem:[%s474 + $0xf0] sm:$0xff]
        %v1512 = vld [vmem:[%s474 + $0xf8] sm:$0xff]
        %v1513 = vld [vmem:[%s478] sm:$0xff]
        %v1514 = vld [vmem:[%s478 + $0x8] sm:$0xff]
        %v1517 = vlaneseq
        %v1518 = vshrl.u32 %v1517, 7
        %v1519 = vsub.s32 0, %v1518
        %v1520 = vrot.slane %v1513, %v1519
        %v1521 = vlaneseq
        %v1522 = vshrl.u32 %v1521, 7
        %v1523 = vsub.s32 1, %v1522
        %v1524 = vrot.slane %v1513, %v1523
        %v1525 = vlaneseq
        %v1526 = vshrl.u32 %v1525, 7
        %v1527 = vsub.s32 2, %v1526
        %v1528 = vrot.slane %v1513, %v1527
        %v1529 = vlaneseq
        %v1530 = vshrl.u32 %v1529, 7
        %v1531 = vsub.s32 3, %v1530
        %v1532 = vrot.slane %v1513, %v1531
        %v1533 = vlaneseq
        %v1534 = vshrl.u32 %v1533, 7
        %v1535 = vsub.s32 4, %v1534
        %v1536 = vrot.slane %v1513, %v1535
        %v1537 = vlaneseq
        %v1538 = vshrl.u32 %v1537, 7
        %v1539 = vsub.s32 5, %v1538
        %v1540 = vrot.slane %v1513, %v1539
        %v1541 = vlaneseq
        %v1542 = vshrl.u32 %v1541, 7
        %v1543 = vsub.s32 6, %v1542
        %v1544 = vrot.slane %v1513, %v1543
        %v1545 = vlaneseq
        %v1546 = vshrl.u32 %v1545, 7
        %v1547 = vsub.s32 7, %v1546
        %v1548 = vrot.slane %v1513, %v1547
        %v1549 = vlaneseq
        %v1550 = vshrl.u32 %v1549, 7
        %v1551 = vsub.s32 0, %v1550
        %v1552 = vrot.slane %v1514, %v1551
        %v1553 = vlaneseq
        %v1554 = vshrl.u32 %v1553, 7
        %v1555 = vsub.s32 1, %v1554
        %v1556 = vrot.slane %v1514, %v1555
        %v1557 = vlaneseq
        %v1558 = vshrl.u32 %v1557, 7
        %v1559 = vsub.s32 2, %v1558
        %v1560 = vrot.slane %v1514, %v1559
        %v1561 = vlaneseq
        %v1562 = vshrl.u32 %v1561, 7
        %v1563 = vsub.s32 3, %v1562
        %v1564 = vrot.slane %v1514, %v1563
        %v1565 = vlaneseq
        %v1566 = vshrl.u32 %v1565, 7
        %v1567 = vsub.s32 4, %v1566
        %v1568 = vrot.slane %v1514, %v1567
        %v1569 = vlaneseq
        %v1570 = vshrl.u32 %v1569, 7
        %v1571 = vsub.s32 5, %v1570
        %v1572 = vrot.slane %v1514, %v1571
        %v1573 = vlaneseq
        %v1574 = vshrl.u32 %v1573, 7
        %v1575 = vsub.s32 6, %v1574
        %v1576 = vrot.slane %v1514, %v1575
        %v1577 = vlaneseq
        %v1578 = vshrl.u32 %v1577, 7
        %v1579 = vsub.s32 7, %v1578
        %v1580 = vrot.slane %v1514, %v1579
        %v1629 = vunpack.c.l.b16 %v1481
        %v1630 = vunpack.c.h.b16 %v1481
        %v1631 = vunpack.c.l.b16 %v1482
        %v1632 = vunpack.c.h.b16 %v1482
        %v1633 = vunpack.c.l.b16 %v1483
        %v1634 = vunpack.c.h.b16 %v1483
        %v1635 = vunpack.c.l.b16 %v1484
        %v1636 = vunpack.c.h.b16 %v1484
        %v1637 = vunpack.c.l.b16 %v1485
        %v1638 = vunpack.c.h.b16 %v1485
        %v1639 = vunpack.c.l.b16 %v1486
        %v1640 = vunpack.c.h.b16 %v1486
        %v1641 = vunpack.c.l.b16 %v1487
        %v1642 = vunpack.c.h.b16 %v1487
        %v1643 = vunpack.c.l.b16 %v1488
        %v1644 = vunpack.c.h.b16 %v1488
        %v1645 = vunpack.c.l.b16 %v1489
        %v1646 = vunpack.c.h.b16 %v1489
        %v1647 = vunpack.c.l.b16 %v1490
        %v1648 = vunpack.c.h.b16 %v1490
        %v1649 = vunpack.c.l.b16 %v1491
        %v1650 = vunpack.c.h.b16 %v1491
        %v1651 = vunpack.c.l.b16 %v1492
        %v1652 = vunpack.c.h.b16 %v1492
        %v1653 = vunpack.c.l.b16 %v1493
        %v1654 = vunpack.c.h.b16 %v1493
        %v1655 = vunpack.c.l.b16 %v1494
        %v1656 = vunpack.c.h.b16 %v1494
        %v1657 = vunpack.c.l.b16 %v1495
        %v1658 = vunpack.c.h.b16 %v1495
        %v1659 = vunpack.c.l.b16 %v1496
        %v1660 = vunpack.c.h.b16 %v1496
        %v1661 = vunpack.c.l.b16 %v1497
        %v1662 = vunpack.c.h.b16 %v1497
        %v1663 = vunpack.c.l.b16 %v1498
        %v1664 = vunpack.c.h.b16 %v1498
        %v1665 = vunpack.c.l.b16 %v1499
        %v1666 = vunpack.c.h.b16 %v1499
        %v1667 = vunpack.c.l.b16 %v1500
        %v1668 = vunpack.c.h.b16 %v1500
        %v1669 = vunpack.c.l.b16 %v1501
        %v1670 = vunpack.c.h.b16 %v1501
        %v1671 = vunpack.c.l.b16 %v1502
        %v1672 = vunpack.c.h.b16 %v1502
        %v1673 = vunpack.c.l.b16 %v1503
        %v1674 = vunpack.c.h.b16 %v1503
        %v1675 = vunpack.c.l.b16 %v1504
        %v1676 = vunpack.c.h.b16 %v1504
        %v1677 = vunpack.c.l.b16 %v1505
        %v1678 = vunpack.c.h.b16 %v1505
        %v1679 = vunpack.c.l.b16 %v1506
        %v1680 = vunpack.c.h.b16 %v1506
        %v1681 = vunpack.c.l.b16 %v1507
        %v1682 = vunpack.c.h.b16 %v1507
        %v1683 = vunpack.c.l.b16 %v1508
        %v1684 = vunpack.c.h.b16 %v1508
        %v1685 = vunpack.c.l.b16 %v1509
        %v1686 = vunpack.c.h.b16 %v1509
        %v1687 = vunpack.c.l.b16 %v1510
        %v1688 = vunpack.c.h.b16 %v1510
        %v1689 = vunpack.c.l.b16 %v1511
        %v1690 = vunpack.c.h.b16 %v1511
        %v1691 = vunpack.c.l.b16 %v1512
        %v1692 = vunpack.c.h.b16 %v1512
        %v1693 = vpack.c.b16 %v1645, %v1629
        %v1694 = vpack.c.b16 %v1646, %v1630
        %v1695 = vpack.c.b16 %v1647, %v1631
        %v1696 = vpack.c.b16 %v1648, %v1632
        %v1697 = vpack.c.b16 %v1649, %v1633
        %v1698 = vpack.c.b16 %v1650, %v1634
        %v1699 = vpack.c.b16 %v1651, %v1635
        %v1700 = vpack.c.b16 %v1652, %v1636
        %v1701 = vpack.c.b16 %v1653, %v1637
        %v1702 = vpack.c.b16 %v1654, %v1638
        %v1703 = vpack.c.b16 %v1655, %v1639
        %v1704 = vpack.c.b16 %v1656, %v1640
        %v1705 = vpack.c.b16 %v1657, %v1641
        %v1706 = vpack.c.b16 %v1658, %v1642
        %v1707 = vpack.c.b16 %v1659, %v1643
        %v1708 = vpack.c.b16 %v1660, %v1644
        %v1709 = vpack.c.b16 %v1677, %v1661
        %v1710 = vpack.c.b16 %v1678, %v1662
        %v1711 = vpack.c.b16 %v1679, %v1663
        %v1712 = vpack.c.b16 %v1680, %v1664
        %v1713 = vpack.c.b16 %v1681, %v1665
        %v1714 = vpack.c.b16 %v1682, %v1666
        %v1715 = vpack.c.b16 %v1683, %v1667
        %v1716 = vpack.c.b16 %v1684, %v1668
        %v1717 = vpack.c.b16 %v1685, %v1669
        %v1718 = vpack.c.b16 %v1686, %v1670
        %v1719 = vpack.c.b16 %v1687, %v1671
        %v1720 = vpack.c.b16 %v1688, %v1672
        %v1721 = vpack.c.b16 %v1689, %v1673
        %v1722 = vpack.c.b16 %v1690, %v1674
        %v1723 = vpack.c.b16 %v1691, %v1675
        %v1724 = vpack.c.b16 %v1692, %v1676
        %v1758 = vsel %vm609, %v1480, 0
        %1760 = vmatprep.subr.bf16.mxu0 0
        %1761 = vmatpush1.bf16.msra.mxu0 0
        %1762 = vmatprep.subr.bf16.mxu0 0
        %1763 = vmatpush1.bf16.msra.mxu0 0
        %1764 = vmatprep.subr.bf16.mxu0 0
        %1765 = vmatpush1.bf16.msra.mxu0 0
        %1766 = vmatprep.subr.bf16.mxu0 0
        %1767 = vmatpush1.bf16.msra.mxu0 0
        %1768 = vmatprep.subr.bf16.mxu0 0
        %1769 = vmatpush1.bf16.msra.mxu0 0
        %1770 = vmatprep.subr.bf16.mxu0 0
        %1771 = vmatpush1.bf16.msra.mxu0 0
        %1772 = vmatprep.subr.bf16.mxu0 %v1710
        %1773 = vmatpush1.bf16.msra.mxu0 %v1709
        %1774 = vmatprep.subr.bf16.mxu0 %v1694
        %1775 = vmatpush1.bf16.msra.mxu0 %v1693
        %1776 = vmatprep.subr.bf16.mxu0 0
        %1777 = vmatpush2.bf16.msra.mxu0 0
        %1778 = vmatprep.subr.bf16.mxu0 0
        %1779 = vmatpush2.bf16.msra.mxu0 0
        %1780 = vmatprep.subr.bf16.mxu0 0
        %1781 = vmatpush2.bf16.msra.mxu0 0
        %1782 = vmatprep.subr.bf16.mxu0 0
        %1783 = vmatpush2.bf16.msra.mxu0 0
        %1784 = vmatprep.subr.bf16.mxu0 0
        %1785 = vmatpush2.bf16.msra.mxu0 0
        %1786 = vmatprep.subr.bf16.mxu0 0
        %1787 = vmatpush2.bf16.msra.mxu0 0
        %1788 = vmatprep.subr.bf16.mxu0 0
        %1789 = vmatpush2.bf16.msra.mxu0 0
        %1790 = vmatprep.subr.bf16.mxu0 0
        %1791 = vmatpush2.bf16.msra.mxu0 0
        %1792 = vmatprep.mubr.bf16.mxu0 0
        %1793 = vmatmul.mubr.bf16.gmra.mxu0 %v1758
        %v1794 = vpop.f32.mrf.mxu0
        %v1795 = vadd.f32 %v1520, %v1794
        %v1796 = vpop.f32.mrf.mxu0
        %v1797 = vadd.f32 %v1524, %v1796
        %v1798 = vpop.f32.mrf.mxu0
        %v1799 = vpop.f32.mrf.mxu0
        %1800 = vdwg.mxu0
        %1801 = vmatprep.subr.bf16.mxu0 0
        %1802 = vmatpush1.bf16.msra.mxu0 0
        %1803 = vmatprep.subr.bf16.mxu0 0
        %1804 = vmatpush1.bf16.msra.mxu0 0
        %1805 = vmatprep.subr.bf16.mxu0 0
        %1806 = vmatpush1.bf16.msra.mxu0 0
        %1807 = vmatprep.subr.bf16.mxu0 0
        %1808 = vmatpush1.bf16.msra.mxu0 0
        %1809 = vmatprep.subr.bf16.mxu0 0
        %1810 = vmatpush1.bf16.msra.mxu0 0
        %1811 = vmatprep.subr.bf16.mxu0 0
        %1812 = vmatpush1.bf16.msra.mxu0 0
        %1813 = vmatprep.subr.bf16.mxu0 %v1712
        %1814 = vmatpush1.bf16.msra.mxu0 %v1711
        %1815 = vmatprep.subr.bf16.mxu0 %v1696
        %1816 = vmatpush1.bf16.msra.mxu0 %v1695
        %1817 = vmatprep.subr.bf16.mxu0 0
        %1818 = vmatpush2.bf16.msra.mxu0 0
        %1819 = vmatprep.subr.bf16.mxu0 0
        %1820 = vmatpush2.bf16.msra.mxu0 0
        %1821 = vmatprep.subr.bf16.mxu0 0
        %1822 = vmatpush2.bf16.msra.mxu0 0
        %1823 = vmatprep.subr.bf16.mxu0 0
        %1824 = vmatpush2.bf16.msra.mxu0 0
        %1825 = vmatprep.subr.bf16.mxu0 0
        %1826 = vmatpush2.bf16.msra.mxu0 0
        %1827 = vmatprep.subr.bf16.mxu0 0
        %1828 = vmatpush2.bf16.msra.mxu0 0
        %1829 = vmatprep.subr.bf16.mxu0 0
        %1830 = vmatpush2.bf16.msra.mxu0 0
        %1831 = vmatprep.subr.bf16.mxu0 0
        %1832 = vmatpush2.bf16.msra.mxu0 0
        %1833 = vmatprep.mubr.bf16.mxu0 0
        %1834 = vmatmul.mubr.bf16.gmra.mxu0 %v1758
        %v1835 = vpop.f32.mrf.mxu0
        %v1836 = vadd.f32 %v1528, %v1835
        %v1837 = vpop.f32.mrf.mxu0
        %v1838 = vadd.f32 %v1532, %v1837
        %v1839 = vpop.f32.mrf.mxu0
        %v1840 = vpop.f32.mrf.mxu0
        %1841 = vdwg.mxu0
        %1842 = vmatprep.subr.bf16.mxu0 0
        %1843 = vmatpush1.bf16.msra.mxu0 0
        %1844 = vmatprep.subr.bf16.mxu0 0
        %1845 = vmatpush1.bf16.msra.mxu0 0
        %1846 = vmatprep.subr.bf16.mxu0 0
        %1847 = vmatpush1.bf16.msra.mxu0 0
        %1848 = vmatprep.subr.bf16.mxu0 0
        %1849 = vmatpush1.bf16.msra.mxu0 0
        %1850 = vmatprep.subr.bf16.mxu0 0
        %1851 = vmatpush1.bf16.msra.mxu0 0
        %1852 = vmatprep.subr.bf16.mxu0 0
        %1853 = vmatpush1.bf16.msra.mxu0 0
        %1854 = vmatprep.subr.bf16.mxu0 %v1714
        %1855 = vmatpush1.bf16.msra.mxu0 %v1713
        %1856 = vmatprep.subr.bf16.mxu0 %v1698
        %1857 = vmatpush1.bf16.msra.mxu0 %v1697
        %1858 = vmatprep.subr.bf16.mxu0 0
        %1859 = vmatpush2.bf16.msra.mxu0 0
        %1860 = vmatprep.subr.bf16.mxu0 0
        %1861 = vmatpush2.bf16.msra.mxu0 0
        %1862 = vmatprep.subr.bf16.mxu0 0
        %1863 = vmatpush2.bf16.msra.mxu0 0
        %1864 = vmatprep.subr.bf16.mxu0 0
        %1865 = vmatpush2.bf16.msra.mxu0 0
        %1866 = vmatprep.subr.bf16.mxu0 0
        %1867 = vmatpush2.bf16.msra.mxu0 0
        %1868 = vmatprep.subr.bf16.mxu0 0
        %1869 = vmatpush2.bf16.msra.mxu0 0
        %1870 = vmatprep.subr.bf16.mxu0 0
        %1871 = vmatpush2.bf16.msra.mxu0 0
        %1872 = vmatprep.subr.bf16.mxu0 0
        %1873 = vmatpush2.bf16.msra.mxu0 0
        %1874 = vmatprep.mubr.bf16.mxu0 0
        %1875 = vmatmul.mubr.bf16.gmra.mxu0 %v1758
        %v1876 = vpop.f32.mrf.mxu0
        %v1877 = vadd.f32 %v1536, %v1876
        %v1878 = vpop.f32.mrf.mxu0
        %v1879 = vadd.f32 %v1540, %v1878
        %v1880 = vpop.f32.mrf.mxu0
        %v1881 = vpop.f32.mrf.mxu0
        %1882 = vdwg.mxu0
        %1883 = vmatprep.subr.bf16.mxu0 0
        %1884 = vmatpush1.bf16.msra.mxu0 0
        %1885 = vmatprep.subr.bf16.mxu0 0
        %1886 = vmatpush1.bf16.msra.mxu0 0
        %1887 = vmatprep.subr.bf16.mxu0 0
        %1888 = vmatpush1.bf16.msra.mxu0 0
        %1889 = vmatprep.subr.bf16.mxu0 0
        %1890 = vmatpush1.bf16.msra.mxu0 0
        %1891 = vmatprep.subr.bf16.mxu0 0
        %1892 = vmatpush1.bf16.msra.mxu0 0
        %1893 = vmatprep.subr.bf16.mxu0 0
        %1894 = vmatpush1.bf16.msra.mxu0 0
        %1895 = vmatprep.subr.bf16.mxu0 %v1716
        %1896 = vmatpush1.bf16.msra.mxu0 %v1715
        %1897 = vmatprep.subr.bf16.mxu0 %v1700
        %1898 = vmatpush1.bf16.msra.mxu0 %v1699
        %1899 = vmatprep.subr.bf16.mxu0 0
        %1900 = vmatpush2.bf16.msra.mxu0 0
        %1901 = vmatprep.subr.bf16.mxu0 0
        %1902 = vmatpush2.bf16.msra.mxu0 0
        %1903 = vmatprep.subr.bf16.mxu0 0
        %1904 = vmatpush2.bf16.msra.mxu0 0
        %1905 = vmatprep.subr.bf16.mxu0 0
        %1906 = vmatpush2.bf16.msra.mxu0 0
        %1907 = vmatprep.subr.bf16.mxu0 0
        %1908 = vmatpush2.bf16.msra.mxu0 0
        %1909 = vmatprep.subr.bf16.mxu0 0
        %1910 = vmatpush2.bf16.msra.mxu0 0
        %1911 = vmatprep.subr.bf16.mxu0 0
        %1912 = vmatpush2.bf16.msra.mxu0 0
        %1913 = vmatprep.subr.bf16.mxu0 0
        %1914 = vmatpush2.bf16.msra.mxu0 0
        %1915 = vmatprep.mubr.bf16.mxu0 0
        %1916 = vmatmul.mubr.bf16.gmra.mxu0 %v1758
        %v1917 = vpop.f32.mrf.mxu0
        %v1918 = vadd.f32 %v1544, %v1917
        %v1919 = vpop.f32.mrf.mxu0
        %v1920 = vadd.f32 %v1548, %v1919
        %v1921 = vpop.f32.mrf.mxu0
        %v1922 = vpop.f32.mrf.mxu0
        %1923 = vdwg.mxu0
        %1924 = vmatprep.subr.bf16.mxu0 0
        %1925 = vmatpush1.bf16.msra.mxu0 0
        %1926 = vmatprep.subr.bf16.mxu0 0
        %1927 = vmatpush1.bf16.msra.mxu0 0
        %1928 = vmatprep.subr.bf16.mxu0 0
        %1929 = vmatpush1.bf16.msra.mxu0 0
        %1930 = vmatprep.subr.bf16.mxu0 0
        %1931 = vmatpush1.bf16.msra.mxu0 0
        %1932 = vmatprep.subr.bf16.mxu0 0
        %1933 = vmatpush1.bf16.msra.mxu0 0
        %1934 = vmatprep.subr.bf16.mxu0 0
        %1935 = vmatpush1.bf16.msra.mxu0 0
        %1936 = vmatprep.subr.bf16.mxu0 %v1718
        %1937 = vmatpush1.bf16.msra.mxu0 %v1717
        %1938 = vmatprep.subr.bf16.mxu0 %v1702
        %1939 = vmatpush1.bf16.msra.mxu0 %v1701
        %1940 = vmatprep.subr.bf16.mxu0 0
        %1941 = vmatpush2.bf16.msra.mxu0 0
        %1942 = vmatprep.subr.bf16.mxu0 0
        %1943 = vmatpush2.bf16.msra.mxu0 0
        %1944 = vmatprep.subr.bf16.mxu0 0
        %1945 = vmatpush2.bf16.msra.mxu0 0
        %1946 = vmatprep.subr.bf16.mxu0 0
        %1947 = vmatpush2.bf16.msra.mxu0 0
        %1948 = vmatprep.subr.bf16.mxu0 0
        %1949 = vmatpush2.bf16.msra.mxu0 0
        %1950 = vmatprep.subr.bf16.mxu0 0
        %1951 = vmatpush2.bf16.msra.mxu0 0
        %1952 = vmatprep.subr.bf16.mxu0 0
        %1953 = vmatpush2.bf16.msra.mxu0 0
        %1954 = vmatprep.subr.bf16.mxu0 0
        %1955 = vmatpush2.bf16.msra.mxu0 0
        %1956 = vmatprep.mubr.bf16.mxu0 0
        %1957 = vmatmul.mubr.bf16.gmra.mxu0 %v1758
        %v1958 = vpop.f32.mrf.mxu0
        %v1959 = vadd.f32 %v1552, %v1958
        %v1960 = vpop.f32.mrf.mxu0
        %v1961 = vadd.f32 %v1556, %v1960
        %v1962 = vpop.f32.mrf.mxu0
        %v1963 = vpop.f32.mrf.mxu0
        %1964 = vdwg.mxu0
        %1965 = vmatprep.subr.bf16.mxu0 0
        %1966 = vmatpush1.bf16.msra.mxu0 0
        %1967 = vmatprep.subr.bf16.mxu0 0
        %1968 = vmatpush1.bf16.msra.mxu0 0
        %1969 = vmatprep.subr.bf16.mxu0 0
        %1970 = vmatpush1.bf16.msra.mxu0 0
        %1971 = vmatprep.subr.bf16.mxu0 0
        %1972 = vmatpush1.bf16.msra.mxu0 0
        %1973 = vmatprep.subr.bf16.mxu0 0
        %1974 = vmatpush1.bf16.msra.mxu0 0
        %1975 = vmatprep.subr.bf16.mxu0 0
        %1976 = vmatpush1.bf16.msra.mxu0 0
        %1977 = vmatprep.subr.bf16.mxu0 %v1720
        %1978 = vmatpush1.bf16.msra.mxu0 %v1719
        %1979 = vmatprep.subr.bf16.mxu0 %v1704
        %1980 = vmatpush1.bf16.msra.mxu0 %v1703
        %1981 = vmatprep.subr.bf16.mxu0 0
        %1982 = vmatpush2.bf16.msra.mxu0 0
        %1983 = vmatprep.subr.bf16.mxu0 0
        %1984 = vmatpush2.bf16.msra.mxu0 0
        %1985 = vmatprep.subr.bf16.mxu0 0
        %1986 = vmatpush2.bf16.msra.mxu0 0
        %1987 = vmatprep.subr.bf16.mxu0 0
        %1988 = vmatpush2.bf16.msra.mxu0 0
        %1989 = vmatprep.subr.bf16.mxu0 0
        %1990 = vmatpush2.bf16.msra.mxu0 0
        %1991 = vmatprep.subr.bf16.mxu0 0
        %1992 = vmatpush2.bf16.msra.mxu0 0
        %1993 = vmatprep.subr.bf16.mxu0 0
        %1994 = vmatpush2.bf16.msra.mxu0 0
        %1995 = vmatprep.subr.bf16.mxu0 0
        %1996 = vmatpush2.bf16.msra.mxu0 0
        %1997 = vmatprep.mubr.bf16.mxu0 0
        %1998 = vmatmul.mubr.bf16.gmra.mxu0 %v1758
        %v1999 = vpop.f32.mrf.mxu0
        %v2000 = vadd.f32 %v1560, %v1999
        %v2001 = vpop.f32.mrf.mxu0
        %v2002 = vadd.f32 %v1564, %v2001
        %v2003 = vpop.f32.mrf.mxu0
        %v2004 = vpop.f32.mrf.mxu0
        %2005 = vdwg.mxu0
        %2006 = vmatprep.subr.bf16.mxu0 0
        %2007 = vmatpush1.bf16.msra.mxu0 0
        %2008 = vmatprep.subr.bf16.mxu0 0
        %2009 = vmatpush1.bf16.msra.mxu0 0
        %2010 = vmatprep.subr.bf16.mxu0 0
        %2011 = vmatpush1.bf16.msra.mxu0 0
        %2012 = vmatprep.subr.bf16.mxu0 0
        %2013 = vmatpush1.bf16.msra.mxu0 0
        %2014 = vmatprep.subr.bf16.mxu0 0
        %2015 = vmatpush1.bf16.msra.mxu0 0
        %2016 = vmatprep.subr.bf16.mxu0 0
        %2017 = vmatpush1.bf16.msra.mxu0 0
        %2018 = vmatprep.subr.bf16.mxu0 %v1722
        %2019 = vmatpush1.bf16.msra.mxu0 %v1721
        %2020 = vmatprep.subr.bf16.mxu0 %v1706
        %2021 = vmatpush1.bf16.msra.mxu0 %v1705
        %2022 = vmatprep.subr.bf16.mxu0 0
        %2023 = vmatpush2.bf16.msra.mxu0 0
        %2024 = vmatprep.subr.bf16.mxu0 0
        %2025 = vmatpush2.bf16.msra.mxu0 0
        %2026 = vmatprep.subr.bf16.mxu0 0
        %2027 = vmatpush2.bf16.msra.mxu0 0
        %2028 = vmatprep.subr.bf16.mxu0 0
        %2029 = vmatpush2.bf16.msra.mxu0 0
        %2030 = vmatprep.subr.bf16.mxu0 0
        %2031 = vmatpush2.bf16.msra.mxu0 0
        %2032 = vmatprep.subr.bf16.mxu0 0
        %2033 = vmatpush2.bf16.msra.mxu0 0
        %2034 = vmatprep.subr.bf16.mxu0 0
        %2035 = vmatpush2.bf16.msra.mxu0 0
        %2036 = vmatprep.subr.bf16.mxu0 0
        %2037 = vmatpush2.bf16.msra.mxu0 0
        %2038 = vmatprep.mubr.bf16.mxu0 0
        %2039 = vmatmul.mubr.bf16.gmra.mxu0 %v1758
        %v2040 = vpop.f32.mrf.mxu0
        %v2041 = vadd.f32 %v1568, %v2040
        %v2042 = vpop.f32.mrf.mxu0
        %v2043 = vadd.f32 %v1572, %v2042
        %v2044 = vpop.f32.mrf.mxu0
        %v2045 = vpop.f32.mrf.mxu0
        %2046 = vdwg.mxu0
        %2047 = vmatprep.subr.bf16.mxu0 0
        %2048 = vmatpush1.bf16.msra.mxu0 0
        %2049 = vmatprep.subr.bf16.mxu0 0
        %2050 = vmatpush1.bf16.msra.mxu0 0
        %2051 = vmatprep.subr.bf16.mxu0 0
        %2052 = vmatpush1.bf16.msra.mxu0 0
        %2053 = vmatprep.subr.bf16.mxu0 0
        %2054 = vmatpush1.bf16.msra.mxu0 0
        %2055 = vmatprep.subr.bf16.mxu0 0
        %2056 = vmatpush1.bf16.msra.mxu0 0
        %2057 = vmatprep.subr.bf16.mxu0 0
        %2058 = vmatpush1.bf16.msra.mxu0 0
        %2059 = vmatprep.subr.bf16.mxu0 %v1724
        %2060 = vmatpush1.bf16.msra.mxu0 %v1723
        %2061 = vmatprep.subr.bf16.mxu0 %v1708
        %2062 = vmatpush1.bf16.msra.mxu0 %v1707
        %2063 = vmatprep.subr.bf16.mxu0 0
        %2064 = vmatpush2.bf16.msra.mxu0 0
        %2065 = vmatprep.subr.bf16.mxu0 0
        %2066 = vmatpush2.bf16.msra.mxu0 0
        %2067 = vmatprep.subr.bf16.mxu0 0
        %2068 = vmatpush2.bf16.msra.mxu0 0
        %2069 = vmatprep.subr.bf16.mxu0 0
        %2070 = vmatpush2.bf16.msra.mxu0 0
        %2071 = vmatprep.subr.bf16.mxu0 0
        %2072 = vmatpush2.bf16.msra.mxu0 0
        %2073 = vmatprep.subr.bf16.mxu0 0
        %2074 = vmatpush2.bf16.msra.mxu0 0
        %2075 = vmatprep.subr.bf16.mxu0 0
        %2076 = vmatpush2.bf16.msra.mxu0 0
        %2077 = vmatprep.subr.bf16.mxu0 0
        %2078 = vmatpush2.bf16.msra.mxu0 0
        %2079 = vmatprep.mubr.bf16.mxu0 0
        %2080 = vmatmul.mubr.bf16.gmra.mxu0 %v1758
        %v2081 = vpop.f32.mrf.mxu0
        %v2082 = vadd.f32 %v1576, %v2081
        %v2083 = vpop.f32.mrf.mxu0
        %v2084 = vadd.f32 %v1580, %v2083
        %v2085 = vpop.f32.mrf.mxu0
        %v2086 = vpop.f32.mrf.mxu0
        %2087 = vdwg.mxu0
        %v2088 = vmax.f32 %v1795, 0.0
        %v2089 = vmax.f32 %v1797, 0.0
        %v2090 = vmax.f32 %v1836, 0.0
        %v2091 = vmax.f32 %v1838, 0.0
        %v2092 = vmax.f32 %v1877, 0.0
        %v2093 = vmax.f32 %v1879, 0.0
        %v2094 = vmax.f32 %v1918, 0.0
        %v2095 = vmax.f32 %v1920, 0.0
        %v2096 = vmax.f32 %v1959, 0.0
        %v2097 = vmax.f32 %v1961, 0.0
        %v2098 = vmax.f32 %v2000, 0.0
        %v2099 = vmax.f32 %v2002, 0.0
        %v2100 = vmax.f32 %v2041, 0.0
        %v2101 = vmax.f32 %v2043, 0.0
        %v2102 = vmax.f32 %v2082, 0.0
        %v2103 = vmax.f32 %v2084, 0.0
        %v2104 = vpack.c.bf16 %v2088, %v2088
        %v2105 = vpack.c.bf16 %v2089, %v2089
        %v2106 = vpack.c.bf16 %v2090, %v2090
        %v2107 = vpack.c.bf16 %v2091, %v2091
        %v2108 = vpack.c.bf16 %v2092, %v2092
        %v2109 = vpack.c.bf16 %v2093, %v2093
        %v2110 = vpack.c.bf16 %v2094, %v2094
        %v2111 = vpack.c.bf16 %v2095, %v2095
        %v2112 = vpack.c.bf16 %v2096, %v2096
        %v2113 = vpack.c.bf16 %v2097, %v2097
        %v2114 = vpack.c.bf16 %v2098, %v2098
        %v2115 = vpack.c.bf16 %v2099, %v2099
        %v2116 = vpack.c.bf16 %v2100, %v2100
        %v2117 = vpack.c.bf16 %v2101, %v2101
        %v2118 = vpack.c.bf16 %v2102, %v2102
        %v2119 = vpack.c.bf16 %v2103, %v2103
        %v2120 = vld [vmem:[%s483] sm:$0xf]
        %v2121 = vld [vmem:[%s483 + $0x4] sm:$0xf]
        %v2122 = vld [vmem:[%s483 + $0x8] sm:$0xf]
        %v2123 = vld [vmem:[%s483 + $0xc] sm:$0xf]
        %v2124 = vld [vmem:[%s483 + $0x10] sm:$0xf]
        %v2125 = vld [vmem:[%s483 + $0x14] sm:$0xf]
        %v2126 = vld [vmem:[%s483 + $0x18] sm:$0xf]
        %v2127 = vld [vmem:[%s483 + $0x1c] sm:$0xf]
        %v2128 = vld [vmem:[%s483 + $0x20] sm:$0xf]
        %v2129 = vld [vmem:[%s483 + $0x24] sm:$0xf]
        %v2130 = vld [vmem:[%s483 + $0x28] sm:$0xf]
        %v2131 = vld [vmem:[%s483 + $0x2c] sm:$0xf]
        %v2132 = vld [vmem:[%s483 + $0x30] sm:$0xf]
        %v2133 = vld [vmem:[%s483 + $0x34] sm:$0xf]
        %v2134 = vld [vmem:[%s483 + $0x38] sm:$0xf]
        %v2135 = vld [vmem:[%s483 + $0x3c] sm:$0xf]
        %v2136 = vld [vmem:[%s483 + $0x40] sm:$0xf]
        %v2137 = vld [vmem:[%s483 + $0x44] sm:$0xf]
        %v2138 = vld [vmem:[%s483 + $0x48] sm:$0xf]
        %v2139 = vld [vmem:[%s483 + $0x4c] sm:$0xf]
        %v2140 = vld [vmem:[%s483 + $0x50] sm:$0xf]
        %v2141 = vld [vmem:[%s483 + $0x54] sm:$0xf]
        %v2142 = vld [vmem:[%s483 + $0x58] sm:$0xf]
        %v2143 = vld [vmem:[%s483 + $0x5c] sm:$0xf]
        %v2144 = vld [vmem:[%s483 + $0x60] sm:$0xf]
        %v2145 = vld [vmem:[%s483 + $0x64] sm:$0xf]
        %v2146 = vld [vmem:[%s483 + $0x68] sm:$0xf]
        %v2147 = vld [vmem:[%s483 + $0x6c] sm:$0xf]
        %v2148 = vld [vmem:[%s483 + $0x70] sm:$0xf]
        %v2149 = vld [vmem:[%s483 + $0x74] sm:$0xf]
        %v2150 = vld [vmem:[%s483 + $0x78] sm:$0xf]
        %v2151 = vld [vmem:[%s483 + $0x7c] sm:$0xf]
        %v2152 = vld [vmem:[%s483 + $0x80] sm:$0xf]
        %v2153 = vld [vmem:[%s483 + $0x84] sm:$0xf]
        %v2154 = vld [vmem:[%s483 + $0x88] sm:$0xf]
        %v2155 = vld [vmem:[%s483 + $0x8c] sm:$0xf]
        %v2156 = vld [vmem:[%s483 + $0x90] sm:$0xf]
        %v2157 = vld [vmem:[%s483 + $0x94] sm:$0xf]
        %v2158 = vld [vmem:[%s483 + $0x98] sm:$0xf]
        %v2159 = vld [vmem:[%s483 + $0x9c] sm:$0xf]
        %v2160 = vld [vmem:[%s483 + $0xa0] sm:$0xf]
        %v2161 = vld [vmem:[%s483 + $0xa4] sm:$0xf]
        %v2162 = vld [vmem:[%s483 + $0xa8] sm:$0xf]
        %v2163 = vld [vmem:[%s483 + $0xac] sm:$0xf]
        %v2164 = vld [vmem:[%s483 + $0xb0] sm:$0xf]
        %v2165 = vld [vmem:[%s483 + $0xb4] sm:$0xf]
        %v2166 = vld [vmem:[%s483 + $0xb8] sm:$0xf]
        %v2167 = vld [vmem:[%s483 + $0xbc] sm:$0xf]
        %v2168 = vld [vmem:[%s483 + $0xc0] sm:$0xf]
        %v2169 = vld [vmem:[%s483 + $0xc4] sm:$0xf]
        %v2170 = vld [vmem:[%s483 + $0xc8] sm:$0xf]
        %v2171 = vld [vmem:[%s483 + $0xcc] sm:$0xf]
        %v2172 = vld [vmem:[%s483 + $0xd0] sm:$0xf]
        %v2173 = vld [vmem:[%s483 + $0xd4] sm:$0xf]
        %v2174 = vld [vmem:[%s483 + $0xd8] sm:$0xf]
        %v2175 = vld [vmem:[%s483 + $0xdc] sm:$0xf]
        %v2176 = vld [vmem:[%s483 + $0xe0] sm:$0xf]
        %v2177 = vld [vmem:[%s483 + $0xe4] sm:$0xf]
        %v2178 = vld [vmem:[%s483 + $0xe8] sm:$0xf]
        %v2179 = vld [vmem:[%s483 + $0xec] sm:$0xf]
        %v2180 = vld [vmem:[%s483 + $0xf0] sm:$0xf]
        %v2181 = vld [vmem:[%s483 + $0xf4] sm:$0xf]
        %v2182 = vld [vmem:[%s483 + $0xf8] sm:$0xf]
        %v2183 = vld [vmem:[%s483 + $0xfc] sm:$0xf]
        %v2184 = vld [vmem:[%s483 + $0x100] sm:$0xf]
        %v2185 = vld [vmem:[%s483 + $0x104] sm:$0xf]
        %v2186 = vld [vmem:[%s483 + $0x108] sm:$0xf]
        %v2187 = vld [vmem:[%s483 + $0x10c] sm:$0xf]
        %v2188 = vld [vmem:[%s483 + $0x110] sm:$0xf]
        %v2189 = vld [vmem:[%s483 + $0x114] sm:$0xf]
        %v2190 = vld [vmem:[%s483 + $0x118] sm:$0xf]
        %v2191 = vld [vmem:[%s483 + $0x11c] sm:$0xf]
        %v2192 = vld [vmem:[%s483 + $0x120] sm:$0xf]
        %v2193 = vld [vmem:[%s483 + $0x124] sm:$0xf]
        %v2194 = vld [vmem:[%s483 + $0x128] sm:$0xf]
        %v2195 = vld [vmem:[%s483 + $0x12c] sm:$0xf]
        %v2196 = vld [vmem:[%s483 + $0x130] sm:$0xf]
        %v2197 = vld [vmem:[%s483 + $0x134] sm:$0xf]
        %v2198 = vld [vmem:[%s483 + $0x138] sm:$0xf]
        %v2199 = vld [vmem:[%s483 + $0x13c] sm:$0xf]
        %v2200 = vld [vmem:[%s483 + $0x140] sm:$0xf]
        %v2201 = vld [vmem:[%s483 + $0x144] sm:$0xf]
        %v2202 = vld [vmem:[%s483 + $0x148] sm:$0xf]
        %v2203 = vld [vmem:[%s483 + $0x14c] sm:$0xf]
        %v2204 = vld [vmem:[%s483 + $0x150] sm:$0xf]
        %v2205 = vld [vmem:[%s483 + $0x154] sm:$0xf]
        %v2206 = vld [vmem:[%s483 + $0x158] sm:$0xf]
        %v2207 = vld [vmem:[%s483 + $0x15c] sm:$0xf]
        %v2208 = vld [vmem:[%s483 + $0x160] sm:$0xf]
        %v2209 = vld [vmem:[%s483 + $0x164] sm:$0xf]
        %v2210 = vld [vmem:[%s483 + $0x168] sm:$0xf]
        %v2211 = vld [vmem:[%s483 + $0x16c] sm:$0xf]
        %v2212 = vld [vmem:[%s483 + $0x170] sm:$0xf]
        %v2213 = vld [vmem:[%s483 + $0x174] sm:$0xf]
        %v2214 = vld [vmem:[%s483 + $0x178] sm:$0xf]
        %v2215 = vld [vmem:[%s483 + $0x17c] sm:$0xf]
        %v2216 = vld [vmem:[%s483 + $0x180] sm:$0xf]
        %v2217 = vld [vmem:[%s483 + $0x184] sm:$0xf]
        %v2218 = vld [vmem:[%s483 + $0x188] sm:$0xf]
        %v2219 = vld [vmem:[%s483 + $0x18c] sm:$0xf]
        %v2220 = vld [vmem:[%s483 + $0x190] sm:$0xf]
        %v2221 = vld [vmem:[%s483 + $0x194] sm:$0xf]
        %v2222 = vld [vmem:[%s483 + $0x198] sm:$0xf]
        %v2223 = vld [vmem:[%s483 + $0x19c] sm:$0xf]
        %v2224 = vld [vmem:[%s483 + $0x1a0] sm:$0xf]
        %v2225 = vld [vmem:[%s483 + $0x1a4] sm:$0xf]
        %v2226 = vld [vmem:[%s483 + $0x1a8] sm:$0xf]
        %v2227 = vld [vmem:[%s483 + $0x1ac] sm:$0xf]
        %v2228 = vld [vmem:[%s483 + $0x1b0] sm:$0xf]
        %v2229 = vld [vmem:[%s483 + $0x1b4] sm:$0xf]
        %v2230 = vld [vmem:[%s483 + $0x1b8] sm:$0xf]
        %v2231 = vld [vmem:[%s483 + $0x1bc] sm:$0xf]
        %v2232 = vld [vmem:[%s483 + $0x1c0] sm:$0xf]
        %v2233 = vld [vmem:[%s483 + $0x1c4] sm:$0xf]
        %v2234 = vld [vmem:[%s483 + $0x1c8] sm:$0xf]
        %v2235 = vld [vmem:[%s483 + $0x1cc] sm:$0xf]
        %v2236 = vld [vmem:[%s483 + $0x1d0] sm:$0xf]
        %v2237 = vld [vmem:[%s483 + $0x1d4] sm:$0xf]
        %v2238 = vld [vmem:[%s483 + $0x1d8] sm:$0xf]
        %v2239 = vld [vmem:[%s483 + $0x1dc] sm:$0xf]
        %v2240 = vld [vmem:[%s483 + $0x1e0] sm:$0xf]
        %v2241 = vld [vmem:[%s483 + $0x1e4] sm:$0xf]
        %v2242 = vld [vmem:[%s483 + $0x1e8] sm:$0xf]
        %v2243 = vld [vmem:[%s483 + $0x1ec] sm:$0xf]
        %v2244 = vld [vmem:[%s483 + $0x1f0] sm:$0xf]
        %v2245 = vld [vmem:[%s483 + $0x1f4] sm:$0xf]
        %v2246 = vld [vmem:[%s483 + $0x1f8] sm:$0xf]
        %v2247 = vld [vmem:[%s483 + $0x1fc] sm:$0xf]
        %v2248 = vld [vmem:[%s483 + $0x200] sm:$0xf]
        %v2249 = vld [vmem:[%s483 + $0x204] sm:$0xf]
        %v2250 = vld [vmem:[%s483 + $0x208] sm:$0xf]
        %v2251 = vld [vmem:[%s483 + $0x20c] sm:$0xf]
        %v2252 = vld [vmem:[%s483 + $0x210] sm:$0xf]
        %v2253 = vld [vmem:[%s483 + $0x214] sm:$0xf]
        %v2254 = vld [vmem:[%s483 + $0x218] sm:$0xf]
        %v2255 = vld [vmem:[%s483 + $0x21c] sm:$0xf]
        %v2256 = vld [vmem:[%s483 + $0x220] sm:$0xf]
        %v2257 = vld [vmem:[%s483 + $0x224] sm:$0xf]
        %v2258 = vld [vmem:[%s483 + $0x228] sm:$0xf]
        %v2259 = vld [vmem:[%s483 + $0x22c] sm:$0xf]
        %v2260 = vld [vmem:[%s483 + $0x230] sm:$0xf]
        %v2261 = vld [vmem:[%s483 + $0x234] sm:$0xf]
        %v2262 = vld [vmem:[%s483 + $0x238] sm:$0xf]
        %v2263 = vld [vmem:[%s483 + $0x23c] sm:$0xf]
        %v2264 = vld [vmem:[%s483 + $0x240] sm:$0xf]
        %v2265 = vld [vmem:[%s483 + $0x244] sm:$0xf]
        %v2266 = vld [vmem:[%s483 + $0x248] sm:$0xf]
        %v2267 = vld [vmem:[%s483 + $0x24c] sm:$0xf]
        %v2268 = vld [vmem:[%s483 + $0x250] sm:$0xf]
        %v2269 = vld [vmem:[%s483 + $0x254] sm:$0xf]
        %v2270 = vld [vmem:[%s483 + $0x258] sm:$0xf]
        %v2271 = vld [vmem:[%s483 + $0x25c] sm:$0xf]
        %v2272 = vld [vmem:[%s483 + $0x260] sm:$0xf]
        %v2273 = vld [vmem:[%s483 + $0x264] sm:$0xf]
        %v2274 = vld [vmem:[%s483 + $0x268] sm:$0xf]
        %v2275 = vld [vmem:[%s483 + $0x26c] sm:$0xf]
        %v2276 = vld [vmem:[%s483 + $0x270] sm:$0xf]
        %v2277 = vld [vmem:[%s483 + $0x274] sm:$0xf]
        %v2278 = vld [vmem:[%s483 + $0x278] sm:$0xf]
        %v2279 = vld [vmem:[%s483 + $0x27c] sm:$0xf]
        %v2280 = vld [vmem:[%s483 + $0x280] sm:$0xf]
        %v2281 = vld [vmem:[%s483 + $0x284] sm:$0xf]
        %v2282 = vld [vmem:[%s483 + $0x288] sm:$0xf]
        %v2283 = vld [vmem:[%s483 + $0x28c] sm:$0xf]
        %v2284 = vld [vmem:[%s483 + $0x290] sm:$0xf]
        %v2285 = vld [vmem:[%s483 + $0x294] sm:$0xf]
        %v2286 = vld [vmem:[%s483 + $0x298] sm:$0xf]
        %v2287 = vld [vmem:[%s483 + $0x29c] sm:$0xf]
        %v2288 = vld [vmem:[%s483 + $0x2a0] sm:$0xf]
        %v2289 = vld [vmem:[%s483 + $0x2a4] sm:$0xf]
        %v2290 = vld [vmem:[%s483 + $0x2a8] sm:$0xf]
        %v2291 = vld [vmem:[%s483 + $0x2ac] sm:$0xf]
        %v2292 = vld [vmem:[%s483 + $0x2b0] sm:$0xf]
        %v2293 = vld [vmem:[%s483 + $0x2b4] sm:$0xf]
        %v2294 = vld [vmem:[%s483 + $0x2b8] sm:$0xf]
        %v2295 = vld [vmem:[%s483 + $0x2bc] sm:$0xf]
        %v2296 = vld [vmem:[%s483 + $0x2c0] sm:$0xf]
        %v2297 = vld [vmem:[%s483 + $0x2c4] sm:$0xf]
        %v2298 = vld [vmem:[%s483 + $0x2c8] sm:$0xf]
        %v2299 = vld [vmem:[%s483 + $0x2cc] sm:$0xf]
        %v2300 = vld [vmem:[%s483 + $0x2d0] sm:$0xf]
        %v2301 = vld [vmem:[%s483 + $0x2d4] sm:$0xf]
        %v2302 = vld [vmem:[%s483 + $0x2d8] sm:$0xf]
        %v2303 = vld [vmem:[%s483 + $0x2dc] sm:$0xf]
        %v2304 = vld [vmem:[%s483 + $0x2e0] sm:$0xf]
        %v2305 = vld [vmem:[%s483 + $0x2e4] sm:$0xf]
        %v2306 = vld [vmem:[%s483 + $0x2e8] sm:$0xf]
        %v2307 = vld [vmem:[%s483 + $0x2ec] sm:$0xf]
        %v2308 = vld [vmem:[%s483 + $0x2f0] sm:$0xf]
        %v2309 = vld [vmem:[%s483 + $0x2f4] sm:$0xf]
        %v2310 = vld [vmem:[%s483 + $0x2f8] sm:$0xf]
        %v2311 = vld [vmem:[%s483 + $0x2fc] sm:$0xf]
        %v2312 = vld [vmem:[%s483 + $0x300] sm:$0xf]
        %v2313 = vld [vmem:[%s483 + $0x304] sm:$0xf]
        %v2314 = vld [vmem:[%s483 + $0x308] sm:$0xf]
        %v2315 = vld [vmem:[%s483 + $0x30c] sm:$0xf]
        %v2316 = vld [vmem:[%s483 + $0x310] sm:$0xf]
        %v2317 = vld [vmem:[%s483 + $0x314] sm:$0xf]
        %v2318 = vld [vmem:[%s483 + $0x318] sm:$0xf]
        %v2319 = vld [vmem:[%s483 + $0x31c] sm:$0xf]
        %v2320 = vld [vmem:[%s483 + $0x320] sm:$0xf]
        %v2321 = vld [vmem:[%s483 + $0x324] sm:$0xf]
        %v2322 = vld [vmem:[%s483 + $0x328] sm:$0xf]
        %v2323 = vld [vmem:[%s483 + $0x32c] sm:$0xf]
        %v2324 = vld [vmem:[%s483 + $0x330] sm:$0xf]
        %v2325 = vld [vmem:[%s483 + $0x334] sm:$0xf]
        %v2326 = vld [vmem:[%s483 + $0x338] sm:$0xf]
        %v2327 = vld [vmem:[%s483 + $0x33c] sm:$0xf]
        %v2328 = vld [vmem:[%s483 + $0x340] sm:$0xf]
        %v2329 = vld [vmem:[%s483 + $0x344] sm:$0xf]
        %v2330 = vld [vmem:[%s483 + $0x348] sm:$0xf]
        %v2331 = vld [vmem:[%s483 + $0x34c] sm:$0xf]
        %v2332 = vld [vmem:[%s483 + $0x350] sm:$0xf]
        %v2333 = vld [vmem:[%s483 + $0x354] sm:$0xf]
        %v2334 = vld [vmem:[%s483 + $0x358] sm:$0xf]
        %v2335 = vld [vmem:[%s483 + $0x35c] sm:$0xf]
        %v2336 = vld [vmem:[%s483 + $0x360] sm:$0xf]
        %v2337 = vld [vmem:[%s483 + $0x364] sm:$0xf]
        %v2338 = vld [vmem:[%s483 + $0x368] sm:$0xf]
        %v2339 = vld [vmem:[%s483 + $0x36c] sm:$0xf]
        %v2340 = vld [vmem:[%s483 + $0x370] sm:$0xf]
        %v2341 = vld [vmem:[%s483 + $0x374] sm:$0xf]
        %v2342 = vld [vmem:[%s483 + $0x378] sm:$0xf]
        %v2343 = vld [vmem:[%s483 + $0x37c] sm:$0xf]
        %v2344 = vld [vmem:[%s483 + $0x380] sm:$0xf]
        %v2345 = vld [vmem:[%s483 + $0x384] sm:$0xf]
        %v2346 = vld [vmem:[%s483 + $0x388] sm:$0xf]
        %v2347 = vld [vmem:[%s483 + $0x38c] sm:$0xf]
        %v2348 = vld [vmem:[%s483 + $0x390] sm:$0xf]
        %v2349 = vld [vmem:[%s483 + $0x394] sm:$0xf]
        %v2350 = vld [vmem:[%s483 + $0x398] sm:$0xf]
        %v2351 = vld [vmem:[%s483 + $0x39c] sm:$0xf]
        %v2352 = vld [vmem:[%s483 + $0x3a0] sm:$0xf]
        %v2353 = vld [vmem:[%s483 + $0x3a4] sm:$0xf]
        %v2354 = vld [vmem:[%s483 + $0x3a8] sm:$0xf]
        %v2355 = vld [vmem:[%s483 + $0x3ac] sm:$0xf]
        %v2356 = vld [vmem:[%s483 + $0x3b0] sm:$0xf]
        %v2357 = vld [vmem:[%s483 + $0x3b4] sm:$0xf]
        %v2358 = vld [vmem:[%s483 + $0x3b8] sm:$0xf]
        %v2359 = vld [vmem:[%s483 + $0x3bc] sm:$0xf]
        %v2360 = vld [vmem:[%s483 + $0x3c0] sm:$0xf]
        %v2361 = vld [vmem:[%s483 + $0x3c4] sm:$0xf]
        %v2362 = vld [vmem:[%s483 + $0x3c8] sm:$0xf]
        %v2363 = vld [vmem:[%s483 + $0x3cc] sm:$0xf]
        %v2364 = vld [vmem:[%s483 + $0x3d0] sm:$0xf]
        %v2365 = vld [vmem:[%s483 + $0x3d4] sm:$0xf]
        %v2366 = vld [vmem:[%s483 + $0x3d8] sm:$0xf]
        %v2367 = vld [vmem:[%s483 + $0x3dc] sm:$0xf]
        %v2368 = vld [vmem:[%s483 + $0x3e0] sm:$0xf]
        %v2369 = vld [vmem:[%s483 + $0x3e4] sm:$0xf]
        %v2370 = vld [vmem:[%s483 + $0x3e8] sm:$0xf]
        %v2371 = vld [vmem:[%s483 + $0x3ec] sm:$0xf]
        %v2372 = vld [vmem:[%s483 + $0x3f0] sm:$0xf]
        %v2373 = vld [vmem:[%s483 + $0x3f4] sm:$0xf]
        %v2374 = vld [vmem:[%s483 + $0x3f8] sm:$0xf]
        %v2375 = vld [vmem:[%s483 + $0x3fc] sm:$0xf]
        %v2376 = vlaneseq
        %v2377 = vshrl.u32 %v2376, 7
        %v2378 = vsub.s32 3, %v2377
        %v2379 = vrot.slane %v551, %v2378
        %v2636 = vunpack.c.l.b16 %v2120
        %v2637 = vunpack.c.l.b16 %v2121
        %v2638 = vunpack.c.l.b16 %v2122
        %v2639 = vunpack.c.l.b16 %v2123
        %v2640 = vunpack.c.l.b16 %v2124
        %v2641 = vunpack.c.l.b16 %v2125
        %v2642 = vunpack.c.l.b16 %v2126
        %v2643 = vunpack.c.l.b16 %v2127
        %v2644 = vunpack.c.l.b16 %v2128
        %v2645 = vunpack.c.l.b16 %v2129
        %v2646 = vunpack.c.l.b16 %v2130
        %v2647 = vunpack.c.l.b16 %v2131
        %v2648 = vunpack.c.l.b16 %v2132
        %v2649 = vunpack.c.l.b16 %v2133
        %v2650 = vunpack.c.l.b16 %v2134
        %v2651 = vunpack.c.l.b16 %v2135
        %v2652 = vunpack.c.l.b16 %v2136
        %v2653 = vunpack.c.l.b16 %v2137
        %v2654 = vunpack.c.l.b16 %v2138
        %v2655 = vunpack.c.l.b16 %v2139
        %v2656 = vunpack.c.l.b16 %v2140
        %v2657 = vunpack.c.l.b16 %v2141
        %v2658 = vunpack.c.l.b16 %v2142
        %v2659 = vunpack.c.l.b16 %v2143
        %v2660 = vunpack.c.l.b16 %v2144
        %v2661 = vunpack.c.l.b16 %v2145
        %v2662 = vunpack.c.l.b16 %v2146
        %v2663 = vunpack.c.l.b16 %v2147
        %v2664 = vunpack.c.l.b16 %v2148
        %v2665 = vunpack.c.l.b16 %v2149
        %v2666 = vunpack.c.l.b16 %v2150
        %v2667 = vunpack.c.l.b16 %v2151
        %v2668 = vunpack.c.l.b16 %v2152
        %v2669 = vunpack.c.l.b16 %v2153
        %v2670 = vunpack.c.l.b16 %v2154
        %v2671 = vunpack.c.l.b16 %v2155
        %v2672 = vunpack.c.l.b16 %v2156
        %v2673 = vunpack.c.l.b16 %v2157
        %v2674 = vunpack.c.l.b16 %v2158
        %v2675 = vunpack.c.l.b16 %v2159
        %v2676 = vunpack.c.l.b16 %v2160
        %v2677 = vunpack.c.l.b16 %v2161
        %v2678 = vunpack.c.l.b16 %v2162
        %v2679 = vunpack.c.l.b16 %v2163
        %v2680 = vunpack.c.l.b16 %v2164
        %v2681 = vunpack.c.l.b16 %v2165
        %v2682 = vunpack.c.l.b16 %v2166
        %v2683 = vunpack.c.l.b16 %v2167
        %v2684 = vunpack.c.l.b16 %v2168
        %v2685 = vunpack.c.l.b16 %v2169
        %v2686 = vunpack.c.l.b16 %v2170
        %v2687 = vunpack.c.l.b16 %v2171
        %v2688 = vunpack.c.l.b16 %v2172
        %v2689 = vunpack.c.l.b16 %v2173
        %v2690 = vunpack.c.l.b16 %v2174
        %v2691 = vunpack.c.l.b16 %v2175
        %v2692 = vunpack.c.l.b16 %v2176
        %v2693 = vunpack.c.l.b16 %v2177
        %v2694 = vunpack.c.l.b16 %v2178
        %v2695 = vunpack.c.l.b16 %v2179
        %v2696 = vunpack.c.l.b16 %v2180
        %v2697 = vunpack.c.l.b16 %v2181
        %v2698 = vunpack.c.l.b16 %v2182
        %v2699 = vunpack.c.l.b16 %v2183
        %v2700 = vunpack.c.l.b16 %v2184
        %v2701 = vunpack.c.l.b16 %v2185
        %v2702 = vunpack.c.l.b16 %v2186
        %v2703 = vunpack.c.l.b16 %v2187
        %v2704 = vunpack.c.l.b16 %v2188
        %v2705 = vunpack.c.l.b16 %v2189
        %v2706 = vunpack.c.l.b16 %v2190
        %v2707 = vunpack.c.l.b16 %v2191
        %v2708 = vunpack.c.l.b16 %v2192
        %v2709 = vunpack.c.l.b16 %v2193
        %v2710 = vunpack.c.l.b16 %v2194
        %v2711 = vunpack.c.l.b16 %v2195
        %v2712 = vunpack.c.l.b16 %v2196
        %v2713 = vunpack.c.l.b16 %v2197
        %v2714 = vunpack.c.l.b16 %v2198
        %v2715 = vunpack.c.l.b16 %v2199
        %v2716 = vunpack.c.l.b16 %v2200
        %v2717 = vunpack.c.l.b16 %v2201
        %v2718 = vunpack.c.l.b16 %v2202
        %v2719 = vunpack.c.l.b16 %v2203
        %v2720 = vunpack.c.l.b16 %v2204
        %v2721 = vunpack.c.l.b16 %v2205
        %v2722 = vunpack.c.l.b16 %v2206
        %v2723 = vunpack.c.l.b16 %v2207
        %v2724 = vunpack.c.l.b16 %v2208
        %v2725 = vunpack.c.l.b16 %v2209
        %v2726 = vunpack.c.l.b16 %v2210
        %v2727 = vunpack.c.l.b16 %v2211
        %v2728 = vunpack.c.l.b16 %v2212
        %v2729 = vunpack.c.l.b16 %v2213
        %v2730 = vunpack.c.l.b16 %v2214
        %v2731 = vunpack.c.l.b16 %v2215
        %v2732 = vunpack.c.l.b16 %v2216
        %v2733 = vunpack.c.l.b16 %v2217
        %v2734 = vunpack.c.l.b16 %v2218
        %v2735 = vunpack.c.l.b16 %v2219
        %v2736 = vunpack.c.l.b16 %v2220
        %v2737 = vunpack.c.l.b16 %v2221
        %v2738 = vunpack.c.l.b16 %v2222
        %v2739 = vunpack.c.l.b16 %v2223
        %v2740 = vunpack.c.l.b16 %v2224
        %v2741 = vunpack.c.l.b16 %v2225
        %v2742 = vunpack.c.l.b16 %v2226
        %v2743 = vunpack.c.l.b16 %v2227
        %v2744 = vunpack.c.l.b16 %v2228
        %v2745 = vunpack.c.l.b16 %v2229
        %v2746 = vunpack.c.l.b16 %v2230
        %v2747 = vunpack.c.l.b16 %v2231
        %v2748 = vunpack.c.l.b16 %v2232
        %v2749 = vunpack.c.l.b16 %v2233
        %v2750 = vunpack.c.l.b16 %v2234
        %v2751 = vunpack.c.l.b16 %v2235
        %v2752 = vunpack.c.l.b16 %v2236
        %v2753 = vunpack.c.l.b16 %v2237
        %v2754 = vunpack.c.l.b16 %v2238
        %v2755 = vunpack.c.l.b16 %v2239
        %v2756 = vunpack.c.l.b16 %v2240
        %v2757 = vunpack.c.l.b16 %v2241
        %v2758 = vunpack.c.l.b16 %v2242
        %v2759 = vunpack.c.l.b16 %v2243
        %v2760 = vunpack.c.l.b16 %v2244
        %v2761 = vunpack.c.l.b16 %v2245
        %v2762 = vunpack.c.l.b16 %v2246
        %v2763 = vunpack.c.l.b16 %v2247
        %v2764 = vunpack.c.l.b16 %v2248
        %v2765 = vunpack.c.l.b16 %v2249
        %v2766 = vunpack.c.l.b16 %v2250
        %v2767 = vunpack.c.l.b16 %v2251
        %v2768 = vunpack.c.l.b16 %v2252
        %v2769 = vunpack.c.l.b16 %v2253
        %v2770 = vunpack.c.l.b16 %v2254
        %v2771 = vunpack.c.l.b16 %v2255
        %v2772 = vunpack.c.l.b16 %v2256
        %v2773 = vunpack.c.l.b16 %v2257
        %v2774 = vunpack.c.l.b16 %v2258
        %v2775 = vunpack.c.l.b16 %v2259
        %v2776 = vunpack.c.l.b16 %v2260
        %v2777 = vunpack.c.l.b16 %v2261
        %v2778 = vunpack.c.l.b16 %v2262
        %v2779 = vunpack.c.l.b16 %v2263
        %v2780 = vunpack.c.l.b16 %v2264
        %v2781 = vunpack.c.l.b16 %v2265
        %v2782 = vunpack.c.l.b16 %v2266
        %v2783 = vunpack.c.l.b16 %v2267
        %v2784 = vunpack.c.l.b16 %v2268
        %v2785 = vunpack.c.l.b16 %v2269
        %v2786 = vunpack.c.l.b16 %v2270
        %v2787 = vunpack.c.l.b16 %v2271
        %v2788 = vunpack.c.l.b16 %v2272
        %v2789 = vunpack.c.l.b16 %v2273
        %v2790 = vunpack.c.l.b16 %v2274
        %v2791 = vunpack.c.l.b16 %v2275
        %v2792 = vunpack.c.l.b16 %v2276
        %v2793 = vunpack.c.l.b16 %v2277
        %v2794 = vunpack.c.l.b16 %v2278
        %v2795 = vunpack.c.l.b16 %v2279
        %v2796 = vunpack.c.l.b16 %v2280
        %v2797 = vunpack.c.l.b16 %v2281
        %v2798 = vunpack.c.l.b16 %v2282
        %v2799 = vunpack.c.l.b16 %v2283
        %v2800 = vunpack.c.l.b16 %v2284
        %v2801 = vunpack.c.l.b16 %v2285
        %v2802 = vunpack.c.l.b16 %v2286
        %v2803 = vunpack.c.l.b16 %v2287
        %v2804 = vunpack.c.l.b16 %v2288
        %v2805 = vunpack.c.l.b16 %v2289
        %v2806 = vunpack.c.l.b16 %v2290
        %v2807 = vunpack.c.l.b16 %v2291
        %v2808 = vunpack.c.l.b16 %v2292
        %v2809 = vunpack.c.l.b16 %v2293
        %v2810 = vunpack.c.l.b16 %v2294
        %v2811 = vunpack.c.l.b16 %v2295
        %v2812 = vunpack.c.l.b16 %v2296
        %v2813 = vunpack.c.l.b16 %v2297
        %v2814 = vunpack.c.l.b16 %v2298
        %v2815 = vunpack.c.l.b16 %v2299
        %v2816 = vunpack.c.l.b16 %v2300
        %v2817 = vunpack.c.l.b16 %v2301
        %v2818 = vunpack.c.l.b16 %v2302
        %v2819 = vunpack.c.l.b16 %v2303
        %v2820 = vunpack.c.l.b16 %v2304
        %v2821 = vunpack.c.l.b16 %v2305
        %v2822 = vunpack.c.l.b16 %v2306
        %v2823 = vunpack.c.l.b16 %v2307
        %v2824 = vunpack.c.l.b16 %v2308
        %v2825 = vunpack.c.l.b16 %v2309
        %v2826 = vunpack.c.l.b16 %v2310
        %v2827 = vunpack.c.l.b16 %v2311
        %v2828 = vunpack.c.l.b16 %v2312
        %v2829 = vunpack.c.l.b16 %v2313
        %v2830 = vunpack.c.l.b16 %v2314
        %v2831 = vunpack.c.l.b16 %v2315
        %v2832 = vunpack.c.l.b16 %v2316
        %v2833 = vunpack.c.l.b16 %v2317
        %v2834 = vunpack.c.l.b16 %v2318
        %v2835 = vunpack.c.l.b16 %v2319
        %v2836 = vunpack.c.l.b16 %v2320
        %v2837 = vunpack.c.l.b16 %v2321
        %v2838 = vunpack.c.l.b16 %v2322
        %v2839 = vunpack.c.l.b16 %v2323
        %v2840 = vunpack.c.l.b16 %v2324
        %v2841 = vunpack.c.l.b16 %v2325
        %v2842 = vunpack.c.l.b16 %v2326
        %v2843 = vunpack.c.l.b16 %v2327
        %v2844 = vunpack.c.l.b16 %v2328
        %v2845 = vunpack.c.l.b16 %v2329
        %v2846 = vunpack.c.l.b16 %v2330
        %v2847 = vunpack.c.l.b16 %v2331
        %v2848 = vunpack.c.l.b16 %v2332
        %v2849 = vunpack.c.l.b16 %v2333
        %v2850 = vunpack.c.l.b16 %v2334
        %v2851 = vunpack.c.l.b16 %v2335
        %v2852 = vunpack.c.l.b16 %v2336
        %v2853 = vunpack.c.l.b16 %v2337
        %v2854 = vunpack.c.l.b16 %v2338
        %v2855 = vunpack.c.l.b16 %v2339
        %v2856 = vunpack.c.l.b16 %v2340
        %v2857 = vunpack.c.l.b16 %v2341
        %v2858 = vunpack.c.l.b16 %v2342
        %v2859 = vunpack.c.l.b16 %v2343
        %v2860 = vunpack.c.l.b16 %v2344
        %v2861 = vunpack.c.l.b16 %v2345
        %v2862 = vunpack.c.l.b16 %v2346
        %v2863 = vunpack.c.l.b16 %v2347
        %v2864 = vunpack.c.l.b16 %v2348
        %v2865 = vunpack.c.l.b16 %v2349
        %v2866 = vunpack.c.l.b16 %v2350
        %v2867 = vunpack.c.l.b16 %v2351
        %v2868 = vunpack.c.l.b16 %v2352
        %v2869 = vunpack.c.l.b16 %v2353
        %v2870 = vunpack.c.l.b16 %v2354
        %v2871 = vunpack.c.l.b16 %v2355
        %v2872 = vunpack.c.l.b16 %v2356
        %v2873 = vunpack.c.l.b16 %v2357
        %v2874 = vunpack.c.l.b16 %v2358
        %v2875 = vunpack.c.l.b16 %v2359
        %v2876 = vunpack.c.l.b16 %v2360
        %v2877 = vunpack.c.l.b16 %v2361
        %v2878 = vunpack.c.l.b16 %v2362
        %v2879 = vunpack.c.l.b16 %v2363
        %v2880 = vunpack.c.l.b16 %v2364
        %v2881 = vunpack.c.l.b16 %v2365
        %v2882 = vunpack.c.l.b16 %v2366
        %v2883 = vunpack.c.l.b16 %v2367
        %v2884 = vunpack.c.l.b16 %v2368
        %v2885 = vunpack.c.l.b16 %v2369
        %v2886 = vunpack.c.l.b16 %v2370
        %v2887 = vunpack.c.l.b16 %v2371
        %v2888 = vunpack.c.l.b16 %v2372
        %v2889 = vunpack.c.l.b16 %v2373
        %v2890 = vunpack.c.l.b16 %v2374
        %v2891 = vunpack.c.l.b16 %v2375
        %v2892 = vpack.c.b16 %v2637, %v2636
        %v2893 = vpack.c.b16 %v2639, %v2638
        %v2894 = vpack.c.b16 %v2641, %v2640
        %v2895 = vpack.c.b16 %v2643, %v2642
        %v2896 = vpack.c.b16 %v2645, %v2644
        %v2897 = vpack.c.b16 %v2647, %v2646
        %v2898 = vpack.c.b16 %v2649, %v2648
        %v2899 = vpack.c.b16 %v2651, %v2650
        %v2900 = vpack.c.b16 %v2653, %v2652
        %v2901 = vpack.c.b16 %v2655, %v2654
        %v2902 = vpack.c.b16 %v2657, %v2656
        %v2903 = vpack.c.b16 %v2659, %v2658
        %v2904 = vpack.c.b16 %v2661, %v2660
        %v2905 = vpack.c.b16 %v2663, %v2662
        %v2906 = vpack.c.b16 %v2665, %v2664
        %v2907 = vpack.c.b16 %v2667, %v2666
        %v2908 = vpack.c.b16 %v2669, %v2668
        %v2909 = vpack.c.b16 %v2671, %v2670
        %v2910 = vpack.c.b16 %v2673, %v2672
        %v2911 = vpack.c.b16 %v2675, %v2674
        %v2912 = vpack.c.b16 %v2677, %v2676
        %v2913 = vpack.c.b16 %v2679, %v2678
        %v2914 = vpack.c.b16 %v2681, %v2680
        %v2915 = vpack.c.b16 %v2683, %v2682
        %v2916 = vpack.c.b16 %v2685, %v2684
        %v2917 = vpack.c.b16 %v2687, %v2686
        %v2918 = vpack.c.b16 %v2689, %v2688
        %v2919 = vpack.c.b16 %v2691, %v2690
        %v2920 = vpack.c.b16 %v2693, %v2692
        %v2921 = vpack.c.b16 %v2695, %v2694
        %v2922 = vpack.c.b16 %v2697, %v2696
        %v2923 = vpack.c.b16 %v2699, %v2698
        %v2924 = vpack.c.b16 %v2701, %v2700
        %v2925 = vpack.c.b16 %v2703, %v2702
        %v2926 = vpack.c.b16 %v2705, %v2704
        %v2927 = vpack.c.b16 %v2707, %v2706
        %v2928 = vpack.c.b16 %v2709, %v2708
        %v2929 = vpack.c.b16 %v2711, %v2710
        %v2930 = vpack.c.b16 %v2713, %v2712
        %v2931 = vpack.c.b16 %v2715, %v2714
        %v2932 = vpack.c.b16 %v2717, %v2716
        %v2933 = vpack.c.b16 %v2719, %v2718
        %v2934 = vpack.c.b16 %v2721, %v2720
        %v2935 = vpack.c.b16 %v2723, %v2722
        %v2936 = vpack.c.b16 %v2725, %v2724
        %v2937 = vpack.c.b16 %v2727, %v2726
        %v2938 = vpack.c.b16 %v2729, %v2728
        %v2939 = vpack.c.b16 %v2731, %v2730
        %v2940 = vpack.c.b16 %v2733, %v2732
        %v2941 = vpack.c.b16 %v2735, %v2734
        %v2942 = vpack.c.b16 %v2737, %v2736
        %v2943 = vpack.c.b16 %v2739, %v2738
        %v2944 = vpack.c.b16 %v2741, %v2740
        %v2945 = vpack.c.b16 %v2743, %v2742
        %v2946 = vpack.c.b16 %v2745, %v2744
        %v2947 = vpack.c.b16 %v2747, %v2746
        %v2948 = vpack.c.b16 %v2749, %v2748
        %v2949 = vpack.c.b16 %v2751, %v2750
        %v2950 = vpack.c.b16 %v2753, %v2752
        %v2951 = vpack.c.b16 %v2755, %v2754
        %v2952 = vpack.c.b16 %v2757, %v2756
        %v2953 = vpack.c.b16 %v2759, %v2758
        %v2954 = vpack.c.b16 %v2761, %v2760
        %v2955 = vpack.c.b16 %v2763, %v2762
        %v2956 = vpack.c.b16 %v2765, %v2764
        %v2957 = vpack.c.b16 %v2767, %v2766
        %v2958 = vpack.c.b16 %v2769, %v2768
        %v2959 = vpack.c.b16 %v2771, %v2770
        %v2960 = vpack.c.b16 %v2773, %v2772
        %v2961 = vpack.c.b16 %v2775, %v2774
        %v2962 = vpack.c.b16 %v2777, %v2776
        %v2963 = vpack.c.b16 %v2779, %v2778
        %v2964 = vpack.c.b16 %v2781, %v2780
        %v2965 = vpack.c.b16 %v2783, %v2782
        %v2966 = vpack.c.b16 %v2785, %v2784
        %v2967 = vpack.c.b16 %v2787, %v2786
        %v2968 = vpack.c.b16 %v2789, %v2788
        %v2969 = vpack.c.b16 %v2791, %v2790
        %v2970 = vpack.c.b16 %v2793, %v2792
        %v2971 = vpack.c.b16 %v2795, %v2794
        %v2972 = vpack.c.b16 %v2797, %v2796
        %v2973 = vpack.c.b16 %v2799, %v2798
        %v2974 = vpack.c.b16 %v2801, %v2800
        %v2975 = vpack.c.b16 %v2803, %v2802
        %v2976 = vpack.c.b16 %v2805, %v2804
        %v2977 = vpack.c.b16 %v2807, %v2806
        %v2978 = vpack.c.b16 %v2809, %v2808
        %v2979 = vpack.c.b16 %v2811, %v2810
        %v2980 = vpack.c.b16 %v2813, %v2812
        %v2981 = vpack.c.b16 %v2815, %v2814
        %v2982 = vpack.c.b16 %v2817, %v2816
        %v2983 = vpack.c.b16 %v2819, %v2818
        %v2984 = vpack.c.b16 %v2821, %v2820
        %v2985 = vpack.c.b16 %v2823, %v2822
        %v2986 = vpack.c.b16 %v2825, %v2824
        %v2987 = vpack.c.b16 %v2827, %v2826
        %v2988 = vpack.c.b16 %v2829, %v2828
        %v2989 = vpack.c.b16 %v2831, %v2830
        %v2990 = vpack.c.b16 %v2833, %v2832
        %v2991 = vpack.c.b16 %v2835, %v2834
        %v2992 = vpack.c.b16 %v2837, %v2836
        %v2993 = vpack.c.b16 %v2839, %v2838
        %v2994 = vpack.c.b16 %v2841, %v2840
        %v2995 = vpack.c.b16 %v2843, %v2842
        %v2996 = vpack.c.b16 %v2845, %v2844
        %v2997 = vpack.c.b16 %v2847, %v2846
        %v2998 = vpack.c.b16 %v2849, %v2848
        %v2999 = vpack.c.b16 %v2851, %v2850
        %v3000 = vpack.c.b16 %v2853, %v2852
        %v3001 = vpack.c.b16 %v2855, %v2854
        %v3002 = vpack.c.b16 %v2857, %v2856
        %v3003 = vpack.c.b16 %v2859, %v2858
        %v3004 = vpack.c.b16 %v2861, %v2860
        %v3005 = vpack.c.b16 %v2863, %v2862
        %v3006 = vpack.c.b16 %v2865, %v2864
        %v3007 = vpack.c.b16 %v2867, %v2866
        %v3008 = vpack.c.b16 %v2869, %v2868
        %v3009 = vpack.c.b16 %v2871, %v2870
        %v3010 = vpack.c.b16 %v2873, %v2872
        %v3011 = vpack.c.b16 %v2875, %v2874
        %v3012 = vpack.c.b16 %v2877, %v2876
        %v3013 = vpack.c.b16 %v2879, %v2878
        %v3014 = vpack.c.b16 %v2881, %v2880
        %v3015 = vpack.c.b16 %v2883, %v2882
        %v3016 = vpack.c.b16 %v2885, %v2884
        %v3017 = vpack.c.b16 %v2887, %v2886
        %v3018 = vpack.c.b16 %v2889, %v2888
        %v3019 = vpack.c.b16 %v2891, %v2890
        %3148 = vmatprep.subr.bf16.mxu0 0
        %3149 = vmatpush1.bf16.msra.mxu0 %v2899
        %3150 = vmatprep.subr.bf16.mxu0 0
        %3151 = vmatpush1.bf16.msra.mxu0 %v2898
        %3152 = vmatprep.subr.bf16.mxu0 0
        %3153 = vmatpush1.bf16.msra.mxu0 %v2897
        %3154 = vmatprep.subr.bf16.mxu0 0
        %3155 = vmatpush1.bf16.msra.mxu0 %v2896
        %3156 = vmatprep.subr.bf16.mxu0 0
        %3157 = vmatpush1.bf16.msra.mxu0 %v2895
        %3158 = vmatprep.subr.bf16.mxu0 0
        %3159 = vmatpush1.bf16.msra.mxu0 %v2894
        %3160 = vmatprep.subr.bf16.mxu0 0
        %3161 = vmatpush1.bf16.msra.mxu0 %v2893
        %3162 = vmatprep.subr.bf16.mxu0 0
        %3163 = vmatpush1.bf16.msra.mxu0 %v2892
        %3164 = vmatprep.subr.bf16.mxu0 0
        %3165 = vmatpush2.bf16.msra.mxu0 %v2907
        %3166 = vmatprep.subr.bf16.mxu0 0
        %3167 = vmatpush2.bf16.msra.mxu0 %v2906
        %3168 = vmatprep.subr.bf16.mxu0 0
        %3169 = vmatpush2.bf16.msra.mxu0 %v2905
        %3170 = vmatprep.subr.bf16.mxu0 0
        %3171 = vmatpush2.bf16.msra.mxu0 %v2904
        %3172 = vmatprep.subr.bf16.mxu0 0
        %3173 = vmatpush2.bf16.msra.mxu0 %v2903
        %3174 = vmatprep.subr.bf16.mxu0 0
        %3175 = vmatpush2.bf16.msra.mxu0 %v2902
        %3176 = vmatprep.subr.bf16.mxu0 0
        %3177 = vmatpush2.bf16.msra.mxu0 %v2901
        %3178 = vmatprep.subr.bf16.mxu0 0
        %3179 = vmatpush2.bf16.msra.mxu0 %v2900
        %3180 = vmatprep.mubr.bf16.mxu0 %v2105
        %3181 = vmatmul.mubr.bf16.gmra.mxu0 %v2104
        %v3182 = vpop.f32.mrf.mxu0
        %v3183 = vadd.f32 %v2379, %v3182
        %v3184 = vpop.f32.mrf.mxu0
        %v3185 = vpop.f32.mrf.mxu0
        %v3186 = vpop.f32.mrf.mxu0
        %3187 = vdwg.mxu0
        %3188 = vmatprep.subr.bf16.mxu0 0
        %3189 = vmatpush1.bf16.msra.mxu0 %v2915
        %3190 = vmatprep.subr.bf16.mxu0 0
        %3191 = vmatpush1.bf16.msra.mxu0 %v2914
        %3192 = vmatprep.subr.bf16.mxu0 0
        %3193 = vmatpush1.bf16.msra.mxu0 %v2913
        %3194 = vmatprep.subr.bf16.mxu0 0
        %3195 = vmatpush1.bf16.msra.mxu0 %v2912
        %3196 = vmatprep.subr.bf16.mxu0 0
        %3197 = vmatpush1.bf16.msra.mxu0 %v2911
        %3198 = vmatprep.subr.bf16.mxu0 0
        %3199 = vmatpush1.bf16.msra.mxu0 %v2910
        %3200 = vmatprep.subr.bf16.mxu0 0
        %3201 = vmatpush1.bf16.msra.mxu0 %v2909
        %3202 = vmatprep.subr.bf16.mxu0 0
        %3203 = vmatpush1.bf16.msra.mxu0 %v2908
        %3204 = vmatprep.subr.bf16.mxu0 0
        %3205 = vmatpush2.bf16.msra.mxu0 %v2923
        %3206 = vmatprep.subr.bf16.mxu0 0
        %3207 = vmatpush2.bf16.msra.mxu0 %v2922
        %3208 = vmatprep.subr.bf16.mxu0 0
        %3209 = vmatpush2.bf16.msra.mxu0 %v2921
        %3210 = vmatprep.subr.bf16.mxu0 0
        %3211 = vmatpush2.bf16.msra.mxu0 %v2920
        %3212 = vmatprep.subr.bf16.mxu0 0
        %3213 = vmatpush2.bf16.msra.mxu0 %v2919
        %3214 = vmatprep.subr.bf16.mxu0 0
        %3215 = vmatpush2.bf16.msra.mxu0 %v2918
        %3216 = vmatprep.subr.bf16.mxu0 0
        %3217 = vmatpush2.bf16.msra.mxu0 %v2917
        %3218 = vmatprep.subr.bf16.mxu0 0
        %3219 = vmatpush2.bf16.msra.mxu0 %v2916
        %3220 = vmatprep.mubr.bf16.mxu0 %v2107
        %3221 = vmatmul.mubr.bf16.gmra.mxu0 %v2106
        %v3222 = vpop.f32.mrf.mxu0
        %v3223 = vadd.f32 %v3183, %v3222
        %v3224 = vpop.f32.mrf.mxu0
        %v3225 = vpop.f32.mrf.mxu0
        %v3226 = vpop.f32.mrf.mxu0
        %3227 = vdwg.mxu0
        %3228 = vmatprep.subr.bf16.mxu0 0
        %3229 = vmatpush1.bf16.msra.mxu0 %v2931
        %3230 = vmatprep.subr.bf16.mxu0 0
        %3231 = vmatpush1.bf16.msra.mxu0 %v2930
        %3232 = vmatprep.subr.bf16.mxu0 0
        %3233 = vmatpush1.bf16.msra.mxu0 %v2929
        %3234 = vmatprep.subr.bf16.mxu0 0
        %3235 = vmatpush1.bf16.msra.mxu0 %v2928
        %3236 = vmatprep.subr.bf16.mxu0 0
        %3237 = vmatpush1.bf16.msra.mxu0 %v2927
        %3238 = vmatprep.subr.bf16.mxu0 0
        %3239 = vmatpush1.bf16.msra.mxu0 %v2926
        %3240 = vmatprep.subr.bf16.mxu0 0
        %3241 = vmatpush1.bf16.msra.mxu0 %v2925
        %3242 = vmatprep.subr.bf16.mxu0 0
        %3243 = vmatpush1.bf16.msra.mxu0 %v2924
        %3244 = vmatprep.subr.bf16.mxu0 0
        %3245 = vmatpush2.bf16.msra.mxu0 %v2939
        %3246 = vmatprep.subr.bf16.mxu0 0
        %3247 = vmatpush2.bf16.msra.mxu0 %v2938
        %3248 = vmatprep.subr.bf16.mxu0 0
        %3249 = vmatpush2.bf16.msra.mxu0 %v2937
        %3250 = vmatprep.subr.bf16.mxu0 0
        %3251 = vmatpush2.bf16.msra.mxu0 %v2936
        %3252 = vmatprep.subr.bf16.mxu0 0
        %3253 = vmatpush2.bf16.msra.mxu0 %v2935
        %3254 = vmatprep.subr.bf16.mxu0 0
        %3255 = vmatpush2.bf16.msra.mxu0 %v2934
        %3256 = vmatprep.subr.bf16.mxu0 0
        %3257 = vmatpush2.bf16.msra.mxu0 %v2933
        %3258 = vmatprep.subr.bf16.mxu0 0
        %3259 = vmatpush2.bf16.msra.mxu0 %v2932
        %3260 = vmatprep.mubr.bf16.mxu0 %v2109
        %3261 = vmatmul.mubr.bf16.gmra.mxu0 %v2108
        %v3262 = vpop.f32.mrf.mxu0
        %v3263 = vadd.f32 %v3223, %v3262
        %v3264 = vpop.f32.mrf.mxu0
        %v3265 = vpop.f32.mrf.mxu0
        %v3266 = vpop.f32.mrf.mxu0
        %3267 = vdwg.mxu0
        %3268 = vmatprep.subr.bf16.mxu0 0
        %3269 = vmatpush1.bf16.msra.mxu0 %v2947
        %3270 = vmatprep.subr.bf16.mxu0 0
        %3271 = vmatpush1.bf16.msra.mxu0 %v2946
        %3272 = vmatprep.subr.bf16.mxu0 0
        %3273 = vmatpush1.bf16.msra.mxu0 %v2945
        %3274 = vmatprep.subr.bf16.mxu0 0
        %3275 = vmatpush1.bf16.msra.mxu0 %v2944
        %3276 = vmatprep.subr.bf16.mxu0 0
        %3277 = vmatpush1.bf16.msra.mxu0 %v2943
        %3278 = vmatprep.subr.bf16.mxu0 0
        %3279 = vmatpush1.bf16.msra.mxu0 %v2942
        %3280 = vmatprep.subr.bf16.mxu0 0
        %3281 = vmatpush1.bf16.msra.mxu0 %v2941
        %3282 = vmatprep.subr.bf16.mxu0 0
        %3283 = vmatpush1.bf16.msra.mxu0 %v2940
        %3284 = vmatprep.subr.bf16.mxu0 0
        %3285 = vmatpush2.bf16.msra.mxu0 %v2955
        %3286 = vmatprep.subr.bf16.mxu0 0
        %3287 = vmatpush2.bf16.msra.mxu0 %v2954
        %3288 = vmatprep.subr.bf16.mxu0 0
        %3289 = vmatpush2.bf16.msra.mxu0 %v2953
        %3290 = vmatprep.subr.bf16.mxu0 0
        %3291 = vmatpush2.bf16.msra.mxu0 %v2952
        %3292 = vmatprep.subr.bf16.mxu0 0
        %3293 = vmatpush2.bf16.msra.mxu0 %v2951
        %3294 = vmatprep.subr.bf16.mxu0 0
        %3295 = vmatpush2.bf16.msra.mxu0 %v2950
        %3296 = vmatprep.subr.bf16.mxu0 0
        %3297 = vmatpush2.bf16.msra.mxu0 %v2949
        %3298 = vmatprep.subr.bf16.mxu0 0
        %3299 = vmatpush2.bf16.msra.mxu0 %v2948
        %3300 = vmatprep.mubr.bf16.mxu0 %v2111
        %3301 = vmatmul.mubr.bf16.gmra.mxu0 %v2110
        %v3302 = vpop.f32.mrf.mxu0
        %v3303 = vadd.f32 %v3263, %v3302
        %v3304 = vpop.f32.mrf.mxu0
        %v3305 = vpop.f32.mrf.mxu0
        %v3306 = vpop.f32.mrf.mxu0
        %3307 = vdwg.mxu0
        %3308 = vmatprep.subr.bf16.mxu0 0
        %3309 = vmatpush1.bf16.msra.mxu0 %v2963
        %3310 = vmatprep.subr.bf16.mxu0 0
        %3311 = vmatpush1.bf16.msra.mxu0 %v2962
        %3312 = vmatprep.subr.bf16.mxu0 0
        %3313 = vmatpush1.bf16.msra.mxu0 %v2961
        %3314 = vmatprep.subr.bf16.mxu0 0
        %3315 = vmatpush1.bf16.msra.mxu0 %v2960
        %3316 = vmatprep.subr.bf16.mxu0 0
        %3317 = vmatpush1.bf16.msra.mxu0 %v2959
        %3318 = vmatprep.subr.bf16.mxu0 0
        %3319 = vmatpush1.bf16.msra.mxu0 %v2958
        %3320 = vmatprep.subr.bf16.mxu0 0
        %3321 = vmatpush1.bf16.msra.mxu0 %v2957
        %3322 = vmatprep.subr.bf16.mxu0 0
        %3323 = vmatpush1.bf16.msra.mxu0 %v2956
        %3324 = vmatprep.subr.bf16.mxu0 0
        %3325 = vmatpush2.bf16.msra.mxu0 %v2971
        %3326 = vmatprep.subr.bf16.mxu0 0
        %3327 = vmatpush2.bf16.msra.mxu0 %v2970
        %3328 = vmatprep.subr.bf16.mxu0 0
        %3329 = vmatpush2.bf16.msra.mxu0 %v2969
        %3330 = vmatprep.subr.bf16.mxu0 0
        %3331 = vmatpush2.bf16.msra.mxu0 %v2968
        %3332 = vmatprep.subr.bf16.mxu0 0
        %3333 = vmatpush2.bf16.msra.mxu0 %v2967
        %3334 = vmatprep.subr.bf16.mxu0 0
        %3335 = vmatpush2.bf16.msra.mxu0 %v2966
        %3336 = vmatprep.subr.bf16.mxu0 0
        %3337 = vmatpush2.bf16.msra.mxu0 %v2965
        %3338 = vmatprep.subr.bf16.mxu0 0
        %3339 = vmatpush2.bf16.msra.mxu0 %v2964
        %3340 = vmatprep.mubr.bf16.mxu0 %v2113
        %3341 = vmatmul.mubr.bf16.gmra.mxu0 %v2112
        %v3342 = vpop.f32.mrf.mxu0
        %v3343 = vadd.f32 %v3303, %v3342
        %v3344 = vpop.f32.mrf.mxu0
        %v3345 = vpop.f32.mrf.mxu0
        %v3346 = vpop.f32.mrf.mxu0
        %3347 = vdwg.mxu0
        %3348 = vmatprep.subr.bf16.mxu0 0
        %3349 = vmatpush1.bf16.msra.mxu0 %v2979
        %3350 = vmatprep.subr.bf16.mxu0 0
        %3351 = vmatpush1.bf16.msra.mxu0 %v2978
        %3352 = vmatprep.subr.bf16.mxu0 0
        %3353 = vmatpush1.bf16.msra.mxu0 %v2977
        %3354 = vmatprep.subr.bf16.mxu0 0
        %3355 = vmatpush1.bf16.msra.mxu0 %v2976
        %3356 = vmatprep.subr.bf16.mxu0 0
        %3357 = vmatpush1.bf16.msra.mxu0 %v2975
        %3358 = vmatprep.subr.bf16.mxu0 0
        %3359 = vmatpush1.bf16.msra.mxu0 %v2974
        %3360 = vmatprep.subr.bf16.mxu0 0
        %3361 = vmatpush1.bf16.msra.mxu0 %v2973
        %3362 = vmatprep.subr.bf16.mxu0 0
        %3363 = vmatpush1.bf16.msra.mxu0 %v2972
        %3364 = vmatprep.subr.bf16.mxu0 0
        %3365 = vmatpush2.bf16.msra.mxu0 %v2987
        %3366 = vmatprep.subr.bf16.mxu0 0
        %3367 = vmatpush2.bf16.msra.mxu0 %v2986
        %3368 = vmatprep.subr.bf16.mxu0 0
        %3369 = vmatpush2.bf16.msra.mxu0 %v2985
        %3370 = vmatprep.subr.bf16.mxu0 0
        %3371 = vmatpush2.bf16.msra.mxu0 %v2984
        %3372 = vmatprep.subr.bf16.mxu0 0
        %3373 = vmatpush2.bf16.msra.mxu0 %v2983
        %3374 = vmatprep.subr.bf16.mxu0 0
        %3375 = vmatpush2.bf16.msra.mxu0 %v2982
        %3376 = vmatprep.subr.bf16.mxu0 0
        %3377 = vmatpush2.bf16.msra.mxu0 %v2981
        %3378 = vmatprep.subr.bf16.mxu0 0
        %3379 = vmatpush2.bf16.msra.mxu0 %v2980
        %3380 = vmatprep.mubr.bf16.mxu0 %v2115
        %3381 = vmatmul.mubr.bf16.gmra.mxu0 %v2114
        %v3382 = vpop.f32.mrf.mxu0
        %v3383 = vadd.f32 %v3343, %v3382
        %v3384 = vpop.f32.mrf.mxu0
        %v3385 = vpop.f32.mrf.mxu0
        %v3386 = vpop.f32.mrf.mxu0
        %3387 = vdwg.mxu0
        %3388 = vmatprep.subr.bf16.mxu0 0
        %3389 = vmatpush1.bf16.msra.mxu0 %v2995
        %3390 = vmatprep.subr.bf16.mxu0 0
        %3391 = vmatpush1.bf16.msra.mxu0 %v2994
        %3392 = vmatprep.subr.bf16.mxu0 0
        %3393 = vmatpush1.bf16.msra.mxu0 %v2993
        %3394 = vmatprep.subr.bf16.mxu0 0
        %3395 = vmatpush1.bf16.msra.mxu0 %v2992
        %3396 = vmatprep.subr.bf16.mxu0 0
        %3397 = vmatpush1.bf16.msra.mxu0 %v2991
        %3398 = vmatprep.subr.bf16.mxu0 0
        %3399 = vmatpush1.bf16.msra.mxu0 %v2990
        %3400 = vmatprep.subr.bf16.mxu0 0
        %3401 = vmatpush1.bf16.msra.mxu0 %v2989
        %3402 = vmatprep.subr.bf16.mxu0 0
        %3403 = vmatpush1.bf16.msra.mxu0 %v2988
        %3404 = vmatprep.subr.bf16.mxu0 0
        %3405 = vmatpush2.bf16.msra.mxu0 %v3003
        %3406 = vmatprep.subr.bf16.mxu0 0
        %3407 = vmatpush2.bf16.msra.mxu0 %v3002
        %3408 = vmatprep.subr.bf16.mxu0 0
        %3409 = vmatpush2.bf16.msra.mxu0 %v3001
        %3410 = vmatprep.subr.bf16.mxu0 0
        %3411 = vmatpush2.bf16.msra.mxu0 %v3000
        %3412 = vmatprep.subr.bf16.mxu0 0
        %3413 = vmatpush2.bf16.msra.mxu0 %v2999
        %3414 = vmatprep.subr.bf16.mxu0 0
        %3415 = vmatpush2.bf16.msra.mxu0 %v2998
        %3416 = vmatprep.subr.bf16.mxu0 0
        %3417 = vmatpush2.bf16.msra.mxu0 %v2997
        %3418 = vmatprep.subr.bf16.mxu0 0
        %3419 = vmatpush2.bf16.msra.mxu0 %v2996
        %3420 = vmatprep.mubr.bf16.mxu0 %v2117
        %3421 = vmatmul.mubr.bf16.gmra.mxu0 %v2116
        %v3422 = vpop.f32.mrf.mxu0
        %v3423 = vadd.f32 %v3383, %v3422
        %v3424 = vpop.f32.mrf.mxu0
        %v3425 = vpop.f32.mrf.mxu0
        %v3426 = vpop.f32.mrf.mxu0
        %3427 = vdwg.mxu0
        %3428 = vmatprep.subr.bf16.mxu0 0
        %3429 = vmatpush1.bf16.msra.mxu0 %v3011
        %3430 = vmatprep.subr.bf16.mxu0 0
        %3431 = vmatpush1.bf16.msra.mxu0 %v3010
        %3432 = vmatprep.subr.bf16.mxu0 0
        %3433 = vmatpush1.bf16.msra.mxu0 %v3009
        %3434 = vmatprep.subr.bf16.mxu0 0
        %3435 = vmatpush1.bf16.msra.mxu0 %v3008
        %3436 = vmatprep.subr.bf16.mxu0 0
        %3437 = vmatpush1.bf16.msra.mxu0 %v3007
        %3438 = vmatprep.subr.bf16.mxu0 0
        %3439 = vmatpush1.bf16.msra.mxu0 %v3006
        %3440 = vmatprep.subr.bf16.mxu0 0
        %3441 = vmatpush1.bf16.msra.mxu0 %v3005
        %3442 = vmatprep.subr.bf16.mxu0 0
        %3443 = vmatpush1.bf16.msra.mxu0 %v3004
        %3444 = vmatprep.subr.bf16.mxu0 0
        %3445 = vmatpush2.bf16.msra.mxu0 %v3019
        %3446 = vmatprep.subr.bf16.mxu0 0
        %3447 = vmatpush2.bf16.msra.mxu0 %v3018
        %3448 = vmatprep.subr.bf16.mxu0 0
        %3449 = vmatpush2.bf16.msra.mxu0 %v3017
        %3450 = vmatprep.subr.bf16.mxu0 0
        %3451 = vmatpush2.bf16.msra.mxu0 %v3016
        %3452 = vmatprep.subr.bf16.mxu0 0
        %3453 = vmatpush2.bf16.msra.mxu0 %v3015
        %3454 = vmatprep.subr.bf16.mxu0 0
        %3455 = vmatpush2.bf16.msra.mxu0 %v3014
        %3456 = vmatprep.subr.bf16.mxu0 0
        %3457 = vmatpush2.bf16.msra.mxu0 %v3013
        %3458 = vmatprep.subr.bf16.mxu0 0
        %3459 = vmatpush2.bf16.msra.mxu0 %v3012
        %3460 = vmatprep.mubr.bf16.mxu0 %v2119
        %3461 = vmatmul.mubr.bf16.gmra.mxu0 %v2118
        %v3462 = vpop.f32.mrf.mxu0
        %v3463 = vadd.f32 %v3423, %v3462
        %v3464 = vpop.f32.mrf.mxu0
        %v3465 = vpop.f32.mrf.mxu0
        %v3466 = vpop.f32.mrf.mxu0
        %3467 = vdwg.mxu0
        %v3468 = vadd.f32 %v1479, %v3463
        %v3469 = vsel %vm609, %v3468, 0.0
        %3470 = vadd.xlane.f32.xlu0 %v3469
        %v3471 = vpop.xlane.xlu0 %3470
        %v3472 = vmul.f32 %v3471, %v1459
        %v3473 = vsub.f32 %v3468, %v3472
        %v3474 = vmul.f32 %v3473, %v3473
        %v3475 = vsel %vm609, %v3474, 0.0
        %3476 = vadd.xlane.f32.xlu0 %v3475
        %v3477 = vpop.xlane.xlu0 %3476
        %v3478 = vmul.f32 %v3477, %v1459
        %v3479 = vadd.f32 %v3478, 1e-05
        %v3480 = vrsqrt.pop %v3479
        %v3481 = vmul.f32 %v3473, %v3480
        %v3482 = vlaneseq
        %v3483 = vshrl.u32 %v3482, 7
        %v3484 = vsub.s32 4, %v3483
        %v3485 = vrot.slane %v551, %v3484
        %v3486 = vmul.f32 %v3481, %v3485
        %v3487 = vlaneseq
        %v3488 = vshrl.u32 %v3487, 7
        %v3489 = vsub.s32 5, %v3488
        %v3490 = vrot.slane %v551, %v3489
        %v3491 = vadd.f32 %v3486, %v3490
        %3492 = vst.msk [vmem:[#allocation2] sm:$0xff] %vm609, %v3491
        %p3493 = scmp.eq.s32.totalorder %s23, 1
        // Predicated region
        $region69: #{tpu_custom_call.1} parent=63 // pred_check
          %p3494 = pneg %p3493
        $region70: #{tpu_custom_call.1} parent=63 // pred_check_branch
          %3496 = sbr.rel (%p3494) target = $region72
        $region71: #{tpu_custom_call.1} parent=63 // pred_region
          %v3497 = vpack.c.bf16 %v3491, %v3491
          %v3498 = vld [vmem:[%s10] sm:$0xf]
          %v3499 = vld [vmem:[%s10 + $0x4] sm:$0xf]
          %v3500 = vld [vmem:[%s10 + $0x8] sm:$0xf]
          %v3501 = vld [vmem:[%s10 + $0xc] sm:$0xf]
          %v3502 = vld [vmem:[%s2 + $0x1] sm:$0x1]
          %v3503 = vlaneseq
          %v3504 = vshrl.u32 %v3503, 7
          %v3505 = vsub.s32 0, %v3504
          %v3506 = vrot.slane %v3502, %v3505
          %v3511 = vunpack.c.l.b16 %v3498
          %v3512 = vunpack.c.l.b16 %v3499
          %v3513 = vunpack.c.l.b16 %v3500
          %v3514 = vunpack.c.l.b16 %v3501
          %v3515 = vpack.c.b16 %v3512, %v3511
          %v3516 = vpack.c.b16 %v3514, %v3513
          %v3520 = vsel %vm609, %v3497, 0
          %3522 = vmatprep.subr.bf16.mxu0 0
          %3523 = vmatpush1.bf16.msra.mxu0 0
          %3524 = vmatprep.subr.bf16.mxu0 0
          %3525 = vmatpush1.bf16.msra.mxu0 0
          %3526 = vmatprep.subr.bf16.mxu0 0
          %3527 = vmatpush1.bf16.msra.mxu0 0
          %3528 = vmatprep.subr.bf16.mxu0 0
          %3529 = vmatpush1.bf16.msra.mxu0 0
          %3530 = vmatprep.subr.bf16.mxu0 0
          %3531 = vmatpush1.bf16.msra.mxu0 0
          %3532 = vmatprep.subr.bf16.mxu0 0
          %3533 = vmatpush1.bf16.msra.mxu0 0
          %3534 = vmatprep.subr.bf16.mxu0 0
          %3535 = vmatpush1.bf16.msra.mxu0 %v3516
          %3536 = vmatprep.subr.bf16.mxu0 0
          %3537 = vmatpush1.bf16.msra.mxu0 %v3515
          %3538 = vmatprep.subr.bf16.mxu0 0
          %3539 = vmatpush2.bf16.msra.mxu0 0
          %3540 = vmatprep.subr.bf16.mxu0 0
          %3541 = vmatpush2.bf16.msra.mxu0 0
          %3542 = vmatprep.subr.bf16.mxu0 0
          %3543 = vmatpush2.bf16.msra.mxu0 0
          %3544 = vmatprep.subr.bf16.mxu0 0
          %3545 = vmatpush2.bf16.msra.mxu0 0
          %3546 = vmatprep.subr.bf16.mxu0 0
          %3547 = vmatpush2.bf16.msra.mxu0 0
          %3548 = vmatprep.subr.bf16.mxu0 0
          %3549 = vmatpush2.bf16.msra.mxu0 0
          %3550 = vmatprep.subr.bf16.mxu0 0
          %3551 = vmatpush2.bf16.msra.mxu0 0
          %3552 = vmatprep.subr.bf16.mxu0 0
          %3553 = vmatpush2.bf16.msra.mxu0 0
          %3554 = vmatprep.mubr.bf16.mxu0 0
          %3555 = vmatmul.mubr.bf16.gmra.mxu0 %v3520
          %v3556 = vpop.f32.mrf.mxu0
          %v3557 = vadd.f32 %v3506, %v3556
          %v3558 = vpop.f32.mrf.mxu0
          %v3559 = vpop.f32.mrf.mxu0
          %v3560 = vpop.f32.mrf.mxu0
          %3561 = vdwg.mxu0
          %3562 = vst [vmem:[#allocation3] sm:$0xff] %v3557
        $region72: #{tpu_custom_call.1} parent=63 // pred_fallthru
          _
        // Predicated region
        $region73: #{tpu_custom_call.1} parent=63 // pred_check
          %p3563 = pneg %p302
        $region74: #{tpu_custom_call.1} parent=63 // pred_check_branch
          %3565 = sbr.rel (%p3563) target = $region76
        $region75: #{tpu_custom_call.1} parent=63 // pred_region
          %s3567 = ssub.s32 128, 128
          %3568 = vsyncadd [#allocation4], %s3567
          %s3570 = sshll.u32 [#allocation3], 4
          %s3571 = int_to_ptr.vmem [resolvable:$true] %s3570
          %3573 = dma.vmem_to_hbm [thread:$0]  %s3571, 128, %s11, [#allocation4]
        $region76: #{tpu_custom_call.1} parent=63 // pred_fallthru
          _
        // Predicated region
        $region77: #{tpu_custom_call.1} parent=63 // pred_check
          %p3574 = pneg %p302
        $region78: #{tpu_custom_call.1} parent=63 // pred_check_branch
          %3576 = sbr.rel (%p3574) target = $region80
        $region79: #{tpu_custom_call.1} parent=63 // pred_region
          %3577 = dma.done [#allocation4], 128
        $region80: #{tpu_custom_call.1} parent=63 // pred_fallthru
          _
      $region64: #{tpu_custom_call.1} parent=5 // pred_fallthru
        _
      %p3578 = scmp.le.s32.totalorder 2, %s18
      // Predicated region
      $region81: #{tpu_custom_call.1} parent=5 // pred_check
        %p3579 = pneg %p3578
      $region82: #{tpu_custom_call.1} parent=5 // pred_check_branch
        %3581 = sbr.rel (%p3579) target = $region84
      $region83: #{tpu_custom_call.1} parent=5 // pred_region
        %s3582 = ssub.s32 %s18, 2
      $region84: #{tpu_custom_call.1} parent=5 // pred_fallthru
        _
    $region6: #{tpu_custom_call.1} parent=1 // loop_footer
      %s22 = sadd.s32 1, %s18
    $region7: #{tpu_custom_call.1} parent=1 // loop_footer_branch
      %17 = sbr.rel target = $region3
    $region8: #{tpu_custom_call.1} parent=1 // loop_exit
      _
    %3583 = vsyncpa [#allocation4], 1
    %s3584 = scalar_lea.sflag [#allocation4], 1
    %3585 = vsyncpa %s3584, 1

</llo_original>
